<compile_context>
chip_gen: v7x
topology: tpu7x:2x2x1
jax: 0.10.0
libtpu: 0.0.40
codegen_flags: <defaults>
</compile_context>

<pallas_src>
import functools

import jax
import jax.numpy as jnp
from jax.experimental import pallas as pl
from jax.experimental.pallas import tpu as pltpu

NUM_CLASSES = 21
BN_EPS = 1e-5


# ----------------------------------------------------------------------------
# Fused head kernel: one grid step == one batch image.
# ----------------------------------------------------------------------------
def _head_kernel(xs_ref, wb_ref, w1_ref, b1_ref, w2_ref, b2_ref,
                 w3t_ref, b3_ref, at_ref, o_ref, pad_ref=None, *,
                 hf, wf, dil, taps):
    hw = hf * wf

    # ---- backbone stand-in: 1x1 projection 3 -> 960 + hardswish ------------
    xs = xs_ref[0]                                            # (HW, 3) f32
    feat = jnp.dot(xs, wb_ref[...], preferred_element_type=jnp.float32)
    feat = feat * jnp.clip(feat + 3.0, 0.0, 6.0) * (1.0 / 6.0)  # hardswish

    # ---- classifier[0..2]: 1x1 conv 960->256 (BN scale folded) + ReLU ------
    h1 = jnp.dot(feat.astype(jnp.bfloat16), w1_ref[...],
                 preferred_element_type=jnp.float32) + b1_ref[...]
    h1 = jnp.maximum(h1, 0.0).astype(jnp.bfloat16)            # (HW, 256)

    # ---- classifier[3..5]: 3x3 conv, dilation=dil (BN folded) + ReLU -------
    if taps == ((1, 1),):
        # dilation >= feature extent: every off-centre tap reads only zero
        # padding, so the conv collapses to a single channel matmul.
        acc = jnp.dot(h1, w2_ref[0], preferred_element_type=jnp.float32)
    else:
        # General path (not taken at the test size): zero-padded spatial
        # scratch + shifted matmuls for the taps that overlap real data.
        pad_ref[...] = jnp.zeros_like(pad_ref)
        for r in range(hf):
            pad_ref[dil + r, dil:dil + wf, :] = h1[r * wf:(r + 1) * wf, :]
        acc = jnp.zeros((hw, w2_ref.shape[-1]), jnp.float32)
        for t, (ky, kx) in enumerate(taps):
            dy, dx = (ky - 1) * dil, (kx - 1) * dil
            rows = [pad_ref[dil + dy + r, dil + dx:dil + dx + wf, :]
                    for r in range(hf)]
            patch = jnp.concatenate(rows, axis=0)             # (HW, 256)
            acc = acc + jnp.dot(patch, w2_ref[t],
                                preferred_element_type=jnp.float32)
    h2 = jnp.maximum(acc + b2_ref[...], 0.0).astype(jnp.bfloat16)  # (HW, 256)

    # ---- classifier[6]: Dropout(0.1) -> identity in eval mode --------------
    # ---- classifier[7]: 1x1 conv 256 -> C, computed transposed so that -----
    #      C lands on the sublane axis:  l_t[c,p] = sum_k w3[k,c] h2[p,k] + b3[c]
    l_t = jax.lax.dot_general(
        w3t_ref[...], h2,
        dimension_numbers=(((1,), (1,)), ((), ())),
        preferred_element_type=jnp.float32) + b3_ref[...]     # (C, HW)

    # ---- bilinear upsample as one Kronecker matmul (lane-dense output) -----
    o_ref[0] = jnp.dot(l_t, at_ref[...], preferred_element_type=jnp.float32)


# ----------------------------------------------------------------------------
# Bilinear interpolation matrix (align_corners=False) — matches F.interpolate.
# Built once in plain JAX; applied inside the kernel via kron(Ay, Ax).
# ----------------------------------------------------------------------------
def _interp_matrix(out_size, in_size):
    scale = in_size / out_size
    d = (jnp.arange(out_size, dtype=jnp.float32) + 0.5) * scale - 0.5
    d = jnp.clip(d, 0.0, in_size - 1)
    lo = jnp.floor(d).astype(jnp.int32)
    hi = jnp.minimum(lo + 1, in_size - 1)
    frac = d - lo.astype(jnp.float32)
    m = jnp.zeros((out_size, in_size), jnp.float32)
    rows = jnp.arange(out_size)
    m = m.at[rows, lo].add(1.0 - frac)
    m = m.at[rows, hi].add(frac)
    return m


def _valid_taps(hf, wf, dil):
    """3x3 taps whose dilated window overlaps the real (un-padded) feature map."""
    taps = []
    for ky in range(3):
        for kx in range(3):
            dy, dx = (ky - 1) * dil, (kx - 1) * dil
            if abs(dy) < hf and abs(dx) < wf:
                taps.append((ky, kx))
    return tuple(taps)


# ----------------------------------------------------------------------------
# Full forward (NCHW in / NCHW out, like the PyTorch module).
# ----------------------------------------------------------------------------
def lightweight_deeplabv3_forward(x_nchw, params, dilation=6):
    N, Cin, H, W = x_nchw.shape
    C = params["w3"].shape[1]

    # TODO(synk): pretrained MobileNetV3-Large backbone (torchvision checkpoint,
    # ~50 layers) is not reproducible in-script; replaced by a deterministic
    # stride-16 stand-in (subsample + 1x1 projection 3->960 + hardswish) so the
    # classifier head sees features of the correct shape (N, Hf, Wf, 960).
    xs = jnp.transpose(x_nchw[:, :, ::16, ::16], (0, 2, 3, 1))  # (N, Hf, Wf, 3)
    Hf, Wf = xs.shape[1], xs.shape[2]
    HWf = Hf * Wf
    xs = xs.reshape(N, HWf, Cin).astype(jnp.float32)

    taps = _valid_taps(Hf, Wf, dilation)

    # Fold BN scales into the conv weights; keep the additive biases.
    wb = params["wb"].astype(jnp.float32)                               # (3, 960)
    w1f = (params["w1"] * params["s1"][None, :]).astype(jnp.bfloat16)   # (960, 256)
    b1 = params["b1"].reshape(1, -1).astype(jnp.float32)
    w2f = params["w2"] * params["s2"][None, None, :]
    w2v = jnp.stack([w2f[ky * 3 + kx] for (ky, kx) in taps]).astype(jnp.bfloat16)
    b2 = params["b2"].reshape(1, -1).astype(jnp.float32)
    w3t = params["w3"].T.astype(jnp.bfloat16)                           # (C, 256)
    b3 = params["b3"].reshape(-1, 1).astype(jnp.float32)                # (C, 1)

    # Bilinear (align_corners=False) upsample as a single Kronecker matmul.
    at = jnp.kron(_interp_matrix(H, Hf), _interp_matrix(W, Wf)).T       # (HWf, H*W)

    scratch = []
    if taps != ((1, 1),):
        c1 = w2f.shape[1]
        scratch = [pltpu.VMEM((Hf + 2 * dilation, Wf + 2 * dilation, c1),
                              jnp.bfloat16)]

    out = pl.pallas_call(
        functools.partial(_head_kernel, hf=Hf, wf=Wf, dil=dilation, taps=taps),
        out_shape=jax.ShapeDtypeStruct((N, C, H * W), jnp.float32),
        grid_spec=pltpu.PrefetchScalarGridSpec(
            num_scalar_prefetch=0,
            grid=(N,),
            in_specs=[
                pl.BlockSpec((1, HWf, Cin), lambda n: (n, 0, 0)),
                pl.BlockSpec(wb.shape, lambda n: (0, 0)),
                pl.BlockSpec(w1f.shape, lambda n: (0, 0)),
                pl.BlockSpec(b1.shape, lambda n: (0, 0)),
                pl.BlockSpec(w2v.shape, lambda n: (0, 0, 0)),
                pl.BlockSpec(b2.shape, lambda n: (0, 0)),
                pl.BlockSpec(w3t.shape, lambda n: (0, 0)),
                pl.BlockSpec(b3.shape, lambda n: (0, 0)),
                pl.BlockSpec(at.shape, lambda n: (0, 0)),
            ],
            out_specs=pl.BlockSpec((1, C, H * W), lambda n: (n, 0, 0)),
            scratch_shapes=scratch,
        ),
        compiler_params=pltpu.CompilerParams(
            dimension_semantics=("parallel",)),
    )(xs, wb, w1f, b1, w2v, b2, w3t, b3, at)

    return out.reshape(N, C, H, W)


# ----------------------------------------------------------------------------
# Deterministic parameter init (mirrors _init_weight: kaiming_normal_ on conv
# weights, BN gamma=1 / beta=0, running stats mean=0 / var=1 -> folded).
# ----------------------------------------------------------------------------
def make_params(key):
    ks = jax.random.split(key, 6)
    bn_scale = 1.0 / jnp.sqrt(1.0 + BN_EPS)   # gamma=1, beta=0, mean=0, var=1

    wb = jax.random.normal(ks[0], (3, 960), jnp.float32) * 0.1

    std1 = (2.0 / 960) ** 0.5
    w1 = jax.random.normal(ks[1], (960, 256), jnp.float32) * std1

    std2 = (2.0 / (256 * 9)) ** 0.5
    w2 = (jax.random.normal(ks[2], (3, 3, 256, 256), jnp.float32) * std2
          ).reshape(9, 256, 256)

    std3 = (2.0 / 256) ** 0.5
    w3 = jax.random.normal(ks[3], (256, NUM_CLASSES), jnp.float32) * std3
    bound = 1.0 / (256 ** 0.5)
    b3 = jax.random.uniform(ks[4], (NUM_CLASSES,), jnp.float32, -bound, bound)

    return {
        "wb": wb,
        "w1": w1, "s1": jnp.full((256,), bn_scale), "b1": jnp.zeros((256,)),
        "w2": w2, "s2": jnp.full((256,), bn_scale), "b2": jnp.zeros((256,)),
        "w3": w3, "b3": b3,
    }


if __name__ == "__main__":
    key = jax.random.PRNGKey(0)
    pkey, xkey = jax.random.split(key)
    params = make_params(pkey)

    # NCHW input, like the PyTorch module.
    x = jax.random.normal(xkey, (2, 3, 64, 64), jnp.float32)

    fwd = jax.jit(lightweight_deeplabv3_forward)
    out = jax.block_until_ready(fwd(x, params))

    assert out.shape == (2, NUM_CLASSES, 64, 64), out.shape
    assert bool(jnp.all(jnp.isfinite(out)))
    print("KERNEL_OK")
</pallas_src>

<mosaic_0001>
module attributes {stable_mosaic.version = 11 : i64} {
  func.func private @main(%arg0: i32) attributes {dimension_semantics = [#tpu.dimension_semantics<core_parallel>], iteration_bounds = array<i64: 2>, tpu.core_type = #tpu.core_type<sc_scalar_subcore>, window_params = []} {
    return
  }
}

module attributes {stable_mosaic.version = 11 : i64} {
  func.func private @main(%arg0: i32) attributes {dimension_semantics = [#tpu.dimension_semantics<core_parallel>], iteration_bounds = array<i64: 2>, tpu.core_type = #tpu.core_type<sc_scalar_subcore>, window_params = []} {
    return
  }
}

module attributes {stable_mosaic.version = 11 : i64} {
  func.func @_head_kernel(%arg0: i32, %arg1: memref<1x16x3xf32, #tpu.memory_space<vmem>>, %arg2: memref<3x960xf32, #tpu.memory_space<vmem>>, %arg3: memref<960x256xbf16, #tpu.memory_space<vmem>>, %arg4: memref<1x256xf32, #tpu.memory_space<vmem>>, %arg5: memref<1x256x256xbf16, #tpu.memory_space<vmem>>, %arg6: memref<1x256xf32, #tpu.memory_space<vmem>>, %arg7: memref<21x256xbf16, #tpu.memory_space<vmem>>, %arg8: memref<21x1xf32, #tpu.memory_space<vmem>>, %arg9: memref<16x4096xf32, #tpu.memory_space<vmem>>, %arg10: memref<1x21x4096xf32, #tpu.memory_space<vmem>>) attributes {dimension_semantics = [#tpu.dimension_semantics<parallel>], iteration_bounds = array<i64: 2>, scalar_prefetch = 0 : i64, scratch_operands = 0 : i64, tpu.core_type = #tpu.core_type<tc>, window_params = [{transform_indices = @transform_0, window_bounds = array<i64: 1, 16, 3>}, {pipeline_mode = #tpu.pipeline_mode<synchronous>, transform_indices = @transform_1, window_bounds = array<i64: 3, 960>}, {pipeline_mode = #tpu.pipeline_mode<synchronous>, transform_indices = @transform_2, window_bounds = array<i64: 960, 256>}, {pipeline_mode = #tpu.pipeline_mode<synchronous>, transform_indices = @transform_3, window_bounds = array<i64: 1, 256>}, {pipeline_mode = #tpu.pipeline_mode<synchronous>, transform_indices = @transform_4, window_bounds = array<i64: 1, 256, 256>}, {pipeline_mode = #tpu.pipeline_mode<synchronous>, transform_indices = @transform_5, window_bounds = array<i64: 1, 256>}, {pipeline_mode = #tpu.pipeline_mode<synchronous>, transform_indices = @transform_6, window_bounds = array<i64: 21, 256>}, {pipeline_mode = #tpu.pipeline_mode<synchronous>, transform_indices = @transform_7, window_bounds = array<i64: 21, 1>}, {pipeline_mode = #tpu.pipeline_mode<synchronous>, transform_indices = @transform_8, window_bounds = array<i64: 16, 4096>}, {transform_indices = @transform_9, window_bounds = array<i64: 1, 21, 4096>}]} {
    %c0 = arith.constant 0 : index
    %c0_0 = arith.constant 0 : index
    %c0_1 = arith.constant 0 : index
    %0 = vector.load %arg1[%c0, %c0_0, %c0_1] : memref<1x16x3xf32, #tpu.memory_space<vmem>>, vector<1x16x3xf32>
    %1 = vector.shape_cast %0 : vector<1x16x3xf32> to vector<16x3xf32>
    %c0_2 = arith.constant 0 : index
    %c0_3 = arith.constant 0 : index
    %2 = vector.load %arg2[%c0_2, %c0_3] : memref<3x960xf32, #tpu.memory_space<vmem>>, vector<3x960xf32>
    %cst = arith.constant dense<0.000000e+00> : vector<16x960xf32>
    %3 = tpu.matmul %1, %2, %cst {dimension_numbers = #tpu.dot_dimension_numbers<[1], [0], [0], [1], [0, 0, 1, 1], [], []>} : vector<16x3xf32>, vector<3x960xf32>, vector<16x960xf32> -> vector<16x960xf32>
    %cst_4 = arith.constant 3.000000e+00 : f32
    %4 = vector.broadcast %cst_4 : f32 to vector<16x960xf32>
    %5 = arith.addf %3, %4 : vector<16x960xf32>
    %cst_5 = arith.constant 0.000000e+00 : f32
    %cst_6 = arith.constant 6.000000e+00 : f32
    %6 = vector.broadcast %cst_5 : f32 to vector<16x960xf32>
    %7 = arith.maximumf %6, %5 : vector<16x960xf32>
    %8 = vector.broadcast %cst_6 : f32 to vector<16x960xf32>
    %9 = arith.minimumf %8, %7 : vector<16x960xf32>
    %10 = arith.mulf %3, %9 : vector<16x960xf32>
    %cst_7 = arith.constant 0.166666672 : f32
    %11 = vector.broadcast %cst_7 : f32 to vector<16x960xf32>
    %12 = arith.mulf %10, %11 : vector<16x960xf32>
    %13 = arith.truncf %12 : vector<16x960xf32> to vector<16x960xbf16>
    %c0_8 = arith.constant 0 : index
    %c0_9 = arith.constant 0 : index
    %14 = vector.load %arg3[%c0_8, %c0_9] : memref<960x256xbf16, #tpu.memory_space<vmem>>, vector<960x256xbf16>
    %cst_10 = arith.constant dense<0.000000e+00> : vector<16x256xf32>
    %15 = tpu.matmul %13, %14, %cst_10 {dimension_numbers = #tpu.dot_dimension_numbers<[1], [0], [0], [1], [0, 0, 1, 1], [], []>} : vector<16x960xbf16>, vector<960x256xbf16>, vector<16x256xf32> -> vector<16x256xf32>
    %c0_11 = arith.constant 0 : index
    %c0_12 = arith.constant 0 : index
    %16 = vector.load %arg4[%c0_11, %c0_12] : memref<1x256xf32, #tpu.memory_space<vmem>>, vector<1x256xf32>
    %17 = vector.broadcast %16 : vector<1x256xf32> to vector<16x256xf32>
    %18 = arith.addf %15, %17 : vector<16x256xf32>
    %cst_13 = arith.constant 0.000000e+00 : f32
    %19 = vector.broadcast %cst_13 : f32 to vector<16x256xf32>
    %20 = arith.maximumf %18, %19 : vector<16x256xf32>
    %21 = arith.truncf %20 : vector<16x256xf32> to vector<16x256xbf16>
    %c0_14 = arith.constant 0 : index
    %c0_15 = arith.constant 0 : index
    %c0_16 = arith.constant 0 : index
    %22 = vector.load %arg5[%c0_14, %c0_15, %c0_16] : memref<1x256x256xbf16, #tpu.memory_space<vmem>>, vector<1x256x256xbf16>
    %23 = vector.shape_cast %22 : vector<1x256x256xbf16> to vector<256x256xbf16>
    %cst_17 = arith.constant dense<0.000000e+00> : vector<16x256xf32>
    %24 = tpu.matmul %21, %23, %cst_17 {dimension_numbers = #tpu.dot_dimension_numbers<[1], [0], [0], [1], [0, 0, 1, 1], [], []>} : vector<16x256xbf16>, vector<256x256xbf16>, vector<16x256xf32> -> vector<16x256xf32>
    %c0_18 = arith.constant 0 : index
    %c0_19 = arith.constant 0 : index
    %25 = vector.load %arg6[%c0_18, %c0_19] : memref<1x256xf32, #tpu.memory_space<vmem>>, vector<1x256xf32>
    %26 = vector.broadcast %25 : vector<1x256xf32> to vector<16x256xf32>
    %27 = arith.addf %24, %26 : vector<16x256xf32>
    %cst_20 = arith.constant 0.000000e+00 : f32
    %28 = vector.broadcast %cst_20 : f32 to vector<16x256xf32>
    %29 = arith.maximumf %27, %28 : vector<16x256xf32>
    %30 = arith.truncf %29 : vector<16x256xf32> to vector<16x256xbf16>
    %c0_21 = arith.constant 0 : index
    %c0_22 = arith.constant 0 : index
    %31 = vector.load %arg7[%c0_21, %c0_22] : memref<21x256xbf16, #tpu.memory_space<vmem>>, vector<21x256xbf16>
    %cst_23 = arith.constant dense<0.000000e+00> : vector<21x16xf32>
    %32 = tpu.matmul %31, %30, %cst_23 {dimension_numbers = #tpu.dot_dimension_numbers<[1], [1], [0], [0], [0, 0, 1, 0], [], []>} : vector<21x256xbf16>, vector<16x256xbf16>, vector<21x16xf32> -> vector<21x16xf32>
    %c0_24 = arith.constant 0 : index
    %c0_25 = arith.constant 0 : index
    %33 = vector.load %arg8[%c0_24, %c0_25] : memref<21x1xf32, #tpu.memory_space<vmem>>, vector<21x1xf32>
    %34 = vector.broadcast %33 : vector<21x1xf32> to vector<21x16xf32>
    %35 = arith.addf %32, %34 : vector<21x16xf32>
    %c0_26 = arith.constant 0 : index
    %c0_27 = arith.constant 0 : index
    %36 = vector.load %arg9[%c0_26, %c0_27] : memref<16x4096xf32, #tpu.memory_space<vmem>>, vector<16x4096xf32>
    %cst_28 = arith.constant dense<0.000000e+00> : vector<21x4096xf32>
    %37 = tpu.matmul %35, %36, %cst_28 {dimension_numbers = #tpu.dot_dimension_numbers<[1], [0], [0], [1], [0, 0, 1, 1], [], []>} : vector<21x16xf32>, vector<16x4096xf32>, vector<21x4096xf32> -> vector<21x4096xf32>
    %c0_29 = arith.constant 0 : index
    %c0_30 = arith.constant 0 : index
    %c0_31 = arith.constant 0 : index
    %38 = vector.load %arg10[%c0_29, %c0_30, %c0_31] : memref<1x21x4096xf32, #tpu.memory_space<vmem>>, vector<1x21x4096xf32>
    %39 = vector.shape_cast %38 : vector<1x21x4096xf32> to vector<21x4096xf32>
    %40 = vector.shape_cast %37 : vector<21x4096xf32> to vector<1x21x4096xf32>
    tpu.vector_store %arg10[%c0_29, %c0_30, %c0_31], %40 {strides = array<i32>} : memref<1x21x4096xf32, #tpu.memory_space<vmem>>, vector<1x21x4096xf32>,
    return
  }
  func.func @transform_0(%arg0: i32) -> (i32, i32, i32) {
    %c0_i32 = arith.constant 0 : i32
    %c0_i32_0 = arith.constant 0 : i32
    %c0_i32_1 = arith.constant 0 : i32
    return %arg0, %c0_i32, %c0_i32_0 : i32, i32, i32
  }
  func.func @transform_1(%arg0: i32) -> (i32, i32) {
    %c0_i32 = arith.constant 0 : i32
    %c0_i32_0 = arith.constant 0 : i32
    %c0_i32_1 = arith.constant 0 : i32
    return %c0_i32, %c0_i32_0 : i32, i32
  }
  func.func @transform_2(%arg0: i32) -> (i32, i32) {
    %c0_i32 = arith.constant 0 : i32
    %c0_i32_0 = arith.constant 0 : i32
    %c0_i32_1 = arith.constant 0 : i32
    return %c0_i32, %c0_i32_0 : i32, i32
  }
  func.func @transform_3(%arg0: i32) -> (i32, i32) {
    %c0_i32 = arith.constant 0 : i32
    %c0_i32_0 = arith.constant 0 : i32
    %c0_i32_1 = arith.constant 0 : i32
    return %c0_i32, %c0_i32_0 : i32, i32
  }
  func.func @transform_4(%arg0: i32) -> (i32, i32, i32) {
    %c0_i32 = arith.constant 0 : i32
    %c0_i32_0 = arith.constant 0 : i32
    %c0_i32_1 = arith.constant 0 : i32
    %c0_i32_2 = arith.constant 0 : i32
    return %c0_i32, %c0_i32_0, %c0_i32_1 : i32, i32, i32
  }
  func.func @transform_5(%arg0: i32) -> (i32, i32) {
    %c0_i32 = arith.constant 0 : i32
    %c0_i32_0 = arith.constant 0 : i32
    %c0_i32_1 = arith.constant 0 : i32
    return %c0_i32, %c0_i32_0 : i32, i32
  }
  func.func @transform_6(%arg0: i32) -> (i32, i32) {
    %c0_i32 = arith.constant 0 : i32
    %c0_i32_0 = arith.constant 0 : i32
    %c0_i32_1 = arith.constant 0 : i32
    return %c0_i32, %c0_i32_0 : i32, i32
  }
  func.func @transform_7(%arg0: i32) -> (i32, i32) {
    %c0_i32 = arith.constant 0 : i32
    %c0_i32_0 = arith.constant 0 : i32
    %c0_i32_1 = arith.constant 0 : i32
    return %c0_i32, %c0_i32_0 : i32, i32
  }
  func.func @transform_8(%arg0: i32) -> (i32, i32) {
    %c0_i32 = arith.constant 0 : i32
    %c0_i32_0 = arith.constant 0 : i32
    %c0_i32_1 = arith.constant 0 : i32
    return %c0_i32, %c0_i32_0 : i32, i32
  }
  func.func @transform_9(%arg0: i32) -> (i32, i32, i32) {
    %c0_i32 = arith.constant 0 : i32
    %c0_i32_0 = arith.constant 0 : i32
    %c0_i32_1 = arith.constant 0 : i32
    return %arg0, %c0_i32, %c0_i32_0 : i32, i32, i32
  }
}

</mosaic_0001>

<llo_original>
// kernel: lightweight_deeplabv3_forward.1
$region0: #{lightweight_deeplabv3_forward.1}
  #allocation0 [shape = 'u32[]', space=smem, size = 0x4, offset = 0x4, fixed_abs, tag = 'smem constant byte address 0x4 - core index']
  #allocation1 [shape = 'u32[144,128]{1,0:T(1,128)}', space=vmem, size = 0x12000, scoped, tag = 'internal scratch']
  %s0 = inlined_call_operand.vmem [shape: f32[2,16,3], index: 0, kind: input, shape index: {}]
  %s1 = inlined_call_operand.vmem [shape: f32[3,960], index: 1, kind: input, shape index: {}]
  %s2 = inlined_call_operand.vmem [shape: bf16[960,256], index: 2, kind: input, shape index: {}]
  %s3 = inlined_call_operand.vmem [shape: f32[1,256], index: 3, kind: input, shape index: {}]
  %s4 = inlined_call_operand.vmem [shape: bf16[1,256,256], index: 4, kind: input, shape index: {}]
  %s5 = inlined_call_operand.vmem [shape: f32[1,256], index: 5, kind: input, shape index: {}]
  %s6 = inlined_call_operand.vmem [shape: bf16[21,256], index: 6, kind: input, shape index: {}]
  %s7 = inlined_call_operand.vmem [shape: f32[21,1], index: 7, kind: input, shape index: {}]
  %s8 = inlined_call_operand.vmem [shape: f32[16,4096], index: 8, kind: input, shape index: {}]
  %s9 = inlined_call_operand.vmem [shape: f32[2,21,4096], index: 9, kind: output, shape index: {}]
  %s10 = sld [smem:[#allocation0]]
  $region69: #{lightweight_deeplabv3_forward.1} parent=0
    _
  %s12 = ssub.s32 1, %s10
  %s13 = scalar_select 0, %s12, %s10
  loop: start=0, step=1, limit=4
  $region2: #{lightweight_deeplabv3_forward.1} parent=0 // loop_pre_header
    _
  $region3: #{lightweight_deeplabv3_forward.1} parent=0 // loop_header
    %s15 = sphi 0, %s19
    %p16 = scmp.ge.s32.totalorder %s15, 4
    %s25 = sphi 0, %s27
    %s28 = sphi 0, %s25
    %s29 = sphi 0, %s28
    %s45 = sphi 0, %s29
    %s49 = sphi 0, %s49
    %s51 = sphi 0, %s49
    %s52 = sphi 0, %s51
    %s66 = sphi 0, %s52
    %s70 = sphi 0, %s70
    %s72 = sphi 0, %s70
    %s73 = sphi 0, %s72
    %s87 = sphi 0, %s73
    %s91 = sphi 0, %s91
    %s93 = sphi 0, %s91
    %s94 = sphi 0, %s93
    %s108 = sphi 0, %s94
    %s112 = sphi 0, %s112
    %s114 = sphi 0, %s112
    %s115 = sphi 0, %s114
    %s129 = sphi 0, %s115
    %s133 = sphi 0, %s133
    %s135 = sphi 0, %s133
    %s136 = sphi 0, %s135
    %s150 = sphi 0, %s136
    %s154 = sphi 0, %s154
    %s156 = sphi 0, %s154
    %s157 = sphi 0, %s156
    %s171 = sphi 0, %s157
    %s175 = sphi 0, %s175
    %s177 = sphi 0, %s175
    %s178 = sphi 0, %s177
    %s192 = sphi 0, %s178
    %s196 = sphi 0, %s196
    %s198 = sphi 0, %s196
    %s199 = sphi 0, %s198
    %s213 = sphi 0, %s199
    %s219 = sphi 0, %s221
    %s222 = sphi 0, %s219
    %s223 = sphi 0, %s222
    %s239 = sphi 0, %s223
  $region4: #{lightweight_deeplabv3_forward.1} parent=0 // loop_header_branch
    %18 = sbr.rel (%p16) target = $region8
  $region5: #{lightweight_deeplabv3_forward.1} parent=0 // loop_body
    %s20 = ssub.s32 %s15, 1
    %s21 = ssub.s32 %s15, 2
    %s22 = sadd.s32 %s15, 1
    %s23 = ssub.s32 %s15, %s22
    %p24 = scmp.eq.s32.totalorder %s23, 0
    %s26 = sadd.s32 %s25, 1
    %s27 = scalar_select %p24, %s25, %s26
    %p30 = pneg %p24
    %p31 = scmp.eq.s32.totalorder %s15, 1
    %p32 = por %p30, %p31
    %p33 = scmp.ne.s32.totalorder %s25, %s28
    %p34 = scmp.eq.s32.totalorder %s15, 0
    %p35 = por %p33, %p34
    %p36 = scmp.ne.s32.totalorder %s25, %s28
    %p37 = scmp.eq.s32.totalorder %s20, 1
    %p38 = por %p36, %p37
    %p39 = scmp.ne.s32.totalorder %s28, %s29
    %p40 = scmp.eq.s32.totalorder %s20, 0
    %p41 = por %p39, %p40
    %p42 = scmp.ne.s32.totalorder %s28, %s29
    %p43 = scmp.eq.s32.totalorder %s21, 1
    %p44 = por %p42, %p43
    %p46 = scmp.ne.s32.totalorder %s29, %s45
    %p47 = scmp.eq.s32.totalorder %s21, 0
    %p48 = por %p46, %p47
    %s50 = sadd.s32 %s49, 1
    %p53 = scmp.eq.s32.totalorder %s15, 1
    %p54 = scmp.ne.s32.totalorder %s49, %s51
    %p55 = scmp.eq.s32.totalorder %s15, 0
    %p56 = por %p54, %p55
    %p57 = scmp.ne.s32.totalorder %s49, %s51
    %p58 = scmp.eq.s32.totalorder %s20, 1
    %p59 = por %p57, %p58
    %p60 = scmp.ne.s32.totalorder %s51, %s52
    %p61 = scmp.eq.s32.totalorder %s20, 0
    %p62 = por %p60, %p61
    %p63 = scmp.ne.s32.totalorder %s51, %s52
    %p64 = scmp.eq.s32.totalorder %s21, 1
    %p65 = por %p63, %p64
    %p67 = scmp.ne.s32.totalorder %s52, %s66
    %p68 = scmp.eq.s32.totalorder %s21, 0
    %p69 = por %p67, %p68
    %s71 = sadd.s32 %s70, 1
    %p74 = scmp.eq.s32.totalorder %s15, 1
    %p75 = scmp.ne.s32.totalorder %s70, %s72
    %p76 = scmp.eq.s32.totalorder %s15, 0
    %p77 = por %p75, %p76
    %p78 = scmp.ne.s32.totalorder %s70, %s72
    %p79 = scmp.eq.s32.totalorder %s20, 1
    %p80 = por %p78, %p79
    %p81 = scmp.ne.s32.totalorder %s72, %s73
    %p82 = scmp.eq.s32.totalorder %s20, 0
    %p83 = por %p81, %p82
    %p84 = scmp.ne.s32.totalorder %s72, %s73
    %p85 = scmp.eq.s32.totalorder %s21, 1
    %p86 = por %p84, %p85
    %p88 = scmp.ne.s32.totalorder %s73, %s87
    %p89 = scmp.eq.s32.totalorder %s21, 0
    %p90 = por %p88, %p89
    %s92 = sadd.s32 %s91, 1
    %p95 = scmp.eq.s32.totalorder %s15, 1
    %p96 = scmp.ne.s32.totalorder %s91, %s93
    %p97 = scmp.eq.s32.totalorder %s15, 0
    %p98 = por %p96, %p97
    %p99 = scmp.ne.s32.totalorder %s91, %s93
    %p100 = scmp.eq.s32.totalorder %s20, 1
    %p101 = por %p99, %p100
    %p102 = scmp.ne.s32.totalorder %s93, %s94
    %p103 = scmp.eq.s32.totalorder %s20, 0
    %p104 = por %p102, %p103
    %p105 = scmp.ne.s32.totalorder %s93, %s94
    %p106 = scmp.eq.s32.totalorder %s21, 1
    %p107 = por %p105, %p106
    %p109 = scmp.ne.s32.totalorder %s94, %s108
    %p110 = scmp.eq.s32.totalorder %s21, 0
    %p111 = por %p109, %p110
    %s113 = sadd.s32 %s112, 1
    %p116 = scmp.eq.s32.totalorder %s15, 1
    %p117 = scmp.ne.s32.totalorder %s112, %s114
    %p118 = scmp.eq.s32.totalorder %s15, 0
    %p119 = por %p117, %p118
    %p120 = scmp.ne.s32.totalorder %s112, %s114
    %p121 = scmp.eq.s32.totalorder %s20, 1
    %p122 = por %p120, %p121
    %p123 = scmp.ne.s32.totalorder %s114, %s115
    %p124 = scmp.eq.s32.totalorder %s20, 0
    %p125 = por %p123, %p124
    %p126 = scmp.ne.s32.totalorder %s114, %s115
    %p127 = scmp.eq.s32.totalorder %s21, 1
    %p128 = por %p126, %p127
    %p130 = scmp.ne.s32.totalorder %s115, %s129
    %p131 = scmp.eq.s32.totalorder %s21, 0
    %p132 = por %p130, %p131
    %s134 = sadd.s32 %s133, 1
    %p137 = scmp.eq.s32.totalorder %s15, 1
    %p138 = scmp.ne.s32.totalorder %s133, %s135
    %p139 = scmp.eq.s32.totalorder %s15, 0
    %p140 = por %p138, %p139
    %p141 = scmp.ne.s32.totalorder %s133, %s135
    %p142 = scmp.eq.s32.totalorder %s20, 1
    %p143 = por %p141, %p142
    %p144 = scmp.ne.s32.totalorder %s135, %s136
    %p145 = scmp.eq.s32.totalorder %s20, 0
    %p146 = por %p144, %p145
    %p147 = scmp.ne.s32.totalorder %s135, %s136
    %p148 = scmp.eq.s32.totalorder %s21, 1
    %p149 = por %p147, %p148
    %p151 = scmp.ne.s32.totalorder %s136, %s150
    %p152 = scmp.eq.s32.totalorder %s21, 0
    %p153 = por %p151, %p152
    %s155 = sadd.s32 %s154, 1
    %p158 = scmp.eq.s32.totalorder %s15, 1
    %p159 = scmp.ne.s32.totalorder %s154, %s156
    %p160 = scmp.eq.s32.totalorder %s15, 0
    %p161 = por %p159, %p160
    %p162 = scmp.ne.s32.totalorder %s154, %s156
    %p163 = scmp.eq.s32.totalorder %s20, 1
    %p164 = por %p162, %p163
    %p165 = scmp.ne.s32.totalorder %s156, %s157
    %p166 = scmp.eq.s32.totalorder %s20, 0
    %p167 = por %p165, %p166
    %p168 = scmp.ne.s32.totalorder %s156, %s157
    %p169 = scmp.eq.s32.totalorder %s21, 1
    %p170 = por %p168, %p169
    %p172 = scmp.ne.s32.totalorder %s157, %s171
    %p173 = scmp.eq.s32.totalorder %s21, 0
    %p174 = por %p172, %p173
    %s176 = sadd.s32 %s175, 1
    %p179 = scmp.eq.s32.totalorder %s15, 1
    %p180 = scmp.ne.s32.totalorder %s175, %s177
    %p181 = scmp.eq.s32.totalorder %s15, 0
    %p182 = por %p180, %p181
    %p183 = scmp.ne.s32.totalorder %s175, %s177
    %p184 = scmp.eq.s32.totalorder %s20, 1
    %p185 = por %p183, %p184
    %p186 = scmp.ne.s32.totalorder %s177, %s178
    %p187 = scmp.eq.s32.totalorder %s20, 0
    %p188 = por %p186, %p187
    %p189 = scmp.ne.s32.totalorder %s177, %s178
    %p190 = scmp.eq.s32.totalorder %s21, 1
    %p191 = por %p189, %p190
    %p193 = scmp.ne.s32.totalorder %s178, %s192
    %p194 = scmp.eq.s32.totalorder %s21, 0
    %p195 = por %p193, %p194
    %s197 = sadd.s32 %s196, 1
    %p200 = scmp.eq.s32.totalorder %s15, 1
    %p201 = scmp.ne.s32.totalorder %s196, %s198
    %p202 = scmp.eq.s32.totalorder %s15, 0
    %p203 = por %p201, %p202
    %p204 = scmp.ne.s32.totalorder %s196, %s198
    %p205 = scmp.eq.s32.totalorder %s20, 1
    %p206 = por %p204, %p205
    %p207 = scmp.ne.s32.totalorder %s198, %s199
    %p208 = scmp.eq.s32.totalorder %s20, 0
    %p209 = por %p207, %p208
    %p210 = scmp.ne.s32.totalorder %s198, %s199
    %p211 = scmp.eq.s32.totalorder %s21, 1
    %p212 = por %p210, %p211
    %p214 = scmp.ne.s32.totalorder %s199, %s213
    %p215 = scmp.eq.s32.totalorder %s21, 0
    %p216 = por %p214, %p215
    %s217 = ssub.s32 %s15, %s22
    %p218 = scmp.eq.s32.totalorder %s217, 0
    %s220 = sadd.s32 %s219, 1
    %s221 = scalar_select %p218, %s219, %s220
    %p224 = pneg %p218
    %p225 = scmp.eq.s32.totalorder %s15, 1
    %p226 = por %p224, %p225
    %p227 = scmp.ne.s32.totalorder %s219, %s222
    %p228 = scmp.eq.s32.totalorder %s15, 0
    %p229 = por %p227, %p228
    %p230 = scmp.ne.s32.totalorder %s219, %s222
    %p231 = scmp.eq.s32.totalorder %s20, 1
    %p232 = por %p230, %p231
    %p233 = scmp.ne.s32.totalorder %s222, %s223
    %p234 = scmp.eq.s32.totalorder %s20, 0
    %p235 = por %p233, %p234
    %p236 = scmp.ne.s32.totalorder %s222, %s223
    %p237 = scmp.eq.s32.totalorder %s21, 1
    %p238 = por %p236, %p237
    %p240 = scmp.ne.s32.totalorder %s223, %s239
    %p241 = scmp.eq.s32.totalorder %s21, 0
    %p242 = por %p240, %p241
    %p243 = scmp.le.s32.totalorder 1, %s15
    %p244 = scmp.lt.s32.totalorder %s15, 3
    %p245 = pnand %p243, %p244
    %p246 = pneg %p245
    // Predicated region
    $region9: #{lightweight_deeplabv3_forward.1} parent=5 // pred_check
      _
    $region10: #{lightweight_deeplabv3_forward.1} parent=5 // pred_check_branch
      %248 = sbr.rel (%p245) target = $region12
    $region11: #{lightweight_deeplabv3_forward.1} parent=5 // pred_region
      %s249 = ssub.s32 %s15, 1
      // Predicated region
      $region13: #{lightweight_deeplabv3_forward.1} parent=11 // pred_check
        %p250 = pneg %p62
      $region14: #{lightweight_deeplabv3_forward.1} parent=11 // pred_check_branch
        %252 = sbr.rel (%p250) target = $region16
      $region15: #{lightweight_deeplabv3_forward.1} parent=11 // pred_region
        _
      $region16: #{lightweight_deeplabv3_forward.1} parent=11 // pred_fallthru
        _
      // Predicated region
      $region17: #{lightweight_deeplabv3_forward.1} parent=11 // pred_check
        %p253 = pneg %p83
      $region18: #{lightweight_deeplabv3_forward.1} parent=11 // pred_check_branch
        %255 = sbr.rel (%p253) target = $region20
      $region19: #{lightweight_deeplabv3_forward.1} parent=11 // pred_region
        _
      $region20: #{lightweight_deeplabv3_forward.1} parent=11 // pred_fallthru
        _
      // Predicated region
      $region21: #{lightweight_deeplabv3_forward.1} parent=11 // pred_check
        %p256 = pneg %p104
      $region22: #{lightweight_deeplabv3_forward.1} parent=11 // pred_check_branch
        %258 = sbr.rel (%p256) target = $region24
      $region23: #{lightweight_deeplabv3_forward.1} parent=11 // pred_region
        _
      $region24: #{lightweight_deeplabv3_forward.1} parent=11 // pred_fallthru
        _
      // Predicated region
      $region25: #{lightweight_deeplabv3_forward.1} parent=11 // pred_check
        %p259 = pneg %p125
      $region26: #{lightweight_deeplabv3_forward.1} parent=11 // pred_check_branch
        %261 = sbr.rel (%p259) target = $region28
      $region27: #{lightweight_deeplabv3_forward.1} parent=11 // pred_region
        _
      $region28: #{lightweight_deeplabv3_forward.1} parent=11 // pred_fallthru
        _
      // Predicated region
      $region29: #{lightweight_deeplabv3_forward.1} parent=11 // pred_check
        %p262 = pneg %p146
      $region30: #{lightweight_deeplabv3_forward.1} parent=11 // pred_check_branch
        %264 = sbr.rel (%p262) target = $region32
      $region31: #{lightweight_deeplabv3_forward.1} parent=11 // pred_region
        _
      $region32: #{lightweight_deeplabv3_forward.1} parent=11 // pred_fallthru
        _
      // Predicated region
      $region33: #{lightweight_deeplabv3_forward.1} parent=11 // pred_check
        %p265 = pneg %p167
      $region34: #{lightweight_deeplabv3_forward.1} parent=11 // pred_check_branch
        %267 = sbr.rel (%p265) target = $region36
      $region35: #{lightweight_deeplabv3_forward.1} parent=11 // pred_region
        _
      $region36: #{lightweight_deeplabv3_forward.1} parent=11 // pred_fallthru
        _
      // Predicated region
      $region37: #{lightweight_deeplabv3_forward.1} parent=11 // pred_check
        %p268 = pneg %p188
      $region38: #{lightweight_deeplabv3_forward.1} parent=11 // pred_check_branch
        %270 = sbr.rel (%p268) target = $region40
      $region39: #{lightweight_deeplabv3_forward.1} parent=11 // pred_region
        _
      $region40: #{lightweight_deeplabv3_forward.1} parent=11 // pred_fallthru
        _
      // Predicated region
      $region41: #{lightweight_deeplabv3_forward.1} parent=11 // pred_check
        %p271 = pneg %p209
      $region42: #{lightweight_deeplabv3_forward.1} parent=11 // pred_check_branch
        %273 = sbr.rel (%p271) target = $region44
      $region43: #{lightweight_deeplabv3_forward.1} parent=11 // pred_region
        _
      $region44: #{lightweight_deeplabv3_forward.1} parent=11 // pred_fallthru
        _
    $region12: #{lightweight_deeplabv3_forward.1} parent=5 // pred_fallthru
      _
    %p274 = scmp.lt.s32.totalorder %s15, 2
    // Predicated region
    $region45: #{lightweight_deeplabv3_forward.1} parent=5 // pred_check
      %p275 = pneg %p274
    $region46: #{lightweight_deeplabv3_forward.1} parent=5 // pred_check_branch
      %277 = sbr.rel (%p275) target = $region48
    $region47: #{lightweight_deeplabv3_forward.1} parent=5 // pred_region
      // Predicated region
      $region49: #{lightweight_deeplabv3_forward.1} parent=47 // pred_check
        %p278 = pneg %p35
      $region50: #{lightweight_deeplabv3_forward.1} parent=47 // pred_check_branch
        %280 = sbr.rel (%p278) target = $region52
      $region51: #{lightweight_deeplabv3_forward.1} parent=47 // pred_region
        %p281 = scmp.lt.s32.totalorder %s15, 1
        %s282 = scalar_select %p281, %s15, 1
        %s283 = smul.addr %s282, 2
        %s284 = smul.addr %s283, 8
        %s285 = scalar_lea.vmem %s0, %s284
      $region52: #{lightweight_deeplabv3_forward.1} parent=47 // pred_fallthru
        _
    $region48: #{lightweight_deeplabv3_forward.1} parent=5 // pred_fallthru
      _
    %p286 = scmp.le.s32.totalorder 1, %s15
    %p287 = scmp.lt.s32.totalorder %s15, 3
    %p288 = pnand %p286, %p287
    %p289 = pneg %p288
    // Predicated region
    $region53: #{lightweight_deeplabv3_forward.1} parent=5 // pred_check
      _
    $region54: #{lightweight_deeplabv3_forward.1} parent=5 // pred_check_branch
      %291 = sbr.rel (%p288) target = $region56
    $region55: #{lightweight_deeplabv3_forward.1} parent=5 // pred_region
      %s292 = ssub.s32 %s15, 1
      %p293 = scmp.lt.s32.totalorder %s20, 1
      %s294 = scalar_select %p293, %s20, 1
      %s295 = smul.addr %s294, 2
      %s296 = smul.addr %s295, 8
      %s297 = scalar_lea.vmem %s0, %s296
      %p298 = pneg %p41
      %p299 = pneg %p38
      %p300 = pneg %p62
      %p301 = pneg %p59
      %p302 = pneg %p83
      %p303 = pneg %p80
      %p304 = pneg %p104
      %p305 = pneg %p101
      %p306 = pneg %p125
      %p307 = pneg %p122
      %p308 = pneg %p146
      %p309 = pneg %p143
      %p310 = pneg %p167
      %p311 = pneg %p164
      %p312 = pneg %p188
      %p313 = pneg %p185
      %p314 = pneg %p209
      %p315 = pneg %p206
      %p316 = pneg %p235
      %p317 = pneg %p232
      %p318 = scmp.lt.s32.totalorder %s20, 1
      %s319 = scalar_select %p318, %s20, 1
      %s320 = smul.addr %s319, 96
      %s321 = smul.addr %s320, 8
      %s322 = scalar_lea.vmem %s9, %s321
      %p323 = scmp.lt.s32.totalorder %s20, 1
      %s324 = scalar_select %p323, %s20, 1
      %s325 = smul.addr %s324, 2
      %s326 = smul.addr %s325, 8
      %s327 = scalar_lea.vmem %s0, %s326
      %p328 = scmp.lt.s32.totalorder %s20, 1
      %s329 = scalar_select %p328, %s20, 1
      %s330 = smul.addr %s329, 96
      %s331 = smul.addr %s330, 8
      %s332 = scalar_lea.vmem %s9, %s331
      %v334 = vld [vmem:[%s327] sm:$0xff]
      %v335 = vld [vmem:[%s327 + $0x8] sm:$0xff]
      %v336 = vld [vmem:[%s1] sm:$0x77]
      %v337 = vld [vmem:[%s1 + $0x8] sm:$0x77]
      %v338 = vld [vmem:[%s1 + $0x10] sm:$0x77]
      %v339 = vld [vmem:[%s1 + $0x18] sm:$0x77]
      %v344 = vcombine.high %v336, %v336
      %v345 = vcombine.high %v337, %v337
      %v346 = vcombine.high %v338, %v338
      %v347 = vcombine.high %v339, %v339
      %vm348 = vcmask 23552
      %v350 = vsel %vm348, %v334, 0
      %v353 = vsel %vm348, %v335, 0
      %vm355 = vcmask 1042432
      %v356 = vsel %vm355, %v336, 0
      %v358 = vsel %vm355, %v344, 0
      %v360 = vsel %vm355, %v337, 0
      %v362 = vsel %vm355, %v345, 0
      %v364 = vsel %vm355, %v338, 0
      %v366 = vsel %vm355, %v346, 0
      %v368 = vsel %vm355, %v339, 0
      %v370 = vsel %vm355, %v347, 0
      %372 = vmatprep.subr.mxu0 %v358
      %373 = vmatpush1.msra.mxu0 %v356
      %374 = vmatprep.subr.mxu0 0.0
      %375 = vmatpush1.msra.mxu0 0.0
      %376 = vmatprep.subr.mxu0 0.0
      %377 = vmatpush1.msra.mxu0 0.0
      %378 = vmatprep.subr.mxu0 0.0
      %379 = vmatpush1.msra.mxu0 0.0
      %380 = vmatprep.subr.mxu0 0.0
      %381 = vmatpush1.msra.mxu0 0.0
      %382 = vmatprep.subr.mxu0 0.0
      %383 = vmatpush1.msra.mxu0 0.0
      %384 = vmatprep.subr.mxu0 0.0
      %385 = vmatpush1.msra.mxu0 0.0
      %386 = vmatprep.subr.mxu0 0.0
      %387 = vmatpush1.msra.mxu0 0.0
      %388 = vmatprep.subr.mxu0 0.0
      %389 = vmatpush1.msra.mxu0 0.0
      %390 = vmatprep.subr.mxu0 0.0
      %391 = vmatpush1.msra.mxu0 0.0
      %392 = vmatprep.subr.mxu0 0.0
      %393 = vmatpush1.msra.mxu0 0.0
      %394 = vmatprep.subr.mxu0 0.0
      %395 = vmatpush1.msra.mxu0 0.0
      %396 = vmatprep.subr.mxu0 0.0
      %397 = vmatpush1.msra.mxu0 0.0
      %398 = vmatprep.subr.mxu0 0.0
      %399 = vmatpush1.msra.mxu0 0.0
      %400 = vmatprep.subr.mxu0 0.0
      %401 = vmatpush1.msra.mxu0 0.0
      %402 = vmatprep.subr.mxu0 0.0
      %403 = vmatpush1.msra.mxu0 0.0
      %404 = vmatprep.subr.mxu0 0.0
      %405 = vmatpush1.msra.mxu0 0.0
      %406 = vmatprep.subr.mxu0 0.0
      %407 = vmatpush1.msra.mxu0 0.0
      %408 = vmatprep.subr.mxu0 0.0
      %409 = vmatpush1.msra.mxu0 0.0
      %410 = vmatprep.subr.mxu0 0.0
      %411 = vmatpush1.msra.mxu0 0.0
      %412 = vmatprep.subr.mxu0 0.0
      %413 = vmatpush1.msra.mxu0 0.0
      %414 = vmatprep.subr.mxu0 0.0
      %415 = vmatpush1.msra.mxu0 0.0
      %416 = vmatprep.subr.mxu0 0.0
      %417 = vmatpush1.msra.mxu0 0.0
      %418 = vmatprep.subr.mxu0 0.0
      %419 = vmatpush1.msra.mxu0 0.0
      %420 = vmatprep.subr.mxu0 0.0
      %421 = vmatpush1.msra.mxu0 0.0
      %422 = vmatprep.subr.mxu0 0.0
      %423 = vmatpush1.msra.mxu0 0.0
      %424 = vmatprep.subr.mxu0 0.0
      %425 = vmatpush1.msra.mxu0 0.0
      %426 = vmatprep.subr.mxu0 0.0
      %427 = vmatpush1.msra.mxu0 0.0
      %428 = vmatprep.subr.mxu0 0.0
      %429 = vmatpush1.msra.mxu0 0.0
      %430 = vmatprep.subr.mxu0 0.0
      %431 = vmatpush1.msra.mxu0 0.0
      %432 = vmatprep.subr.mxu0 0.0
      %433 = vmatpush1.msra.mxu0 0.0
      %434 = vmatprep.subr.mxu0 0.0
      %435 = vmatpush1.msra.mxu0 0.0
      %436 = vmatprep.mubr.f32.mxu0 0.0
      %437 = vmatmul.mubr.f32.gmra.mrb[0].mxu0 %v350
      %v438 = vpop.f32.mrb[0].mxu0
      %v439 = vadd.f32 0.0, %v438
      %v440 = vpop.f32.mrb[0].mxu0
      %v441 = vadd.f32 0.0, %v440
      %442 = vmatprep.mubr.f32.mxu0 0.0
      %443 = vmatmul.mubr.f32.gmra.mrb[0].mxu0 %v353
      %v444 = vpop.f32.mrb[0].mxu0
      %v445 = vadd.f32 0.0, %v444
      %v446 = vpop.f32.mrb[0].mxu0
      %v447 = vadd.f32 0.0, %v446
      %448 = vdwg.mxu0
      %449 = vmatprep.subr.mxu0 %v362
      %450 = vmatpush1.msra.mxu0 %v360
      %451 = vmatprep.subr.mxu0 0.0
      %452 = vmatpush1.msra.mxu0 0.0
      %453 = vmatprep.subr.mxu0 0.0
      %454 = vmatpush1.msra.mxu0 0.0
      %455 = vmatprep.subr.mxu0 0.0
      %456 = vmatpush1.msra.mxu0 0.0
      %457 = vmatprep.subr.mxu0 0.0
      %458 = vmatpush1.msra.mxu0 0.0
      %459 = vmatprep.subr.mxu0 0.0
      %460 = vmatpush1.msra.mxu0 0.0
      %461 = vmatprep.subr.mxu0 0.0
      %462 = vmatpush1.msra.mxu0 0.0
      %463 = vmatprep.subr.mxu0 0.0
      %464 = vmatpush1.msra.mxu0 0.0
      %465 = vmatprep.subr.mxu0 0.0
      %466 = vmatpush1.msra.mxu0 0.0
      %467 = vmatprep.subr.mxu0 0.0
      %468 = vmatpush1.msra.mxu0 0.0
      %469 = vmatprep.subr.mxu0 0.0
      %470 = vmatpush1.msra.mxu0 0.0
      %471 = vmatprep.subr.mxu0 0.0
      %472 = vmatpush1.msra.mxu0 0.0
      %473 = vmatprep.subr.mxu0 0.0
      %474 = vmatpush1.msra.mxu0 0.0
      %475 = vmatprep.subr.mxu0 0.0
      %476 = vmatpush1.msra.mxu0 0.0
      %477 = vmatprep.subr.mxu0 0.0
      %478 = vmatpush1.msra.mxu0 0.0
      %479 = vmatprep.subr.mxu0 0.0
      %480 = vmatpush1.msra.mxu0 0.0
      %481 = vmatprep.subr.mxu0 0.0
      %482 = vmatpush1.msra.mxu0 0.0
      %483 = vmatprep.subr.mxu0 0.0
      %484 = vmatpush1.msra.mxu0 0.0
      %485 = vmatprep.subr.mxu0 0.0
      %486 = vmatpush1.msra.mxu0 0.0
      %487 = vmatprep.subr.mxu0 0.0
      %488 = vmatpush1.msra.mxu0 0.0
      %489 = vmatprep.subr.mxu0 0.0
      %490 = vmatpush1.msra.mxu0 0.0
      %491 = vmatprep.subr.mxu0 0.0
      %492 = vmatpush1.msra.mxu0 0.0
      %493 = vmatprep.subr.mxu0 0.0
      %494 = vmatpush1.msra.mxu0 0.0
      %495 = vmatprep.subr.mxu0 0.0
      %496 = vmatpush1.msra.mxu0 0.0
      %497 = vmatprep.subr.mxu0 0.0
      %498 = vmatpush1.msra.mxu0 0.0
      %499 = vmatprep.subr.mxu0 0.0
      %500 = vmatpush1.msra.mxu0 0.0
      %501 = vmatprep.subr.mxu0 0.0
      %502 = vmatpush1.msra.mxu0 0.0
      %503 = vmatprep.subr.mxu0 0.0
      %504 = vmatpush1.msra.mxu0 0.0
      %505 = vmatprep.subr.mxu0 0.0
      %506 = vmatpush1.msra.mxu0 0.0
      %507 = vmatprep.subr.mxu0 0.0
      %508 = vmatpush1.msra.mxu0 0.0
      %509 = vmatprep.subr.mxu0 0.0
      %510 = vmatpush1.msra.mxu0 0.0
      %511 = vmatprep.subr.mxu0 0.0
      %512 = vmatpush1.msra.mxu0 0.0
      %513 = vmatprep.mubr.f32.mxu0 0.0
      %514 = vmatmul.mubr.f32.gmra.mrb[0].mxu0 %v350
      %v515 = vpop.f32.mrb[0].mxu0
      %v516 = vadd.f32 0.0, %v515
      %v517 = vpop.f32.mrb[0].mxu0
      %v518 = vadd.f32 0.0, %v517
      %519 = vmatprep.mubr.f32.mxu0 0.0
      %520 = vmatmul.mubr.f32.gmra.mrb[0].mxu0 %v353
      %v521 = vpop.f32.mrb[0].mxu0
      %v522 = vadd.f32 0.0, %v521
      %v523 = vpop.f32.mrb[0].mxu0
      %v524 = vadd.f32 0.0, %v523
      %525 = vdwg.mxu0
      %526 = vmatprep.subr.mxu0 %v366
      %527 = vmatpush1.msra.mxu0 %v364
      %528 = vmatprep.subr.mxu0 0.0
      %529 = vmatpush1.msra.mxu0 0.0
      %530 = vmatprep.subr.mxu0 0.0
      %531 = vmatpush1.msra.mxu0 0.0
      %532 = vmatprep.subr.mxu0 0.0
      %533 = vmatpush1.msra.mxu0 0.0
      %534 = vmatprep.subr.mxu0 0.0
      %535 = vmatpush1.msra.mxu0 0.0
      %536 = vmatprep.subr.mxu0 0.0
      %537 = vmatpush1.msra.mxu0 0.0
      %538 = vmatprep.subr.mxu0 0.0
      %539 = vmatpush1.msra.mxu0 0.0
      %540 = vmatprep.subr.mxu0 0.0
      %541 = vmatpush1.msra.mxu0 0.0
      %542 = vmatprep.subr.mxu0 0.0
      %543 = vmatpush1.msra.mxu0 0.0
      %544 = vmatprep.subr.mxu0 0.0
      %545 = vmatpush1.msra.mxu0 0.0
      %546 = vmatprep.subr.mxu0 0.0
      %547 = vmatpush1.msra.mxu0 0.0
      %548 = vmatprep.subr.mxu0 0.0
      %549 = vmatpush1.msra.mxu0 0.0
      %550 = vmatprep.subr.mxu0 0.0
      %551 = vmatpush1.msra.mxu0 0.0
      %552 = vmatprep.subr.mxu0 0.0
      %553 = vmatpush1.msra.mxu0 0.0
      %554 = vmatprep.subr.mxu0 0.0
      %555 = vmatpush1.msra.mxu0 0.0
      %556 = vmatprep.subr.mxu0 0.0
      %557 = vmatpush1.msra.mxu0 0.0
      %558 = vmatprep.subr.mxu0 0.0
      %559 = vmatpush1.msra.mxu0 0.0
      %560 = vmatprep.subr.mxu0 0.0
      %561 = vmatpush1.msra.mxu0 0.0
      %562 = vmatprep.subr.mxu0 0.0
      %563 = vmatpush1.msra.mxu0 0.0
      %564 = vmatprep.subr.mxu0 0.0
      %565 = vmatpush1.msra.mxu0 0.0
      %566 = vmatprep.subr.mxu0 0.0
      %567 = vmatpush1.msra.mxu0 0.0
      %568 = vmatprep.subr.mxu0 0.0
      %569 = vmatpush1.msra.mxu0 0.0
      %570 = vmatprep.subr.mxu0 0.0
      %571 = vmatpush1.msra.mxu0 0.0
      %572 = vmatprep.subr.mxu0 0.0
      %573 = vmatpush1.msra.mxu0 0.0
      %574 = vmatprep.subr.mxu0 0.0
      %575 = vmatpush1.msra.mxu0 0.0
      %576 = vmatprep.subr.mxu0 0.0
      %577 = vmatpush1.msra.mxu0 0.0
      %578 = vmatprep.subr.mxu0 0.0
      %579 = vmatpush1.msra.mxu0 0.0
      %580 = vmatprep.subr.mxu0 0.0
      %581 = vmatpush1.msra.mxu0 0.0
      %582 = vmatprep.subr.mxu0 0.0
      %583 = vmatpush1.msra.mxu0 0.0
      %584 = vmatprep.subr.mxu0 0.0
      %585 = vmatpush1.msra.mxu0 0.0
      %586 = vmatprep.subr.mxu0 0.0
      %587 = vmatpush1.msra.mxu0 0.0
      %588 = vmatprep.subr.mxu0 0.0
      %589 = vmatpush1.msra.mxu0 0.0
      %590 = vmatprep.mubr.f32.mxu0 0.0
      %591 = vmatmul.mubr.f32.gmra.mrb[0].mxu0 %v350
      %v592 = vpop.f32.mrb[0].mxu0
      %v593 = vadd.f32 0.0, %v592
      %v594 = vpop.f32.mrb[0].mxu0
      %v595 = vadd.f32 0.0, %v594
      %596 = vmatprep.mubr.f32.mxu0 0.0
      %597 = vmatmul.mubr.f32.gmra.mrb[0].mxu0 %v353
      %v598 = vpop.f32.mrb[0].mxu0
      %v599 = vadd.f32 0.0, %v598
      %v600 = vpop.f32.mrb[0].mxu0
      %v601 = vadd.f32 0.0, %v600
      %602 = vdwg.mxu0
      %603 = vmatprep.subr.mxu0 %v370
      %604 = vmatpush1.msra.mxu0 %v368
      %605 = vmatprep.subr.mxu0 0.0
      %606 = vmatpush1.msra.mxu0 0.0
      %607 = vmatprep.subr.mxu0 0.0
      %608 = vmatpush1.msra.mxu0 0.0
      %609 = vmatprep.subr.mxu0 0.0
      %610 = vmatpush1.msra.mxu0 0.0
      %611 = vmatprep.subr.mxu0 0.0
      %612 = vmatpush1.msra.mxu0 0.0
      %613 = vmatprep.subr.mxu0 0.0
      %614 = vmatpush1.msra.mxu0 0.0
      %615 = vmatprep.subr.mxu0 0.0
      %616 = vmatpush1.msra.mxu0 0.0
      %617 = vmatprep.subr.mxu0 0.0
      %618 = vmatpush1.msra.mxu0 0.0
      %619 = vmatprep.subr.mxu0 0.0
      %620 = vmatpush1.msra.mxu0 0.0
      %621 = vmatprep.subr.mxu0 0.0
      %622 = vmatpush1.msra.mxu0 0.0
      %623 = vmatprep.subr.mxu0 0.0
      %624 = vmatpush1.msra.mxu0 0.0
      %625 = vmatprep.subr.mxu0 0.0
      %626 = vmatpush1.msra.mxu0 0.0
      %627 = vmatprep.subr.mxu0 0.0
      %628 = vmatpush1.msra.mxu0 0.0
      %629 = vmatprep.subr.mxu0 0.0
      %630 = vmatpush1.msra.mxu0 0.0
      %631 = vmatprep.subr.mxu0 0.0
      %632 = vmatpush1.msra.mxu0 0.0
      %633 = vmatprep.subr.mxu0 0.0
      %634 = vmatpush1.msra.mxu0 0.0
      %635 = vmatprep.subr.mxu0 0.0
      %636 = vmatpush1.msra.mxu0 0.0
      %637 = vmatprep.subr.mxu0 0.0
      %638 = vmatpush1.msra.mxu0 0.0
      %639 = vmatprep.subr.mxu0 0.0
      %640 = vmatpush1.msra.mxu0 0.0
      %641 = vmatprep.subr.mxu0 0.0
      %642 = vmatpush1.msra.mxu0 0.0
      %643 = vmatprep.subr.mxu0 0.0
      %644 = vmatpush1.msra.mxu0 0.0
      %645 = vmatprep.subr.mxu0 0.0
      %646 = vmatpush1.msra.mxu0 0.0
      %647 = vmatprep.subr.mxu0 0.0
      %648 = vmatpush1.msra.mxu0 0.0
      %649 = vmatprep.subr.mxu0 0.0
      %650 = vmatpush1.msra.mxu0 0.0
      %651 = vmatprep.subr.mxu0 0.0
      %652 = vmatpush1.msra.mxu0 0.0
      %653 = vmatprep.subr.mxu0 0.0
      %654 = vmatpush1.msra.mxu0 0.0
      %655 = vmatprep.subr.mxu0 0.0
      %656 = vmatpush1.msra.mxu0 0.0
      %657 = vmatprep.subr.mxu0 0.0
      %658 = vmatpush1.msra.mxu0 0.0
      %659 = vmatprep.subr.mxu0 0.0
      %660 = vmatpush1.msra.mxu0 0.0
      %661 = vmatprep.subr.mxu0 0.0
      %662 = vmatpush1.msra.mxu0 0.0
      %663 = vmatprep.subr.mxu0 0.0
      %664 = vmatpush1.msra.mxu0 0.0
      %665 = vmatprep.subr.mxu0 0.0
      %666 = vmatpush1.msra.mxu0 0.0
      %667 = vmatprep.mubr.f32.mxu0 0.0
      %668 = vmatmul.mubr.f32.gmra.mrb[0].mxu0 %v350
      %v669 = vpop.f32.mrb[0].mxu0
      %v670 = vadd.f32 0.0, %v669
      %v671 = vpop.f32.mrb[0].mxu0
      %v672 = vadd.f32 0.0, %v671
      %673 = vmatprep.mubr.f32.mxu0 0.0
      %674 = vmatmul.mubr.f32.gmra.mrb[0].mxu0 %v353
      %v675 = vpop.f32.mrb[0].mxu0
      %v676 = vadd.f32 0.0, %v675
      %v677 = vpop.f32.mrb[0].mxu0
      %v678 = vadd.f32 0.0, %v677
      %679 = vdwg.mxu0
      %v680 = vadd.f32 %v439, 3.0
      %v681 = vadd.f32 %v441, 3.0
      %v682 = vadd.f32 %v516, 3.0
      %v683 = vadd.f32 %v518, 3.0
      %v684 = vadd.f32 %v593, 3.0
      %v685 = vadd.f32 %v595, 3.0
      %v686 = vadd.f32 %v670, 3.0
      %v687 = vadd.f32 %v672, 3.0
      %v688 = vadd.f32 %v445, 3.0
      %v689 = vadd.f32 %v447, 3.0
      %v690 = vadd.f32 %v522, 3.0
      %v691 = vadd.f32 %v524, 3.0
      %v692 = vadd.f32 %v599, 3.0
      %v693 = vadd.f32 %v601, 3.0
      %v694 = vadd.f32 %v676, 3.0
      %v695 = vadd.f32 %v678, 3.0
      %v696 = vmax.f32 %v680, 0.0
      %v697 = vmax.f32 %v681, 0.0
      %v698 = vmax.f32 %v682, 0.0
      %v699 = vmax.f32 %v683, 0.0
      %v700 = vmax.f32 %v684, 0.0
      %v701 = vmax.f32 %v685, 0.0
      %v702 = vmax.f32 %v686, 0.0
      %v703 = vmax.f32 %v687, 0.0
      %v704 = vmax.f32 %v688, 0.0
      %v705 = vmax.f32 %v689, 0.0
      %v706 = vmax.f32 %v690, 0.0
      %v707 = vmax.f32 %v691, 0.0
      %v708 = vmax.f32 %v692, 0.0
      %v709 = vmax.f32 %v693, 0.0
      %v710 = vmax.f32 %v694, 0.0
      %v711 = vmax.f32 %v695, 0.0
      %v712 = vmin.f32 %v696, 6.0
      %v713 = vmin.f32 %v697, 6.0
      %v714 = vmin.f32 %v698, 6.0
      %v715 = vmin.f32 %v699, 6.0
      %v716 = vmin.f32 %v700, 6.0
      %v717 = vmin.f32 %v701, 6.0
      %v718 = vmin.f32 %v702, 6.0
      %v719 = vmin.f32 %v703, 6.0
      %v720 = vmin.f32 %v704, 6.0
      %v721 = vmin.f32 %v705, 6.0
      %v722 = vmin.f32 %v706, 6.0
      %v723 = vmin.f32 %v707, 6.0
      %v724 = vmin.f32 %v708, 6.0
      %v725 = vmin.f32 %v709, 6.0
      %v726 = vmin.f32 %v710, 6.0
      %v727 = vmin.f32 %v711, 6.0
      %v728 = vmul.f32 %v439, %v712
      %v729 = vmul.f32 %v441, %v713
      %v730 = vmul.f32 %v516, %v714
      %v731 = vmul.f32 %v518, %v715
      %v732 = vmul.f32 %v593, %v716
      %v733 = vmul.f32 %v595, %v717
      %v734 = vmul.f32 %v670, %v718
      %v735 = vmul.f32 %v672, %v719
      %v736 = vmul.f32 %v445, %v720
      %v737 = vmul.f32 %v447, %v721
      %v738 = vmul.f32 %v522, %v722
      %v739 = vmul.f32 %v524, %v723
      %v740 = vmul.f32 %v599, %v724
      %v741 = vmul.f32 %v601, %v725
      %v742 = vmul.f32 %v676, %v726
      %v743 = vmul.f32 %v678, %v727
      %v744 = vmul.f32 %v728, 0.16666667
      %v745 = vmul.f32 %v729, 0.16666667
      %v746 = vmul.f32 %v730, 0.16666667
      %v747 = vmul.f32 %v731, 0.16666667
      %v748 = vmul.f32 %v732, 0.16666667
      %v749 = vmul.f32 %v733, 0.16666667
      %v750 = vmul.f32 %v734, 0.16666667
      %v751 = vmul.f32 %v735, 0.16666667
      %v752 = vmul.f32 %v736, 0.16666667
      %v753 = vmul.f32 %v737, 0.16666667
      %v754 = vmul.f32 %v738, 0.16666667
      %v755 = vmul.f32 %v739, 0.16666667
      %v756 = vmul.f32 %v740, 0.16666667
      %v757 = vmul.f32 %v741, 0.16666667
      %v758 = vmul.f32 %v742, 0.16666667
      %v759 = vmul.f32 %v743, 0.16666667
      %v760 = vpack.c.bf16 %v752, %v744
      %v761 = vpack.c.bf16 %v753, %v745
      %v762 = vpack.c.bf16 %v754, %v746
      %v763 = vpack.c.bf16 %v755, %v747
      %v764 = vpack.c.bf16 %v756, %v748
      %v765 = vpack.c.bf16 %v757, %v749
      %v766 = vpack.c.bf16 %v758, %v750
      %v767 = vpack.c.bf16 %v759, %v751
      %v768 = vld [vmem:[%s2] sm:$0xff]
      %v769 = vld [vmem:[%s2 + $0x8] sm:$0xff]
      %v770 = vld [vmem:[%s2 + $0x10] sm:$0xff]
      %v771 = vld [vmem:[%s2 + $0x18] sm:$0xff]
      %v772 = vld [vmem:[%s2 + $0x20] sm:$0xff]
      %v773 = vld [vmem:[%s2 + $0x28] sm:$0xff]
      %v774 = vld [vmem:[%s2 + $0x30] sm:$0xff]
      %v775 = vld [vmem:[%s2 + $0x38] sm:$0xff]
      %v776 = vld [vmem:[%s2 + $0x40] sm:$0xff]
      %v777 = vld [vmem:[%s2 + $0x48] sm:$0xff]
      %v778 = vld [vmem:[%s2 + $0x50] sm:$0xff]
      %v779 = vld [vmem:[%s2 + $0x58] sm:$0xff]
      %v780 = vld [vmem:[%s2 + $0x60] sm:$0xff]
      %v781 = vld [vmem:[%s2 + $0x68] sm:$0xff]
      %v782 = vld [vmem:[%s2 + $0x70] sm:$0xff]
      %v783 = vld [vmem:[%s2 + $0x78] sm:$0xff]
      %v784 = vld [vmem:[%s2 + $0x80] sm:$0xff]
      %v785 = vld [vmem:[%s2 + $0x88] sm:$0xff]
      %v786 = vld [vmem:[%s2 + $0x90] sm:$0xff]
      %v787 = vld [vmem:[%s2 + $0x98] sm:$0xff]
      %v788 = vld [vmem:[%s2 + $0xa0] sm:$0xff]
      %v789 = vld [vmem:[%s2 + $0xa8] sm:$0xff]
      %v790 = vld [vmem:[%s2 + $0xb0] sm:$0xff]
      %v791 = vld [vmem:[%s2 + $0xb8] sm:$0xff]
      %v792 = vld [vmem:[%s2 + $0xc0] sm:$0xff]
      %v793 = vld [vmem:[%s2 + $0xc8] sm:$0xff]
      %v794 = vld [vmem:[%s2 + $0xd0] sm:$0xff]
      %v795 = vld [vmem:[%s2 + $0xd8] sm:$0xff]
      %v796 = vld [vmem:[%s2 + $0xe0] sm:$0xff]
      %v797 = vld [vmem:[%s2 + $0xe8] sm:$0xff]
      %v798 = vld [vmem:[%s2 + $0xf0] sm:$0xff]
      %v799 = vld [vmem:[%s2 + $0xf8] sm:$0xff]
      %v800 = vld [vmem:[%s2 + $0x100] sm:$0xff]
      %v801 = vld [vmem:[%s2 + $0x108] sm:$0xff]
      %v802 = vld [vmem:[%s2 + $0x110] sm:$0xff]
      %v803 = vld [vmem:[%s2 + $0x118] sm:$0xff]
      %v804 = vld [vmem:[%s2 + $0x120] sm:$0xff]
      %v805 = vld [vmem:[%s2 + $0x128] sm:$0xff]
      %v806 = vld [vmem:[%s2 + $0x130] sm:$0xff]
      %v807 = vld [vmem:[%s2 + $0x138] sm:$0xff]
      %v808 = vld [vmem:[%s2 + $0x140] sm:$0xff]
      %v809 = vld [vmem:[%s2 + $0x148] sm:$0xff]
      %v810 = vld [vmem:[%s2 + $0x150] sm:$0xff]
      %v811 = vld [vmem:[%s2 + $0x158] sm:$0xff]
      %v812 = vld [vmem:[%s2 + $0x160] sm:$0xff]
      %v813 = vld [vmem:[%s2 + $0x168] sm:$0xff]
      %v814 = vld [vmem:[%s2 + $0x170] sm:$0xff]
      %v815 = vld [vmem:[%s2 + $0x178] sm:$0xff]
      %v816 = vld [vmem:[%s2 + $0x180] sm:$0xff]
      %v817 = vld [vmem:[%s2 + $0x188] sm:$0xff]
      %v818 = vld [vmem:[%s2 + $0x190] sm:$0xff]
      %v819 = vld [vmem:[%s2 + $0x198] sm:$0xff]
      %v820 = vld [vmem:[%s2 + $0x1a0] sm:$0xff]
      %v821 = vld [vmem:[%s2 + $0x1a8] sm:$0xff]
      %v822 = vld [vmem:[%s2 + $0x1b0] sm:$0xff]
      %v823 = vld [vmem:[%s2 + $0x1b8] sm:$0xff]
      %v824 = vld [vmem:[%s2 + $0x1c0] sm:$0xff]
      %v825 = vld [vmem:[%s2 + $0x1c8] sm:$0xff]
      %v826 = vld [vmem:[%s2 + $0x1d0] sm:$0xff]
      %v827 = vld [vmem:[%s2 + $0x1d8] sm:$0xff]
      %v828 = vld [vmem:[%s2 + $0x1e0] sm:$0xff]
      %v829 = vld [vmem:[%s2 + $0x1e8] sm:$0xff]
      %v830 = vld [vmem:[%s2 + $0x1f0] sm:$0xff]
      %v831 = vld [vmem:[%s2 + $0x1f8] sm:$0xff]
      %v832 = vld [vmem:[%s2 + $0x200] sm:$0xff]
      %v833 = vld [vmem:[%s2 + $0x208] sm:$0xff]
      %v834 = vld [vmem:[%s2 + $0x210] sm:$0xff]
      %v835 = vld [vmem:[%s2 + $0x218] sm:$0xff]
      %v836 = vld [vmem:[%s2 + $0x220] sm:$0xff]
      %v837 = vld [vmem:[%s2 + $0x228] sm:$0xff]
      %v838 = vld [vmem:[%s2 + $0x230] sm:$0xff]
      %v839 = vld [vmem:[%s2 + $0x238] sm:$0xff]
      %v840 = vld [vmem:[%s2 + $0x240] sm:$0xff]
      %v841 = vld [vmem:[%s2 + $0x248] sm:$0xff]
      %v842 = vld [vmem:[%s2 + $0x250] sm:$0xff]
      %v843 = vld [vmem:[%s2 + $0x258] sm:$0xff]
      %v844 = vld [vmem:[%s2 + $0x260] sm:$0xff]
      %v845 = vld [vmem:[%s2 + $0x268] sm:$0xff]
      %v846 = vld [vmem:[%s2 + $0x270] sm:$0xff]
      %v847 = vld [vmem:[%s2 + $0x278] sm:$0xff]
      %v848 = vld [vmem:[%s2 + $0x280] sm:$0xff]
      %v849 = vld [vmem:[%s2 + $0x288] sm:$0xff]
      %v850 = vld [vmem:[%s2 + $0x290] sm:$0xff]
      %v851 = vld [vmem:[%s2 + $0x298] sm:$0xff]
      %v852 = vld [vmem:[%s2 + $0x2a0] sm:$0xff]
      %v853 = vld [vmem:[%s2 + $0x2a8] sm:$0xff]
      %v854 = vld [vmem:[%s2 + $0x2b0] sm:$0xff]
      %v855 = vld [vmem:[%s2 + $0x2b8] sm:$0xff]
      %v856 = vld [vmem:[%s2 + $0x2c0] sm:$0xff]
      %v857 = vld [vmem:[%s2 + $0x2c8] sm:$0xff]
      %v858 = vld [vmem:[%s2 + $0x2d0] sm:$0xff]
      %v859 = vld [vmem:[%s2 + $0x2d8] sm:$0xff]
      %v860 = vld [vmem:[%s2 + $0x2e0] sm:$0xff]
      %v861 = vld [vmem:[%s2 + $0x2e8] sm:$0xff]
      %v862 = vld [vmem:[%s2 + $0x2f0] sm:$0xff]
      %v863 = vld [vmem:[%s2 + $0x2f8] sm:$0xff]
      %v864 = vld [vmem:[%s2 + $0x300] sm:$0xff]
      %v865 = vld [vmem:[%s2 + $0x308] sm:$0xff]
      %v866 = vld [vmem:[%s2 + $0x310] sm:$0xff]
      %v867 = vld [vmem:[%s2 + $0x318] sm:$0xff]
      %v868 = vld [vmem:[%s2 + $0x320] sm:$0xff]
      %v869 = vld [vmem:[%s2 + $0x328] sm:$0xff]
      %v870 = vld [vmem:[%s2 + $0x330] sm:$0xff]
      %v871 = vld [vmem:[%s2 + $0x338] sm:$0xff]
      %v872 = vld [vmem:[%s2 + $0x340] sm:$0xff]
      %v873 = vld [vmem:[%s2 + $0x348] sm:$0xff]
      %v874 = vld [vmem:[%s2 + $0x350] sm:$0xff]
      %v875 = vld [vmem:[%s2 + $0x358] sm:$0xff]
      %v876 = vld [vmem:[%s2 + $0x360] sm:$0xff]
      %v877 = vld [vmem:[%s2 + $0x368] sm:$0xff]
      %v878 = vld [vmem:[%s2 + $0x370] sm:$0xff]
      %v879 = vld [vmem:[%s2 + $0x378] sm:$0xff]
      %v880 = vld [vmem:[%s2 + $0x380] sm:$0xff]
      %v881 = vld [vmem:[%s2 + $0x388] sm:$0xff]
      %v882 = vld [vmem:[%s2 + $0x390] sm:$0xff]
      %v883 = vld [vmem:[%s2 + $0x398] sm:$0xff]
      %v884 = vld [vmem:[%s2 + $0x3a0] sm:$0xff]
      %v885 = vld [vmem:[%s2 + $0x3a8] sm:$0xff]
      %v886 = vld [vmem:[%s2 + $0x3b0] sm:$0xff]
      %v887 = vld [vmem:[%s2 + $0x3b8] sm:$0xff]
      %v888 = vld [vmem:[%s3] sm:$0x3]
      %v890 = vlaneseq
      %v891 = vshrl.u32 %v890, 7
      %v892 = vsub.s32 0, %v891
      %v893 = vrot.slane %v888, %v892
      %v894 = vlaneseq
      %v895 = vshrl.u32 %v894, 7
      %v896 = vsub.s32 1, %v895
      %v897 = vrot.slane %v888, %v896
      %v1020 = vunpack.c.l.b16 %v768
      %v1021 = vunpack.c.h.b16 %v768
      %v1022 = vunpack.c.l.b16 %v769
      %v1023 = vunpack.c.h.b16 %v769
      %v1024 = vunpack.c.l.b16 %v770
      %v1025 = vunpack.c.h.b16 %v770
      %v1026 = vunpack.c.l.b16 %v771
      %v1027 = vunpack.c.h.b16 %v771
      %v1028 = vunpack.c.l.b16 %v772
      %v1029 = vunpack.c.h.b16 %v772
      %v1030 = vunpack.c.l.b16 %v773
      %v1031 = vunpack.c.h.b16 %v773
      %v1032 = vunpack.c.l.b16 %v774
      %v1033 = vunpack.c.h.b16 %v774
      %v1034 = vunpack.c.l.b16 %v775
      %v1035 = vunpack.c.h.b16 %v775
      %v1036 = vunpack.c.l.b16 %v776
      %v1037 = vunpack.c.h.b16 %v776
      %v1038 = vunpack.c.l.b16 %v777
      %v1039 = vunpack.c.h.b16 %v777
      %v1040 = vunpack.c.l.b16 %v778
      %v1041 = vunpack.c.h.b16 %v778
      %v1042 = vunpack.c.l.b16 %v779
      %v1043 = vunpack.c.h.b16 %v779
      %v1044 = vunpack.c.l.b16 %v780
      %v1045 = vunpack.c.h.b16 %v780
      %v1046 = vunpack.c.l.b16 %v781
      %v1047 = vunpack.c.h.b16 %v781
      %v1048 = vunpack.c.l.b16 %v782
      %v1049 = vunpack.c.h.b16 %v782
      %v1050 = vunpack.c.l.b16 %v783
      %v1051 = vunpack.c.h.b16 %v783
      %v1052 = vunpack.c.l.b16 %v784
      %v1053 = vunpack.c.h.b16 %v784
      %v1054 = vunpack.c.l.b16 %v785
      %v1055 = vunpack.c.h.b16 %v785
      %v1056 = vunpack.c.l.b16 %v786
      %v1057 = vunpack.c.h.b16 %v786
      %v1058 = vunpack.c.l.b16 %v787
      %v1059 = vunpack.c.h.b16 %v787
      %v1060 = vunpack.c.l.b16 %v788
      %v1061 = vunpack.c.h.b16 %v788
      %v1062 = vunpack.c.l.b16 %v789
      %v1063 = vunpack.c.h.b16 %v789
      %v1064 = vunpack.c.l.b16 %v790
      %v1065 = vunpack.c.h.b16 %v790
      %v1066 = vunpack.c.l.b16 %v791
      %v1067 = vunpack.c.h.b16 %v791
      %v1068 = vunpack.c.l.b16 %v792
      %v1069 = vunpack.c.h.b16 %v792
      %v1070 = vunpack.c.l.b16 %v793
      %v1071 = vunpack.c.h.b16 %v793
      %v1072 = vunpack.c.l.b16 %v794
      %v1073 = vunpack.c.h.b16 %v794
      %v1074 = vunpack.c.l.b16 %v795
      %v1075 = vunpack.c.h.b16 %v795
      %v1076 = vunpack.c.l.b16 %v796
      %v1077 = vunpack.c.h.b16 %v796
      %v1078 = vunpack.c.l.b16 %v797
      %v1079 = vunpack.c.h.b16 %v797
      %v1080 = vunpack.c.l.b16 %v798
      %v1081 = vunpack.c.h.b16 %v798
      %v1082 = vunpack.c.l.b16 %v799
      %v1083 = vunpack.c.h.b16 %v799
      %v1084 = vunpack.c.l.b16 %v800
      %v1085 = vunpack.c.h.b16 %v800
      %v1086 = vunpack.c.l.b16 %v801
      %v1087 = vunpack.c.h.b16 %v801
      %v1088 = vunpack.c.l.b16 %v802
      %v1089 = vunpack.c.h.b16 %v802
      %v1090 = vunpack.c.l.b16 %v803
      %v1091 = vunpack.c.h.b16 %v803
      %v1092 = vunpack.c.l.b16 %v804
      %v1093 = vunpack.c.h.b16 %v804
      %v1094 = vunpack.c.l.b16 %v805
      %v1095 = vunpack.c.h.b16 %v805
      %v1096 = vunpack.c.l.b16 %v806
      %v1097 = vunpack.c.h.b16 %v806
      %v1098 = vunpack.c.l.b16 %v807
      %v1099 = vunpack.c.h.b16 %v807
      %v1100 = vunpack.c.l.b16 %v808
      %v1101 = vunpack.c.h.b16 %v808
      %v1102 = vunpack.c.l.b16 %v809
      %v1103 = vunpack.c.h.b16 %v809
      %v1104 = vunpack.c.l.b16 %v810
      %v1105 = vunpack.c.h.b16 %v810
      %v1106 = vunpack.c.l.b16 %v811
      %v1107 = vunpack.c.h.b16 %v811
      %v1108 = vunpack.c.l.b16 %v812
      %v1109 = vunpack.c.h.b16 %v812
      %v1110 = vunpack.c.l.b16 %v813
      %v1111 = vunpack.c.h.b16 %v813
      %v1112 = vunpack.c.l.b16 %v814
      %v1113 = vunpack.c.h.b16 %v814
      %v1114 = vunpack.c.l.b16 %v815
      %v1115 = vunpack.c.h.b16 %v815
      %v1116 = vunpack.c.l.b16 %v816
      %v1117 = vunpack.c.h.b16 %v816
      %v1118 = vunpack.c.l.b16 %v817
      %v1119 = vunpack.c.h.b16 %v817
      %v1120 = vunpack.c.l.b16 %v818
      %v1121 = vunpack.c.h.b16 %v818
      %v1122 = vunpack.c.l.b16 %v819
      %v1123 = vunpack.c.h.b16 %v819
      %v1124 = vunpack.c.l.b16 %v820
      %v1125 = vunpack.c.h.b16 %v820
      %v1126 = vunpack.c.l.b16 %v821
      %v1127 = vunpack.c.h.b16 %v821
      %v1128 = vunpack.c.l.b16 %v822
      %v1129 = vunpack.c.h.b16 %v822
      %v1130 = vunpack.c.l.b16 %v823
      %v1131 = vunpack.c.h.b16 %v823
      %v1132 = vunpack.c.l.b16 %v824
      %v1133 = vunpack.c.h.b16 %v824
      %v1134 = vunpack.c.l.b16 %v825
      %v1135 = vunpack.c.h.b16 %v825
      %v1136 = vunpack.c.l.b16 %v826
      %v1137 = vunpack.c.h.b16 %v826
      %v1138 = vunpack.c.l.b16 %v827
      %v1139 = vunpack.c.h.b16 %v827
      %v1140 = vunpack.c.l.b16 %v828
      %v1141 = vunpack.c.h.b16 %v828
      %v1142 = vunpack.c.l.b16 %v829
      %v1143 = vunpack.c.h.b16 %v829
      %v1144 = vunpack.c.l.b16 %v830
      %v1145 = vunpack.c.h.b16 %v830
      %v1146 = vunpack.c.l.b16 %v831
      %v1147 = vunpack.c.h.b16 %v831
      %v1148 = vunpack.c.l.b16 %v832
      %v1149 = vunpack.c.h.b16 %v832
      %v1150 = vunpack.c.l.b16 %v833
      %v1151 = vunpack.c.h.b16 %v833
      %v1152 = vunpack.c.l.b16 %v834
      %v1153 = vunpack.c.h.b16 %v834
      %v1154 = vunpack.c.l.b16 %v835
      %v1155 = vunpack.c.h.b16 %v835
      %v1156 = vunpack.c.l.b16 %v836
      %v1157 = vunpack.c.h.b16 %v836
      %v1158 = vunpack.c.l.b16 %v837
      %v1159 = vunpack.c.h.b16 %v837
      %v1160 = vunpack.c.l.b16 %v838
      %v1161 = vunpack.c.h.b16 %v838
      %v1162 = vunpack.c.l.b16 %v839
      %v1163 = vunpack.c.h.b16 %v839
      %v1164 = vunpack.c.l.b16 %v840
      %v1165 = vunpack.c.h.b16 %v840
      %v1166 = vunpack.c.l.b16 %v841
      %v1167 = vunpack.c.h.b16 %v841
      %v1168 = vunpack.c.l.b16 %v842
      %v1169 = vunpack.c.h.b16 %v842
      %v1170 = vunpack.c.l.b16 %v843
      %v1171 = vunpack.c.h.b16 %v843
      %v1172 = vunpack.c.l.b16 %v844
      %v1173 = vunpack.c.h.b16 %v844
      %v1174 = vunpack.c.l.b16 %v845
      %v1175 = vunpack.c.h.b16 %v845
      %v1176 = vunpack.c.l.b16 %v846
      %v1177 = vunpack.c.h.b16 %v846
      %v1178 = vunpack.c.l.b16 %v847
      %v1179 = vunpack.c.h.b16 %v847
      %v1180 = vunpack.c.l.b16 %v848
      %v1181 = vunpack.c.h.b16 %v848
      %v1182 = vunpack.c.l.b16 %v849
      %v1183 = vunpack.c.h.b16 %v849
      %v1184 = vunpack.c.l.b16 %v850
      %v1185 = vunpack.c.h.b16 %v850
      %v1186 = vunpack.c.l.b16 %v851
      %v1187 = vunpack.c.h.b16 %v851
      %v1188 = vunpack.c.l.b16 %v852
      %v1189 = vunpack.c.h.b16 %v852
      %v1190 = vunpack.c.l.b16 %v853
      %v1191 = vunpack.c.h.b16 %v853
      %v1192 = vunpack.c.l.b16 %v854
      %v1193 = vunpack.c.h.b16 %v854
      %v1194 = vunpack.c.l.b16 %v855
      %v1195 = vunpack.c.h.b16 %v855
      %v1196 = vunpack.c.l.b16 %v856
      %v1197 = vunpack.c.h.b16 %v856
      %v1198 = vunpack.c.l.b16 %v857
      %v1199 = vunpack.c.h.b16 %v857
      %v1200 = vunpack.c.l.b16 %v858
      %v1201 = vunpack.c.h.b16 %v858
      %v1202 = vunpack.c.l.b16 %v859
      %v1203 = vunpack.c.h.b16 %v859
      %v1204 = vunpack.c.l.b16 %v860
      %v1205 = vunpack.c.h.b16 %v860
      %v1206 = vunpack.c.l.b16 %v861
      %v1207 = vunpack.c.h.b16 %v861
      %v1208 = vunpack.c.l.b16 %v862
      %v1209 = vunpack.c.h.b16 %v862
      %v1210 = vunpack.c.l.b16 %v863
      %v1211 = vunpack.c.h.b16 %v863
      %v1212 = vunpack.c.l.b16 %v864
      %v1213 = vunpack.c.h.b16 %v864
      %v1214 = vunpack.c.l.b16 %v865
      %v1215 = vunpack.c.h.b16 %v865
      %v1216 = vunpack.c.l.b16 %v866
      %v1217 = vunpack.c.h.b16 %v866
      %v1218 = vunpack.c.l.b16 %v867
      %v1219 = vunpack.c.h.b16 %v867
      %v1220 = vunpack.c.l.b16 %v868
      %v1221 = vunpack.c.h.b16 %v868
      %v1222 = vunpack.c.l.b16 %v869
      %v1223 = vunpack.c.h.b16 %v869
      %v1224 = vunpack.c.l.b16 %v870
      %v1225 = vunpack.c.h.b16 %v870
      %v1226 = vunpack.c.l.b16 %v871
      %v1227 = vunpack.c.h.b16 %v871
      %v1228 = vunpack.c.l.b16 %v872
      %v1229 = vunpack.c.h.b16 %v872
      %v1230 = vunpack.c.l.b16 %v873
      %v1231 = vunpack.c.h.b16 %v873
      %v1232 = vunpack.c.l.b16 %v874
      %v1233 = vunpack.c.h.b16 %v874
      %v1234 = vunpack.c.l.b16 %v875
      %v1235 = vunpack.c.h.b16 %v875
      %v1236 = vunpack.c.l.b16 %v876
      %v1237 = vunpack.c.h.b16 %v876
      %v1238 = vunpack.c.l.b16 %v877
      %v1239 = vunpack.c.h.b16 %v877
      %v1240 = vunpack.c.l.b16 %v878
      %v1241 = vunpack.c.h.b16 %v878
      %v1242 = vunpack.c.l.b16 %v879
      %v1243 = vunpack.c.h.b16 %v879
      %v1244 = vunpack.c.l.b16 %v880
      %v1245 = vunpack.c.h.b16 %v880
      %v1246 = vunpack.c.l.b16 %v881
      %v1247 = vunpack.c.h.b16 %v881
      %v1248 = vunpack.c.l.b16 %v882
      %v1249 = vunpack.c.h.b16 %v882
      %v1250 = vunpack.c.l.b16 %v883
      %v1251 = vunpack.c.h.b16 %v883
      %v1252 = vunpack.c.l.b16 %v884
      %v1253 = vunpack.c.h.b16 %v884
      %v1254 = vunpack.c.l.b16 %v885
      %v1255 = vunpack.c.h.b16 %v885
      %v1256 = vunpack.c.l.b16 %v886
      %v1257 = vunpack.c.h.b16 %v886
      %v1258 = vunpack.c.l.b16 %v887
      %v1259 = vunpack.c.h.b16 %v887
      %v1260 = vpack.c.b16 %v1022, %v1020
      %v1261 = vpack.c.b16 %v1023, %v1021
      %v1262 = vpack.c.b16 %v1026, %v1024
      %v1263 = vpack.c.b16 %v1027, %v1025
      %v1264 = vpack.c.b16 %v1030, %v1028
      %v1265 = vpack.c.b16 %v1031, %v1029
      %v1266 = vpack.c.b16 %v1034, %v1032
      %v1267 = vpack.c.b16 %v1035, %v1033
      %v1268 = vpack.c.b16 %v1038, %v1036
      %v1269 = vpack.c.b16 %v1039, %v1037
      %v1270 = vpack.c.b16 %v1042, %v1040
      %v1271 = vpack.c.b16 %v1043, %v1041
      %v1272 = vpack.c.b16 %v1046, %v1044
      %v1273 = vpack.c.b16 %v1047, %v1045
      %v1274 = vpack.c.b16 %v1050, %v1048
      %v1275 = vpack.c.b16 %v1051, %v1049
      %v1276 = vpack.c.b16 %v1054, %v1052
      %v1277 = vpack.c.b16 %v1055, %v1053
      %v1278 = vpack.c.b16 %v1058, %v1056
      %v1279 = vpack.c.b16 %v1059, %v1057
      %v1280 = vpack.c.b16 %v1062, %v1060
      %v1281 = vpack.c.b16 %v1063, %v1061
      %v1282 = vpack.c.b16 %v1066, %v1064
      %v1283 = vpack.c.b16 %v1067, %v1065
      %v1284 = vpack.c.b16 %v1070, %v1068
      %v1285 = vpack.c.b16 %v1071, %v1069
      %v1286 = vpack.c.b16 %v1074, %v1072
      %v1287 = vpack.c.b16 %v1075, %v1073
      %v1288 = vpack.c.b16 %v1078, %v1076
      %v1289 = vpack.c.b16 %v1079, %v1077
      %v1290 = vpack.c.b16 %v1082, %v1080
      %v1291 = vpack.c.b16 %v1083, %v1081
      %v1292 = vpack.c.b16 %v1086, %v1084
      %v1293 = vpack.c.b16 %v1087, %v1085
      %v1294 = vpack.c.b16 %v1090, %v1088
      %v1295 = vpack.c.b16 %v1091, %v1089
      %v1296 = vpack.c.b16 %v1094, %v1092
      %v1297 = vpack.c.b16 %v1095, %v1093
      %v1298 = vpack.c.b16 %v1098, %v1096
      %v1299 = vpack.c.b16 %v1099, %v1097
      %v1300 = vpack.c.b16 %v1102, %v1100
      %v1301 = vpack.c.b16 %v1103, %v1101
      %v1302 = vpack.c.b16 %v1106, %v1104
      %v1303 = vpack.c.b16 %v1107, %v1105
      %v1304 = vpack.c.b16 %v1110, %v1108
      %v1305 = vpack.c.b16 %v1111, %v1109
      %v1306 = vpack.c.b16 %v1114, %v1112
      %v1307 = vpack.c.b16 %v1115, %v1113
      %v1308 = vpack.c.b16 %v1118, %v1116
      %v1309 = vpack.c.b16 %v1119, %v1117
      %v1310 = vpack.c.b16 %v1122, %v1120
      %v1311 = vpack.c.b16 %v1123, %v1121
      %v1312 = vpack.c.b16 %v1126, %v1124
      %v1313 = vpack.c.b16 %v1127, %v1125
      %v1314 = vpack.c.b16 %v1130, %v1128
      %v1315 = vpack.c.b16 %v1131, %v1129
      %v1316 = vpack.c.b16 %v1134, %v1132
      %v1317 = vpack.c.b16 %v1135, %v1133
      %v1318 = vpack.c.b16 %v1138, %v1136
      %v1319 = vpack.c.b16 %v1139, %v1137
      %v1320 = vpack.c.b16 %v1142, %v1140
      %v1321 = vpack.c.b16 %v1143, %v1141
      %v1322 = vpack.c.b16 %v1146, %v1144
      %v1323 = vpack.c.b16 %v1147, %v1145
      %v1324 = vpack.c.b16 %v1150, %v1148
      %v1325 = vpack.c.b16 %v1151, %v1149
      %v1326 = vpack.c.b16 %v1154, %v1152
      %v1327 = vpack.c.b16 %v1155, %v1153
      %v1328 = vpack.c.b16 %v1158, %v1156
      %v1329 = vpack.c.b16 %v1159, %v1157
      %v1330 = vpack.c.b16 %v1162, %v1160
      %v1331 = vpack.c.b16 %v1163, %v1161
      %v1332 = vpack.c.b16 %v1166, %v1164
      %v1333 = vpack.c.b16 %v1167, %v1165
      %v1334 = vpack.c.b16 %v1170, %v1168
      %v1335 = vpack.c.b16 %v1171, %v1169
      %v1336 = vpack.c.b16 %v1174, %v1172
      %v1337 = vpack.c.b16 %v1175, %v1173
      %v1338 = vpack.c.b16 %v1178, %v1176
      %v1339 = vpack.c.b16 %v1179, %v1177
      %v1340 = vpack.c.b16 %v1182, %v1180
      %v1341 = vpack.c.b16 %v1183, %v1181
      %v1342 = vpack.c.b16 %v1186, %v1184
      %v1343 = vpack.c.b16 %v1187, %v1185
      %v1344 = vpack.c.b16 %v1190, %v1188
      %v1345 = vpack.c.b16 %v1191, %v1189
      %v1346 = vpack.c.b16 %v1194, %v1192
      %v1347 = vpack.c.b16 %v1195, %v1193
      %v1348 = vpack.c.b16 %v1198, %v1196
      %v1349 = vpack.c.b16 %v1199, %v1197
      %v1350 = vpack.c.b16 %v1202, %v1200
      %v1351 = vpack.c.b16 %v1203, %v1201
      %v1352 = vpack.c.b16 %v1206, %v1204
      %v1353 = vpack.c.b16 %v1207, %v1205
      %v1354 = vpack.c.b16 %v1210, %v1208
      %v1355 = vpack.c.b16 %v1211, %v1209
      %v1356 = vpack.c.b16 %v1214, %v1212
      %v1357 = vpack.c.b16 %v1215, %v1213
      %v1358 = vpack.c.b16 %v1218, %v1216
      %v1359 = vpack.c.b16 %v1219, %v1217
      %v1360 = vpack.c.b16 %v1222, %v1220
      %v1361 = vpack.c.b16 %v1223, %v1221
      %v1362 = vpack.c.b16 %v1226, %v1224
      %v1363 = vpack.c.b16 %v1227, %v1225
      %v1364 = vpack.c.b16 %v1230, %v1228
      %v1365 = vpack.c.b16 %v1231, %v1229
      %v1366 = vpack.c.b16 %v1234, %v1232
      %v1367 = vpack.c.b16 %v1235, %v1233
      %v1368 = vpack.c.b16 %v1238, %v1236
      %v1369 = vpack.c.b16 %v1239, %v1237
      %v1370 = vpack.c.b16 %v1242, %v1240
      %v1371 = vpack.c.b16 %v1243, %v1241
      %v1372 = vpack.c.b16 %v1246, %v1244
      %v1373 = vpack.c.b16 %v1247, %v1245
      %v1374 = vpack.c.b16 %v1250, %v1248
      %v1375 = vpack.c.b16 %v1251, %v1249
      %v1376 = vpack.c.b16 %v1254, %v1252
      %v1377 = vpack.c.b16 %v1255, %v1253
      %v1378 = vpack.c.b16 %v1258, %v1256
      %v1379 = vpack.c.b16 %v1259, %v1257
      %vm1500 = vcmask 523264
      %v1502 = vsel %vm1500, %v767, 0
      %1504 = vmatprep.subr.bf16.mxu0 %v1261
      %1505 = vmatpush1.bf16.msra.mxu0 %v1260
      %1506 = vmatprep.subr.bf16.mxu0 %v1263
      %1507 = vmatpush1.bf16.msra.mxu0 %v1262
      %1508 = vmatprep.subr.bf16.mxu0 %v1265
      %1509 = vmatpush1.bf16.msra.mxu0 %v1264
      %1510 = vmatprep.subr.bf16.mxu0 %v1267
      %1511 = vmatpush1.bf16.msra.mxu0 %v1266
      %1512 = vmatprep.subr.bf16.mxu0 %v1269
      %1513 = vmatpush1.bf16.msra.mxu0 %v1268
      %1514 = vmatprep.subr.bf16.mxu0 %v1271
      %1515 = vmatpush1.bf16.msra.mxu0 %v1270
      %1516 = vmatprep.subr.bf16.mxu0 %v1273
      %1517 = vmatpush1.bf16.msra.mxu0 %v1272
      %1518 = vmatprep.subr.bf16.mxu0 %v1275
      %1519 = vmatpush1.bf16.msra.mxu0 %v1274
      %1520 = vmatprep.subr.bf16.mxu0 %v1277
      %1521 = vmatpush1.bf16.msra.mxu0 %v1276
      %1522 = vmatprep.subr.bf16.mxu0 %v1279
      %1523 = vmatpush1.bf16.msra.mxu0 %v1278
      %1524 = vmatprep.subr.bf16.mxu0 %v1281
      %1525 = vmatpush1.bf16.msra.mxu0 %v1280
      %1526 = vmatprep.subr.bf16.mxu0 %v1283
      %1527 = vmatpush1.bf16.msra.mxu0 %v1282
      %1528 = vmatprep.subr.bf16.mxu0 %v1285
      %1529 = vmatpush1.bf16.msra.mxu0 %v1284
      %1530 = vmatprep.subr.bf16.mxu0 %v1287
      %1531 = vmatpush1.bf16.msra.mxu0 %v1286
      %1532 = vmatprep.subr.bf16.mxu0 %v1289
      %1533 = vmatpush1.bf16.msra.mxu0 %v1288
      %1534 = vmatprep.subr.bf16.mxu0 %v1291
      %1535 = vmatpush1.bf16.msra.mxu0 %v1290
      %1536 = vmatprep.mubr.bf16.mxu0 %v761
      %1537 = vmatmul.mubr.bf16.gmra.mrb[0].mxu0 %v760
      %v1538 = vpop.f32.mrb[0].mxu0
      %v1539 = vadd.f32 %v893, %v1538
      %v1540 = vpop.f32.mrb[0].mxu0
      %v1541 = vadd.f32 %v897, %v1540
      %v1542 = vpop.f32.mrb[0].mxu0
      %v1543 = vadd.f32 %v893, %v1542
      %v1544 = vpop.f32.mrb[0].mxu0
      %v1545 = vadd.f32 %v897, %v1544
      %1546 = vdwg.mxu0
      %1547 = vmatprep.subr.bf16.mxu0 %v1293
      %1548 = vmatpush1.bf16.msra.mxu0 %v1292
      %1549 = vmatprep.subr.bf16.mxu0 %v1295
      %1550 = vmatpush1.bf16.msra.mxu0 %v1294
      %1551 = vmatprep.subr.bf16.mxu0 %v1297
      %1552 = vmatpush1.bf16.msra.mxu0 %v1296
      %1553 = vmatprep.subr.bf16.mxu0 %v1299
      %1554 = vmatpush1.bf16.msra.mxu0 %v1298
      %1555 = vmatprep.subr.bf16.mxu0 %v1301
      %1556 = vmatpush1.bf16.msra.mxu0 %v1300
      %1557 = vmatprep.subr.bf16.mxu0 %v1303
      %1558 = vmatpush1.bf16.msra.mxu0 %v1302
      %1559 = vmatprep.subr.bf16.mxu0 %v1305
      %1560 = vmatpush1.bf16.msra.mxu0 %v1304
      %1561 = vmatprep.subr.bf16.mxu0 %v1307
      %1562 = vmatpush1.bf16.msra.mxu0 %v1306
      %1563 = vmatprep.subr.bf16.mxu0 %v1309
      %1564 = vmatpush1.bf16.msra.mxu0 %v1308
      %1565 = vmatprep.subr.bf16.mxu0 %v1311
      %1566 = vmatpush1.bf16.msra.mxu0 %v1310
      %1567 = vmatprep.subr.bf16.mxu0 %v1313
      %1568 = vmatpush1.bf16.msra.mxu0 %v1312
      %1569 = vmatprep.subr.bf16.mxu0 %v1315
      %1570 = vmatpush1.bf16.msra.mxu0 %v1314
      %1571 = vmatprep.subr.bf16.mxu0 %v1317
      %1572 = vmatpush1.bf16.msra.mxu0 %v1316
      %1573 = vmatprep.subr.bf16.mxu0 %v1319
      %1574 = vmatpush1.bf16.msra.mxu0 %v1318
      %1575 = vmatprep.subr.bf16.mxu0 %v1321
      %1576 = vmatpush1.bf16.msra.mxu0 %v1320
      %1577 = vmatprep.subr.bf16.mxu0 %v1323
      %1578 = vmatpush1.bf16.msra.mxu0 %v1322
      %1579 = vmatprep.mubr.bf16.mxu0 %v763
      %1580 = vmatmul.mubr.bf16.gmra.mrb[0].mxu0 %v762
      %v1581 = vpop.f32.mrb[0].mxu0
      %v1582 = vadd.f32 %v1539, %v1581
      %v1583 = vpop.f32.mrb[0].mxu0
      %v1584 = vadd.f32 %v1541, %v1583
      %v1585 = vpop.f32.mrb[0].mxu0
      %v1586 = vadd.f32 %v1543, %v1585
      %v1587 = vpop.f32.mrb[0].mxu0
      %v1588 = vadd.f32 %v1545, %v1587
      %1589 = vdwg.mxu0
      %1590 = vmatprep.subr.bf16.mxu0 %v1325
      %1591 = vmatpush1.bf16.msra.mxu0 %v1324
      %1592 = vmatprep.subr.bf16.mxu0 %v1327
      %1593 = vmatpush1.bf16.msra.mxu0 %v1326
      %1594 = vmatprep.subr.bf16.mxu0 %v1329
      %1595 = vmatpush1.bf16.msra.mxu0 %v1328
      %1596 = vmatprep.subr.bf16.mxu0 %v1331
      %1597 = vmatpush1.bf16.msra.mxu0 %v1330
      %1598 = vmatprep.subr.bf16.mxu0 %v1333
      %1599 = vmatpush1.bf16.msra.mxu0 %v1332
      %1600 = vmatprep.subr.bf16.mxu0 %v1335
      %1601 = vmatpush1.bf16.msra.mxu0 %v1334
      %1602 = vmatprep.subr.bf16.mxu0 %v1337
      %1603 = vmatpush1.bf16.msra.mxu0 %v1336
      %1604 = vmatprep.subr.bf16.mxu0 %v1339
      %1605 = vmatpush1.bf16.msra.mxu0 %v1338
      %1606 = vmatprep.subr.bf16.mxu0 %v1341
      %1607 = vmatpush1.bf16.msra.mxu0 %v1340
      %1608 = vmatprep.subr.bf16.mxu0 %v1343
      %1609 = vmatpush1.bf16.msra.mxu0 %v1342
      %1610 = vmatprep.subr.bf16.mxu0 %v1345
      %1611 = vmatpush1.bf16.msra.mxu0 %v1344
      %1612 = vmatprep.subr.bf16.mxu0 %v1347
      %1613 = vmatpush1.bf16.msra.mxu0 %v1346
      %1614 = vmatprep.subr.bf16.mxu0 %v1349
      %1615 = vmatpush1.bf16.msra.mxu0 %v1348
      %1616 = vmatprep.subr.bf16.mxu0 %v1351
      %1617 = vmatpush1.bf16.msra.mxu0 %v1350
      %1618 = vmatprep.subr.bf16.mxu0 %v1353
      %1619 = vmatpush1.bf16.msra.mxu0 %v1352
      %1620 = vmatprep.subr.bf16.mxu0 %v1355
      %1621 = vmatpush1.bf16.msra.mxu0 %v1354
      %1622 = vmatprep.mubr.bf16.mxu0 %v765
      %1623 = vmatmul.mubr.bf16.gmra.mrb[0].mxu0 %v764
      %v1624 = vpop.f32.mrb[0].mxu0
      %v1625 = vadd.f32 %v1582, %v1624
      %v1626 = vpop.f32.mrb[0].mxu0
      %v1627 = vadd.f32 %v1584, %v1626
      %v1628 = vpop.f32.mrb[0].mxu0
      %v1629 = vadd.f32 %v1586, %v1628
      %v1630 = vpop.f32.mrb[0].mxu0
      %v1631 = vadd.f32 %v1588, %v1630
      %1632 = vdwg.mxu0
      %1633 = vmatprep.subr.bf16.mxu0 %v1357
      %1634 = vmatpush1.bf16.msra.mxu0 %v1356
      %1635 = vmatprep.subr.bf16.mxu0 %v1359
      %1636 = vmatpush1.bf16.msra.mxu0 %v1358
      %1637 = vmatprep.subr.bf16.mxu0 %v1361
      %1638 = vmatpush1.bf16.msra.mxu0 %v1360
      %1639 = vmatprep.subr.bf16.mxu0 %v1363
      %1640 = vmatpush1.bf16.msra.mxu0 %v1362
      %1641 = vmatprep.subr.bf16.mxu0 %v1365
      %1642 = vmatpush1.bf16.msra.mxu0 %v1364
      %1643 = vmatprep.subr.bf16.mxu0 %v1367
      %1644 = vmatpush1.bf16.msra.mxu0 %v1366
      %1645 = vmatprep.subr.bf16.mxu0 %v1369
      %1646 = vmatpush1.bf16.msra.mxu0 %v1368
      %1647 = vmatprep.subr.bf16.mxu0 %v1371
      %1648 = vmatpush1.bf16.msra.mxu0 %v1370
      %1649 = vmatprep.subr.bf16.mxu0 %v1373
      %1650 = vmatpush1.bf16.msra.mxu0 %v1372
      %1651 = vmatprep.subr.bf16.mxu0 %v1375
      %1652 = vmatpush1.bf16.msra.mxu0 %v1374
      %1653 = vmatprep.subr.bf16.mxu0 %v1377
      %1654 = vmatpush1.bf16.msra.mxu0 %v1376
      %1655 = vmatprep.subr.bf16.mxu0 %v1379
      %1656 = vmatpush1.bf16.msra.mxu0 %v1378
      %1657 = vmatprep.subr.bf16.mxu0 0
      %1658 = vmatpush1.bf16.msra.mxu0 0
      %1659 = vmatprep.subr.bf16.mxu0 0
      %1660 = vmatpush1.bf16.msra.mxu0 0
      %1661 = vmatprep.subr.bf16.mxu0 0
      %1662 = vmatpush1.bf16.msra.mxu0 0
      %1663 = vmatprep.subr.bf16.mxu0 0
      %1664 = vmatpush1.bf16.msra.mxu0 0
      %1665 = vmatprep.mubr.bf16.mxu0 %v1502
      %1666 = vmatmul.mubr.bf16.gmra.mrb[0].mxu0 %v766
      %v1667 = vpop.f32.mrb[0].mxu0
      %v1668 = vadd.f32 %v1625, %v1667
      %v1669 = vpop.f32.mrb[0].mxu0
      %v1670 = vadd.f32 %v1627, %v1669
      %v1671 = vpop.f32.mrb[0].mxu0
      %v1672 = vadd.f32 %v1629, %v1671
      %v1673 = vpop.f32.mrb[0].mxu0
      %v1674 = vadd.f32 %v1631, %v1673
      %1675 = vdwg.mxu0
      %v1676 = vmax.f32 %v1668, 0.0
      %v1677 = vmax.f32 %v1670, 0.0
      %v1678 = vmax.f32 %v1672, 0.0
      %v1679 = vmax.f32 %v1674, 0.0
      %v1680 = vpack.c.bf16 %v1678, %v1676
      %v1681 = vpack.c.bf16 %v1679, %v1677
      %v1682 = vld [vmem:[%s4] sm:$0xff]
      %v1683 = vld [vmem:[%s4 + $0x8] sm:$0xff]
      %v1684 = vld [vmem:[%s4 + $0x10] sm:$0xff]
      %v1685 = vld [vmem:[%s4 + $0x18] sm:$0xff]
      %v1686 = vld [vmem:[%s4 + $0x20] sm:$0xff]
      %v1687 = vld [vmem:[%s4 + $0x28] sm:$0xff]
      %v1688 = vld [vmem:[%s4 + $0x30] sm:$0xff]
      %v1689 = vld [vmem:[%s4 + $0x38] sm:$0xff]
      %v1690 = vld [vmem:[%s4 + $0x40] sm:$0xff]
      %v1691 = vld [vmem:[%s4 + $0x48] sm:$0xff]
      %v1692 = vld [vmem:[%s4 + $0x50] sm:$0xff]
      %v1693 = vld [vmem:[%s4 + $0x58] sm:$0xff]
      %v1694 = vld [vmem:[%s4 + $0x60] sm:$0xff]
      %v1695 = vld [vmem:[%s4 + $0x68] sm:$0xff]
      %v1696 = vld [vmem:[%s4 + $0x70] sm:$0xff]
      %v1697 = vld [vmem:[%s4 + $0x78] sm:$0xff]
      %v1698 = vld [vmem:[%s4 + $0x80] sm:$0xff]
      %v1699 = vld [vmem:[%s4 + $0x88] sm:$0xff]
      %v1700 = vld [vmem:[%s4 + $0x90] sm:$0xff]
      %v1701 = vld [vmem:[%s4 + $0x98] sm:$0xff]
      %v1702 = vld [vmem:[%s4 + $0xa0] sm:$0xff]
      %v1703 = vld [vmem:[%s4 + $0xa8] sm:$0xff]
      %v1704 = vld [vmem:[%s4 + $0xb0] sm:$0xff]
      %v1705 = vld [vmem:[%s4 + $0xb8] sm:$0xff]
      %v1706 = vld [vmem:[%s4 + $0xc0] sm:$0xff]
      %v1707 = vld [vmem:[%s4 + $0xc8] sm:$0xff]
      %v1708 = vld [vmem:[%s4 + $0xd0] sm:$0xff]
      %v1709 = vld [vmem:[%s4 + $0xd8] sm:$0xff]
      %v1710 = vld [vmem:[%s4 + $0xe0] sm:$0xff]
      %v1711 = vld [vmem:[%s4 + $0xe8] sm:$0xff]
      %v1712 = vld [vmem:[%s4 + $0xf0] sm:$0xff]
      %v1713 = vld [vmem:[%s4 + $0xf8] sm:$0xff]
      %v1714 = vld [vmem:[%s5] sm:$0x3]
      %v1716 = vlaneseq
      %v1717 = vshrl.u32 %v1716, 7
      %v1718 = vsub.s32 0, %v1717
      %v1719 = vrot.slane %v1714, %v1718
      %v1720 = vlaneseq
      %v1721 = vshrl.u32 %v1720, 7
      %v1722 = vsub.s32 1, %v1721
      %v1723 = vrot.slane %v1714, %v1722
      %v1758 = vunpack.c.l.b16 %v1682
      %v1759 = vunpack.c.h.b16 %v1682
      %v1760 = vunpack.c.l.b16 %v1683
      %v1761 = vunpack.c.h.b16 %v1683
      %v1762 = vunpack.c.l.b16 %v1684
      %v1763 = vunpack.c.h.b16 %v1684
      %v1764 = vunpack.c.l.b16 %v1685
      %v1765 = vunpack.c.h.b16 %v1685
      %v1766 = vunpack.c.l.b16 %v1686
      %v1767 = vunpack.c.h.b16 %v1686
      %v1768 = vunpack.c.l.b16 %v1687
      %v1769 = vunpack.c.h.b16 %v1687
      %v1770 = vunpack.c.l.b16 %v1688
      %v1771 = vunpack.c.h.b16 %v1688
      %v1772 = vunpack.c.l.b16 %v1689
      %v1773 = vunpack.c.h.b16 %v1689
      %v1774 = vunpack.c.l.b16 %v1690
      %v1775 = vunpack.c.h.b16 %v1690
      %v1776 = vunpack.c.l.b16 %v1691
      %v1777 = vunpack.c.h.b16 %v1691
      %v1778 = vunpack.c.l.b16 %v1692
      %v1779 = vunpack.c.h.b16 %v1692
      %v1780 = vunpack.c.l.b16 %v1693
      %v1781 = vunpack.c.h.b16 %v1693
      %v1782 = vunpack.c.l.b16 %v1694
      %v1783 = vunpack.c.h.b16 %v1694
      %v1784 = vunpack.c.l.b16 %v1695
      %v1785 = vunpack.c.h.b16 %v1695
      %v1786 = vunpack.c.l.b16 %v1696
      %v1787 = vunpack.c.h.b16 %v1696
      %v1788 = vunpack.c.l.b16 %v1697
      %v1789 = vunpack.c.h.b16 %v1697
      %v1790 = vunpack.c.l.b16 %v1698
      %v1791 = vunpack.c.h.b16 %v1698
      %v1792 = vunpack.c.l.b16 %v1699
      %v1793 = vunpack.c.h.b16 %v1699
      %v1794 = vunpack.c.l.b16 %v1700
      %v1795 = vunpack.c.h.b16 %v1700
      %v1796 = vunpack.c.l.b16 %v1701
      %v1797 = vunpack.c.h.b16 %v1701
      %v1798 = vunpack.c.l.b16 %v1702
      %v1799 = vunpack.c.h.b16 %v1702
      %v1800 = vunpack.c.l.b16 %v1703
      %v1801 = vunpack.c.h.b16 %v1703
      %v1802 = vunpack.c.l.b16 %v1704
      %v1803 = vunpack.c.h.b16 %v1704
      %v1804 = vunpack.c.l.b16 %v1705
      %v1805 = vunpack.c.h.b16 %v1705
      %v1806 = vunpack.c.l.b16 %v1706
      %v1807 = vunpack.c.h.b16 %v1706
      %v1808 = vunpack.c.l.b16 %v1707
      %v1809 = vunpack.c.h.b16 %v1707
      %v1810 = vunpack.c.l.b16 %v1708
      %v1811 = vunpack.c.h.b16 %v1708
      %v1812 = vunpack.c.l.b16 %v1709
      %v1813 = vunpack.c.h.b16 %v1709
      %v1814 = vunpack.c.l.b16 %v1710
      %v1815 = vunpack.c.h.b16 %v1710
      %v1816 = vunpack.c.l.b16 %v1711
      %v1817 = vunpack.c.h.b16 %v1711
      %v1818 = vunpack.c.l.b16 %v1712
      %v1819 = vunpack.c.h.b16 %v1712
      %v1820 = vunpack.c.l.b16 %v1713
      %v1821 = vunpack.c.h.b16 %v1713
      %v1822 = vpack.c.b16 %v1760, %v1758
      %v1823 = vpack.c.b16 %v1761, %v1759
      %v1824 = vpack.c.b16 %v1764, %v1762
      %v1825 = vpack.c.b16 %v1765, %v1763
      %v1826 = vpack.c.b16 %v1768, %v1766
      %v1827 = vpack.c.b16 %v1769, %v1767
      %v1828 = vpack.c.b16 %v1772, %v1770
      %v1829 = vpack.c.b16 %v1773, %v1771
      %v1830 = vpack.c.b16 %v1776, %v1774
      %v1831 = vpack.c.b16 %v1777, %v1775
      %v1832 = vpack.c.b16 %v1780, %v1778
      %v1833 = vpack.c.b16 %v1781, %v1779
      %v1834 = vpack.c.b16 %v1784, %v1782
      %v1835 = vpack.c.b16 %v1785, %v1783
      %v1836 = vpack.c.b16 %v1788, %v1786
      %v1837 = vpack.c.b16 %v1789, %v1787
      %v1838 = vpack.c.b16 %v1792, %v1790
      %v1839 = vpack.c.b16 %v1793, %v1791
      %v1840 = vpack.c.b16 %v1796, %v1794
      %v1841 = vpack.c.b16 %v1797, %v1795
      %v1842 = vpack.c.b16 %v1800, %v1798
      %v1843 = vpack.c.b16 %v1801, %v1799
      %v1844 = vpack.c.b16 %v1804, %v1802
      %v1845 = vpack.c.b16 %v1805, %v1803
      %v1846 = vpack.c.b16 %v1808, %v1806
      %v1847 = vpack.c.b16 %v1809, %v1807
      %v1848 = vpack.c.b16 %v1812, %v1810
      %v1849 = vpack.c.b16 %v1813, %v1811
      %v1850 = vpack.c.b16 %v1816, %v1814
      %v1851 = vpack.c.b16 %v1817, %v1815
      %v1852 = vpack.c.b16 %v1820, %v1818
      %v1853 = vpack.c.b16 %v1821, %v1819
      %1886 = vmatprep.subr.bf16.mxu0 %v1823
      %1887 = vmatpush1.bf16.msra.mxu0 %v1822
      %1888 = vmatprep.subr.bf16.mxu0 %v1825
      %1889 = vmatpush1.bf16.msra.mxu0 %v1824
      %1890 = vmatprep.subr.bf16.mxu0 %v1827
      %1891 = vmatpush1.bf16.msra.mxu0 %v1826
      %1892 = vmatprep.subr.bf16.mxu0 %v1829
      %1893 = vmatpush1.bf16.msra.mxu0 %v1828
      %1894 = vmatprep.subr.bf16.mxu0 %v1831
      %1895 = vmatpush1.bf16.msra.mxu0 %v1830
      %1896 = vmatprep.subr.bf16.mxu0 %v1833
      %1897 = vmatpush1.bf16.msra.mxu0 %v1832
      %1898 = vmatprep.subr.bf16.mxu0 %v1835
      %1899 = vmatpush1.bf16.msra.mxu0 %v1834
      %1900 = vmatprep.subr.bf16.mxu0 %v1837
      %1901 = vmatpush1.bf16.msra.mxu0 %v1836
      %1902 = vmatprep.subr.bf16.mxu0 %v1839
      %1903 = vmatpush1.bf16.msra.mxu0 %v1838
      %1904 = vmatprep.subr.bf16.mxu0 %v1841
      %1905 = vmatpush1.bf16.msra.mxu0 %v1840
      %1906 = vmatprep.subr.bf16.mxu0 %v1843
      %1907 = vmatpush1.bf16.msra.mxu0 %v1842
      %1908 = vmatprep.subr.bf16.mxu0 %v1845
      %1909 = vmatpush1.bf16.msra.mxu0 %v1844
      %1910 = vmatprep.subr.bf16.mxu0 %v1847
      %1911 = vmatpush1.bf16.msra.mxu0 %v1846
      %1912 = vmatprep.subr.bf16.mxu0 %v1849
      %1913 = vmatpush1.bf16.msra.mxu0 %v1848
      %1914 = vmatprep.subr.bf16.mxu0 %v1851
      %1915 = vmatpush1.bf16.msra.mxu0 %v1850
      %1916 = vmatprep.subr.bf16.mxu0 %v1853
      %1917 = vmatpush1.bf16.msra.mxu0 %v1852
      %1918 = vmatprep.mubr.bf16.mxu0 %v1681
      %1919 = vmatmul.mubr.bf16.gmra.mrb[0].mxu0 %v1680
      %v1920 = vpop.f32.mrb[0].mxu0
      %v1921 = vadd.f32 %v1719, %v1920
      %v1922 = vpop.f32.mrb[0].mxu0
      %v1923 = vadd.f32 %v1723, %v1922
      %v1924 = vpop.f32.mrb[0].mxu0
      %v1925 = vadd.f32 %v1719, %v1924
      %v1926 = vpop.f32.mrb[0].mxu0
      %v1927 = vadd.f32 %v1723, %v1926
      %1928 = vdwg.mxu0
      %v1929 = vmax.f32 %v1921, 0.0
      %v1930 = vmax.f32 %v1923, 0.0
      %v1931 = vmax.f32 %v1925, 0.0
      %v1932 = vmax.f32 %v1927, 0.0
      %v1933 = vpack.c.bf16 %v1931, %v1929
      %v1934 = vpack.c.bf16 %v1932, %v1930
      %v1935 = vld [vmem:[%s6] sm:$0xff]
      %v1936 = vld [vmem:[%s6 + $0x8] sm:$0xff]
      %v1937 = vld [vmem:[%s6 + $0x10] sm:$0x77]
      %v1938 = vld [vmem:[%s7] sm:$0xff]
      %v1939 = vld [vmem:[%s7 + $0x8] sm:$0xff]
      %v1940 = vld [vmem:[%s7 + $0x10] sm:$0x1f]
      %1942 = vset.pattern.permute.xlu0 0
      %1943 = vperm.xlu0 %1942, %v1938
      %v1944 = vpop.permute.xlu0 %1943
      %1947 = vset.pattern.permute.xlu0 0
      %1948 = vperm.xlu0 %1947, %v1939
      %v1949 = vpop.permute.xlu0 %1948
      %1952 = vset.pattern.permute.xlu0 0
      %1953 = vperm.xlu0 %1952, %v1940
      %v1954 = vpop.permute.xlu0 %1953
      %v1959 = vunpack.c.l.b16 %v1935
      %v1960 = vunpack.c.h.b16 %v1935
      %v1961 = vunpack.c.l.b16 %v1936
      %v1962 = vunpack.c.h.b16 %v1936
      %v1963 = vunpack.c.l.b16 %v1937
      %v1964 = vunpack.c.h.b16 %v1937
      %v1965 = vpack.c.b16 %v1961, %v1959
      %v1966 = vpack.c.b16 %v1962, %v1960
      %v1967 = vpack.c.b16 %v1963, %v1963
      %v1968 = vpack.c.b16 %v1964, %v1964
      %1973 = vmatprep.subr.bf16.mxu0 %v1934
      %1974 = vmatpush1.bf16.xpose.msra.mxu0 %v1933
      %1975 = vmatprep.subr.bf16.mxu0 0
      %1976 = vmatpush1.bf16.xpose.msra.mxu0 0
      %1977 = vmatprep.subr.bf16.mxu0 0
      %1978 = vmatpush1.bf16.xpose.msra.mxu0 0
      %1979 = vmatprep.subr.bf16.mxu0 0
      %1980 = vmatpush1.bf16.xpose.msra.mxu0 0
      %1981 = vmatprep.subr.bf16.mxu0 0
      %1982 = vmatpush1.bf16.xpose.msra.mxu0 0
      %1983 = vmatprep.subr.bf16.mxu0 0
      %1984 = vmatpush1.bf16.xpose.msra.mxu0 0
      %1985 = vmatprep.subr.bf16.mxu0 0
      %1986 = vmatpush1.bf16.xpose.msra.mxu0 0
      %1987 = vmatprep.subr.bf16.mxu0 0
      %1988 = vmatpush1.bf16.xpose.msra.mxu0 0
      %1989 = vmatprep.subr.bf16.mxu0 0
      %1990 = vmatpush1.bf16.xpose.msra.mxu0 0
      %1991 = vmatprep.subr.bf16.mxu0 0
      %1992 = vmatpush1.bf16.xpose.msra.mxu0 0
      %1993 = vmatprep.subr.bf16.mxu0 0
      %1994 = vmatpush1.bf16.xpose.msra.mxu0 0
      %1995 = vmatprep.subr.bf16.mxu0 0
      %1996 = vmatpush1.bf16.xpose.msra.mxu0 0
      %1997 = vmatprep.subr.bf16.mxu0 0
      %1998 = vmatpush1.bf16.xpose.msra.mxu0 0
      %1999 = vmatprep.subr.bf16.mxu0 0
      %2000 = vmatpush1.bf16.xpose.msra.mxu0 0
      %2001 = vmatprep.subr.bf16.mxu0 0
      %2002 = vmatpush1.bf16.xpose.msra.mxu0 0
      %2003 = vmatprep.subr.bf16.mxu0 0
      %2004 = vmatpush1.bf16.xpose.msra.mxu0 0
      %2005 = vmatprep.mubr.bf16.mxu0 %v1966
      %2006 = vmatmul.mubr.bf16.gmra.mrb[0].mxu0 %v1965
      %v2007 = vpop.f32.mrb[0].mxu0
      %v2008 = vadd.f32 %v1944, %v2007
      %v2009 = vpop.f32.mrb[0].mxu0
      %v2010 = vpop.f32.mrb[0].mxu0
      %v2011 = vadd.f32 %v1949, %v2010
      %v2012 = vpop.f32.mrb[0].mxu0
      %2013 = vmatprep.mubr.bf16.mxu0 %v1968
      %2014 = vmatmul.mubr.bf16.gmra.mrb[0].mxu0 %v1967
      %v2015 = vpop.f32.mrb[0].mxu0
      %v2016 = vadd.f32 %v1954, %v2015
      %v2017 = vpop.f32.mrb[0].mxu0
      %v2018 = vpop.f32.mrb[0].mxu0
      %v2019 = vpop.f32.mrb[0].mxu0
      %2020 = vdwg.mxu0
      %v2021 = vld [vmem:[%s8] sm:$0xff]
      %v2022 = vld [vmem:[%s8 + $0x8] sm:$0xff]
      %v2023 = vld [vmem:[%s8 + $0x10] sm:$0xff]
      %v2024 = vld [vmem:[%s8 + $0x18] sm:$0xff]
      %v2025 = vld [vmem:[%s8 + $0x20] sm:$0xff]
      %v2026 = vld [vmem:[%s8 + $0x28] sm:$0xff]
      %v2027 = vld [vmem:[%s8 + $0x30] sm:$0xff]
      %v2028 = vld [vmem:[%s8 + $0x38] sm:$0xff]
      %v2029 = vld [vmem:[%s8 + $0x40] sm:$0xff]
      %v2030 = vld [vmem:[%s8 + $0x48] sm:$0xff]
      %v2031 = vld [vmem:[%s8 + $0x50] sm:$0xff]
      %v2032 = vld [vmem:[%s8 + $0x58] sm:$0xff]
      %v2033 = vld [vmem:[%s8 + $0x60] sm:$0xff]
      %v2034 = vld [vmem:[%s8 + $0x68] sm:$0xff]
      %v2035 = vld [vmem:[%s8 + $0x70] sm:$0xff]
      %v2036 = vld [vmem:[%s8 + $0x78] sm:$0xff]
      %v2037 = vld [vmem:[%s8 + $0x80] sm:$0xff]
      %v2038 = vld [vmem:[%s8 + $0x88] sm:$0xff]
      %v2039 = vld [vmem:[%s8 + $0x90] sm:$0xff]
      %v2040 = vld [vmem:[%s8 + $0x98] sm:$0xff]
      %v2041 = vld [vmem:[%s8 + $0xa0] sm:$0xff]
      %v2042 = vld [vmem:[%s8 + $0xa8] sm:$0xff]
      %v2043 = vld [vmem:[%s8 + $0xb0] sm:$0xff]
      %v2044 = vld [vmem:[%s8 + $0xb8] sm:$0xff]
      %v2045 = vld [vmem:[%s8 + $0xc0] sm:$0xff]
      %v2046 = vld [vmem:[%s8 + $0xc8] sm:$0xff]
      %v2047 = vld [vmem:[%s8 + $0xd0] sm:$0xff]
      %v2048 = vld [vmem:[%s8 + $0xd8] sm:$0xff]
      %v2049 = vld [vmem:[%s8 + $0xe0] sm:$0xff]
      %v2050 = vld [vmem:[%s8 + $0xe8] sm:$0xff]
      %v2051 = vld [vmem:[%s8 + $0xf0] sm:$0xff]
      %v2052 = vld [vmem:[%s8 + $0xf8] sm:$0xff]
      %v2053 = vld [vmem:[%s8 + $0x100] sm:$0xff]
      %v2054 = vld [vmem:[%s8 + $0x108] sm:$0xff]
      %v2055 = vld [vmem:[%s8 + $0x110] sm:$0xff]
      %v2056 = vld [vmem:[%s8 + $0x118] sm:$0xff]
      %v2057 = vld [vmem:[%s8 + $0x120] sm:$0xff]
      %v2058 = vld [vmem:[%s8 + $0x128] sm:$0xff]
      %v2059 = vld [vmem:[%s8 + $0x130] sm:$0xff]
      %v2060 = vld [vmem:[%s8 + $0x138] sm:$0xff]
      %v2061 = vld [vmem:[%s8 + $0x140] sm:$0xff]
      %v2062 = vld [vmem:[%s8 + $0x148] sm:$0xff]
      %v2063 = vld [vmem:[%s8 + $0x150] sm:$0xff]
      %v2064 = vld [vmem:[%s8 + $0x158] sm:$0xff]
      %v2065 = vld [vmem:[%s8 + $0x160] sm:$0xff]
      %v2066 = vld [vmem:[%s8 + $0x168] sm:$0xff]
      %v2067 = vld [vmem:[%s8 + $0x170] sm:$0xff]
      %v2068 = vld [vmem:[%s8 + $0x178] sm:$0xff]
      %v2069 = vld [vmem:[%s8 + $0x180] sm:$0xff]
      %v2070 = vld [vmem:[%s8 + $0x188] sm:$0xff]
      %v2071 = vld [vmem:[%s8 + $0x190] sm:$0xff]
      %v2072 = vld [vmem:[%s8 + $0x198] sm:$0xff]
      %v2073 = vld [vmem:[%s8 + $0x1a0] sm:$0xff]
      %v2074 = vld [vmem:[%s8 + $0x1a8] sm:$0xff]
      %v2075 = vld [vmem:[%s8 + $0x1b0] sm:$0xff]
      %v2076 = vld [vmem:[%s8 + $0x1b8] sm:$0xff]
      %v2077 = vld [vmem:[%s8 + $0x1c0] sm:$0xff]
      %v2078 = vld [vmem:[%s8 + $0x1c8] sm:$0xff]
      %v2079 = vld [vmem:[%s8 + $0x1d0] sm:$0xff]
      %v2080 = vld [vmem:[%s8 + $0x1d8] sm:$0xff]
      %v2081 = vld [vmem:[%s8 + $0x1e0] sm:$0xff]
      %v2082 = vld [vmem:[%s8 + $0x1e8] sm:$0xff]
      %v2083 = vld [vmem:[%s8 + $0x1f0] sm:$0xff]
      %v2084 = vld [vmem:[%s8 + $0x1f8] sm:$0xff]
      %vm2085 = vcmask 130048
      %v2087 = vsel %vm2085, %v2008, 0
      %v2090 = vsel %vm2085, %v2011, 0
      %v2093 = vsel %vm2085, %v2016, 0
      %2095 = vmatprep.subr.mxu0 %v2022
      %2096 = vmatpush1.msra.mxu0 %v2021
      %2097 = vmatprep.subr.mxu0 %v2054
      %2098 = vmatpush1.msra.mxu0 %v2053
      %2099 = vmatprep.subr.mxu0 0.0
      %2100 = vmatpush1.msra.mxu0 0.0
      %2101 = vmatprep.subr.mxu0 0.0
      %2102 = vmatpush1.msra.mxu0 0.0
      %2103 = vmatprep.subr.mxu0 0.0
      %2104 = vmatpush1.msra.mxu0 0.0
      %2105 = vmatprep.subr.mxu0 0.0
      %2106 = vmatpush1.msra.mxu0 0.0
      %2107 = vmatprep.subr.mxu0 0.0
      %2108 = vmatpush1.msra.mxu0 0.0
      %2109 = vmatprep.subr.mxu0 0.0
      %2110 = vmatpush1.msra.mxu0 0.0
      %2111 = vmatprep.subr.mxu0 0.0
      %2112 = vmatpush1.msra.mxu0 0.0
      %2113 = vmatprep.subr.mxu0 0.0
      %2114 = vmatpush1.msra.mxu0 0.0
      %2115 = vmatprep.subr.mxu0 0.0
      %2116 = vmatpush1.msra.mxu0 0.0
      %2117 = vmatprep.subr.mxu0 0.0
      %2118 = vmatpush1.msra.mxu0 0.0
      %2119 = vmatprep.subr.mxu0 0.0
      %2120 = vmatpush1.msra.mxu0 0.0
      %2121 = vmatprep.subr.mxu0 0.0
      %2122 = vmatpush1.msra.mxu0 0.0
      %2123 = vmatprep.subr.mxu0 0.0
      %2124 = vmatpush1.msra.mxu0 0.0
      %2125 = vmatprep.subr.mxu0 0.0
      %2126 = vmatpush1.msra.mxu0 0.0
      %2127 = vmatprep.subr.mxu0 0.0
      %2128 = vmatpush1.msra.mxu0 0.0
      %2129 = vmatprep.subr.mxu0 0.0
      %2130 = vmatpush1.msra.mxu0 0.0
      %2131 = vmatprep.subr.mxu0 0.0
      %2132 = vmatpush1.msra.mxu0 0.0
      %2133 = vmatprep.subr.mxu0 0.0
      %2134 = vmatpush1.msra.mxu0 0.0
      %2135 = vmatprep.subr.mxu0 0.0
      %2136 = vmatpush1.msra.mxu0 0.0
      %2137 = vmatprep.subr.mxu0 0.0
      %2138 = vmatpush1.msra.mxu0 0.0
      %2139 = vmatprep.subr.mxu0 0.0
      %2140 = vmatpush1.msra.mxu0 0.0
      %2141 = vmatprep.subr.mxu0 0.0
      %2142 = vmatpush1.msra.mxu0 0.0
      %2143 = vmatprep.subr.mxu0 0.0
      %2144 = vmatpush1.msra.mxu0 0.0
      %2145 = vmatprep.subr.mxu0 0.0
      %2146 = vmatpush1.msra.mxu0 0.0
      %2147 = vmatprep.subr.mxu0 0.0
      %2148 = vmatpush1.msra.mxu0 0.0
      %2149 = vmatprep.subr.mxu0 0.0
      %2150 = vmatpush1.msra.mxu0 0.0
      %2151 = vmatprep.subr.mxu0 0.0
      %2152 = vmatpush1.msra.mxu0 0.0
      %2153 = vmatprep.subr.mxu0 0.0
      %2154 = vmatpush1.msra.mxu0 0.0
      %2155 = vmatprep.subr.mxu0 0.0
      %2156 = vmatpush1.msra.mxu0 0.0
      %2157 = vmatprep.subr.mxu0 0.0
      %2158 = vmatpush1.msra.mxu0 0.0
      %2159 = vmatprep.mubr.f32.mxu0 0.0
      %2160 = vmatmul.mubr.f32.gmra.mrb[0].mxu0 %v2087
      %v2161 = vpop.f32.mrb[0].mxu0
      %v2162 = vadd.f32 0.0, %v2161
      %v2163 = vpop.f32.mrb[0].mxu0
      %v2164 = vadd.f32 0.0, %v2163
      %2165 = vmatprep.mubr.f32.mxu0 0.0
      %2166 = vmatmul.mubr.f32.gmra.mrb[0].mxu0 %v2090
      %v2167 = vpop.f32.mrb[0].mxu0
      %v2168 = vadd.f32 0.0, %v2167
      %v2169 = vpop.f32.mrb[0].mxu0
      %v2170 = vadd.f32 0.0, %v2169
      %2171 = vmatprep.mubr.f32.mxu0 0.0
      %2172 = vmatmul.mubr.f32.gmra.mrb[0].mxu0 %v2093
      %v2173 = vpop.f32.mrb[0].mxu0
      %v2174 = vadd.f32 0.0, %v2173
      %v2175 = vpop.f32.mrb[0].mxu0
      %v2176 = vadd.f32 0.0, %v2175
      %2177 = vdwg.mxu0
      %2178 = vmatprep.subr.mxu0 %v2024
      %2179 = vmatpush1.msra.mxu0 %v2023
      %2180 = vmatprep.subr.mxu0 %v2056
      %2181 = vmatpush1.msra.mxu0 %v2055
      %2182 = vmatprep.subr.mxu0 0.0
      %2183 = vmatpush1.msra.mxu0 0.0
      %2184 = vmatprep.subr.mxu0 0.0
      %2185 = vmatpush1.msra.mxu0 0.0
      %2186 = vmatprep.subr.mxu0 0.0
      %2187 = vmatpush1.msra.mxu0 0.0
      %2188 = vmatprep.subr.mxu0 0.0
      %2189 = vmatpush1.msra.mxu0 0.0
      %2190 = vmatprep.subr.mxu0 0.0
      %2191 = vmatpush1.msra.mxu0 0.0
      %2192 = vmatprep.subr.mxu0 0.0
      %2193 = vmatpush1.msra.mxu0 0.0
      %2194 = vmatprep.subr.mxu0 0.0
      %2195 = vmatpush1.msra.mxu0 0.0
      %2196 = vmatprep.subr.mxu0 0.0
      %2197 = vmatpush1.msra.mxu0 0.0
      %2198 = vmatprep.subr.mxu0 0.0
      %2199 = vmatpush1.msra.mxu0 0.0
      %2200 = vmatprep.subr.mxu0 0.0
      %2201 = vmatpush1.msra.mxu0 0.0
      %2202 = vmatprep.subr.mxu0 0.0
      %2203 = vmatpush1.msra.mxu0 0.0
      %2204 = vmatprep.subr.mxu0 0.0
      %2205 = vmatpush1.msra.mxu0 0.0
      %2206 = vmatprep.subr.mxu0 0.0
      %2207 = vmatpush1.msra.mxu0 0.0
      %2208 = vmatprep.subr.mxu0 0.0
      %2209 = vmatpush1.msra.mxu0 0.0
      %2210 = vmatprep.subr.mxu0 0.0
      %2211 = vmatpush1.msra.mxu0 0.0
      %2212 = vmatprep.subr.mxu0 0.0
      %2213 = vmatpush1.msra.mxu0 0.0
      %2214 = vmatprep.subr.mxu0 0.0
      %2215 = vmatpush1.msra.mxu0 0.0
      %2216 = vmatprep.subr.mxu0 0.0
      %2217 = vmatpush1.msra.mxu0 0.0
      %2218 = vmatprep.subr.mxu0 0.0
      %2219 = vmatpush1.msra.mxu0 0.0
      %2220 = vmatprep.subr.mxu0 0.0
      %2221 = vmatpush1.msra.mxu0 0.0
      %2222 = vmatprep.subr.mxu0 0.0
      %2223 = vmatpush1.msra.mxu0 0.0
      %2224 = vmatprep.subr.mxu0 0.0
      %2225 = vmatpush1.msra.mxu0 0.0
      %2226 = vmatprep.subr.mxu0 0.0
      %2227 = vmatpush1.msra.mxu0 0.0
      %2228 = vmatprep.subr.mxu0 0.0
      %2229 = vmatpush1.msra.mxu0 0.0
      %2230 = vmatprep.subr.mxu0 0.0
      %2231 = vmatpush1.msra.mxu0 0.0
      %2232 = vmatprep.subr.mxu0 0.0
      %2233 = vmatpush1.msra.mxu0 0.0
      %2234 = vmatprep.subr.mxu0 0.0
      %2235 = vmatpush1.msra.mxu0 0.0
      %2236 = vmatprep.subr.mxu0 0.0
      %2237 = vmatpush1.msra.mxu0 0.0
      %2238 = vmatprep.subr.mxu0 0.0
      %2239 = vmatpush1.msra.mxu0 0.0
      %2240 = vmatprep.subr.mxu0 0.0
      %2241 = vmatpush1.msra.mxu0 0.0
      %2242 = vmatprep.mubr.f32.mxu0 0.0
      %2243 = vmatmul.mubr.f32.gmra.mrb[0].mxu0 %v2087
      %v2244 = vpop.f32.mrb[0].mxu0
      %v2245 = vadd.f32 0.0, %v2244
      %v2246 = vpop.f32.mrb[0].mxu0
      %v2247 = vadd.f32 0.0, %v2246
      %2248 = vmatprep.mubr.f32.mxu0 0.0
      %2249 = vmatmul.mubr.f32.gmra.mrb[0].mxu0 %v2090
      %v2250 = vpop.f32.mrb[0].mxu0
      %v2251 = vadd.f32 0.0, %v2250
      %v2252 = vpop.f32.mrb[0].mxu0
      %v2253 = vadd.f32 0.0, %v2252
      %2254 = vmatprep.mubr.f32.mxu0 0.0
      %2255 = vmatmul.mubr.f32.gmra.mrb[0].mxu0 %v2093
      %v2256 = vpop.f32.mrb[0].mxu0
      %v2257 = vadd.f32 0.0, %v2256
      %v2258 = vpop.f32.mrb[0].mxu0
      %v2259 = vadd.f32 0.0, %v2258
      %2260 = vdwg.mxu0
      %2261 = vmatprep.subr.mxu0 %v2026
      %2262 = vmatpush1.msra.mxu0 %v2025
      %2263 = vmatprep.subr.mxu0 %v2058
      %2264 = vmatpush1.msra.mxu0 %v2057
      %2265 = vmatprep.subr.mxu0 0.0
      %2266 = vmatpush1.msra.mxu0 0.0
      %2267 = vmatprep.subr.mxu0 0.0
      %2268 = vmatpush1.msra.mxu0 0.0
      %2269 = vmatprep.subr.mxu0 0.0
      %2270 = vmatpush1.msra.mxu0 0.0
      %2271 = vmatprep.subr.mxu0 0.0
      %2272 = vmatpush1.msra.mxu0 0.0
      %2273 = vmatprep.subr.mxu0 0.0
      %2274 = vmatpush1.msra.mxu0 0.0
      %2275 = vmatprep.subr.mxu0 0.0
      %2276 = vmatpush1.msra.mxu0 0.0
      %2277 = vmatprep.subr.mxu0 0.0
      %2278 = vmatpush1.msra.mxu0 0.0
      %2279 = vmatprep.subr.mxu0 0.0
      %2280 = vmatpush1.msra.mxu0 0.0
      %2281 = vmatprep.subr.mxu0 0.0
      %2282 = vmatpush1.msra.mxu0 0.0
      %2283 = vmatprep.subr.mxu0 0.0
      %2284 = vmatpush1.msra.mxu0 0.0
      %2285 = vmatprep.subr.mxu0 0.0
      %2286 = vmatpush1.msra.mxu0 0.0
      %2287 = vmatprep.subr.mxu0 0.0
      %2288 = vmatpush1.msra.mxu0 0.0
      %2289 = vmatprep.subr.mxu0 0.0
      %2290 = vmatpush1.msra.mxu0 0.0
      %2291 = vmatprep.subr.mxu0 0.0
      %2292 = vmatpush1.msra.mxu0 0.0
      %2293 = vmatprep.subr.mxu0 0.0
      %2294 = vmatpush1.msra.mxu0 0.0
      %2295 = vmatprep.subr.mxu0 0.0
      %2296 = vmatpush1.msra.mxu0 0.0
      %2297 = vmatprep.subr.mxu0 0.0
      %2298 = vmatpush1.msra.mxu0 0.0
      %2299 = vmatprep.subr.mxu0 0.0
      %2300 = vmatpush1.msra.mxu0 0.0
      %2301 = vmatprep.subr.mxu0 0.0
      %2302 = vmatpush1.msra.mxu0 0.0
      %2303 = vmatprep.subr.mxu0 0.0
      %2304 = vmatpush1.msra.mxu0 0.0
      %2305 = vmatprep.subr.mxu0 0.0
      %2306 = vmatpush1.msra.mxu0 0.0
      %2307 = vmatprep.subr.mxu0 0.0
      %2308 = vmatpush1.msra.mxu0 0.0
      %2309 = vmatprep.subr.mxu0 0.0
      %2310 = vmatpush1.msra.mxu0 0.0
      %2311 = vmatprep.subr.mxu0 0.0
      %2312 = vmatpush1.msra.mxu0 0.0
      %2313 = vmatprep.subr.mxu0 0.0
      %2314 = vmatpush1.msra.mxu0 0.0
      %2315 = vmatprep.subr.mxu0 0.0
      %2316 = vmatpush1.msra.mxu0 0.0
      %2317 = vmatprep.subr.mxu0 0.0
      %2318 = vmatpush1.msra.mxu0 0.0
      %2319 = vmatprep.subr.mxu0 0.0
      %2320 = vmatpush1.msra.mxu0 0.0
      %2321 = vmatprep.subr.mxu0 0.0
      %2322 = vmatpush1.msra.mxu0 0.0
      %2323 = vmatprep.subr.mxu0 0.0
      %2324 = vmatpush1.msra.mxu0 0.0
      %2325 = vmatprep.mubr.f32.mxu0 0.0
      %2326 = vmatmul.mubr.f32.gmra.mrb[0].mxu0 %v2087
      %v2327 = vpop.f32.mrb[0].mxu0
      %v2328 = vadd.f32 0.0, %v2327
      %v2329 = vpop.f32.mrb[0].mxu0
      %v2330 = vadd.f32 0.0, %v2329
      %2331 = vmatprep.mubr.f32.mxu0 0.0
      %2332 = vmatmul.mubr.f32.gmra.mrb[0].mxu0 %v2090
      %v2333 = vpop.f32.mrb[0].mxu0
      %v2334 = vadd.f32 0.0, %v2333
      %v2335 = vpop.f32.mrb[0].mxu0
      %v2336 = vadd.f32 0.0, %v2335
      %2337 = vmatprep.mubr.f32.mxu0 0.0
      %2338 = vmatmul.mubr.f32.gmra.mrb[0].mxu0 %v2093
      %v2339 = vpop.f32.mrb[0].mxu0
      %v2340 = vadd.f32 0.0, %v2339
      %v2341 = vpop.f32.mrb[0].mxu0
      %v2342 = vadd.f32 0.0, %v2341
      %2343 = vdwg.mxu0
      %2344 = vmatprep.subr.mxu0 %v2028
      %2345 = vmatpush1.msra.mxu0 %v2027
      %2346 = vmatprep.subr.mxu0 %v2060
      %2347 = vmatpush1.msra.mxu0 %v2059
      %2348 = vmatprep.subr.mxu0 0.0
      %2349 = vmatpush1.msra.mxu0 0.0
      %2350 = vmatprep.subr.mxu0 0.0
      %2351 = vmatpush1.msra.mxu0 0.0
      %2352 = vmatprep.subr.mxu0 0.0
      %2353 = vmatpush1.msra.mxu0 0.0
      %2354 = vmatprep.subr.mxu0 0.0
      %2355 = vmatpush1.msra.mxu0 0.0
      %2356 = vmatprep.subr.mxu0 0.0
      %2357 = vmatpush1.msra.mxu0 0.0
      %2358 = vmatprep.subr.mxu0 0.0
      %2359 = vmatpush1.msra.mxu0 0.0
      %2360 = vmatprep.subr.mxu0 0.0
      %2361 = vmatpush1.msra.mxu0 0.0
      %2362 = vmatprep.subr.mxu0 0.0
      %2363 = vmatpush1.msra.mxu0 0.0
      %2364 = vmatprep.subr.mxu0 0.0
      %2365 = vmatpush1.msra.mxu0 0.0
      %2366 = vmatprep.subr.mxu0 0.0
      %2367 = vmatpush1.msra.mxu0 0.0
      %2368 = vmatprep.subr.mxu0 0.0
      %2369 = vmatpush1.msra.mxu0 0.0
      %2370 = vmatprep.subr.mxu0 0.0
      %2371 = vmatpush1.msra.mxu0 0.0
      %2372 = vmatprep.subr.mxu0 0.0
      %2373 = vmatpush1.msra.mxu0 0.0
      %2374 = vmatprep.subr.mxu0 0.0
      %2375 = vmatpush1.msra.mxu0 0.0
      %2376 = vmatprep.subr.mxu0 0.0
      %2377 = vmatpush1.msra.mxu0 0.0
      %2378 = vmatprep.subr.mxu0 0.0
      %2379 = vmatpush1.msra.mxu0 0.0
      %2380 = vmatprep.subr.mxu0 0.0
      %2381 = vmatpush1.msra.mxu0 0.0
      %2382 = vmatprep.subr.mxu0 0.0
      %2383 = vmatpush1.msra.mxu0 0.0
      %2384 = vmatprep.subr.mxu0 0.0
      %2385 = vmatpush1.msra.mxu0 0.0
      %2386 = vmatprep.subr.mxu0 0.0
      %2387 = vmatpush1.msra.mxu0 0.0
      %2388 = vmatprep.subr.mxu0 0.0
      %2389 = vmatpush1.msra.mxu0 0.0
      %2390 = vmatprep.subr.mxu0 0.0
      %2391 = vmatpush1.msra.mxu0 0.0
      %2392 = vmatprep.subr.mxu0 0.0
      %2393 = vmatpush1.msra.mxu0 0.0
      %2394 = vmatprep.subr.mxu0 0.0
      %2395 = vmatpush1.msra.mxu0 0.0
      %2396 = vmatprep.subr.mxu0 0.0
      %2397 = vmatpush1.msra.mxu0 0.0
      %2398 = vmatprep.subr.mxu0 0.0
      %2399 = vmatpush1.msra.mxu0 0.0
      %2400 = vmatprep.subr.mxu0 0.0
      %2401 = vmatpush1.msra.mxu0 0.0
      %2402 = vmatprep.subr.mxu0 0.0
      %2403 = vmatpush1.msra.mxu0 0.0
      %2404 = vmatprep.subr.mxu0 0.0
      %2405 = vmatpush1.msra.mxu0 0.0
      %2406 = vmatprep.subr.mxu0 0.0
      %2407 = vmatpush1.msra.mxu0 0.0
      %2408 = vmatprep.mubr.f32.mxu0 0.0
      %2409 = vmatmul.mubr.f32.gmra.mrb[0].mxu0 %v2087
      %v2410 = vpop.f32.mrb[0].mxu0
      %v2411 = vadd.f32 0.0, %v2410
      %v2412 = vpop.f32.mrb[0].mxu0
      %v2413 = vadd.f32 0.0, %v2412
      %2414 = vmatprep.mubr.f32.mxu0 0.0
      %2415 = vmatmul.mubr.f32.gmra.mrb[0].mxu0 %v2090
      %v2416 = vpop.f32.mrb[0].mxu0
      %v2417 = vadd.f32 0.0, %v2416
      %v2418 = vpop.f32.mrb[0].mxu0
      %v2419 = vadd.f32 0.0, %v2418
      %2420 = vmatprep.mubr.f32.mxu0 0.0
      %2421 = vmatmul.mubr.f32.gmra.mrb[0].mxu0 %v2093
      %v2422 = vpop.f32.mrb[0].mxu0
      %v2423 = vadd.f32 0.0, %v2422
      %v2424 = vpop.f32.mrb[0].mxu0
      %v2425 = vadd.f32 0.0, %v2424
      %2426 = vdwg.mxu0
      %2427 = vmatprep.subr.mxu0 %v2030
      %2428 = vmatpush1.msra.mxu0 %v2029
      %2429 = vmatprep.subr.mxu0 %v2062
      %2430 = vmatpush1.msra.mxu0 %v2061
      %2431 = vmatprep.subr.mxu0 0.0
      %2432 = vmatpush1.msra.mxu0 0.0
      %2433 = vmatprep.subr.mxu0 0.0
      %2434 = vmatpush1.msra.mxu0 0.0
      %2435 = vmatprep.subr.mxu0 0.0
      %2436 = vmatpush1.msra.mxu0 0.0
      %2437 = vmatprep.subr.mxu0 0.0
      %2438 = vmatpush1.msra.mxu0 0.0
      %2439 = vmatprep.subr.mxu0 0.0
      %2440 = vmatpush1.msra.mxu0 0.0
      %2441 = vmatprep.subr.mxu0 0.0
      %2442 = vmatpush1.msra.mxu0 0.0
      %2443 = vmatprep.subr.mxu0 0.0
      %2444 = vmatpush1.msra.mxu0 0.0
      %2445 = vmatprep.subr.mxu0 0.0
      %2446 = vmatpush1.msra.mxu0 0.0
      %2447 = vmatprep.subr.mxu0 0.0
      %2448 = vmatpush1.msra.mxu0 0.0
      %2449 = vmatprep.subr.mxu0 0.0
      %2450 = vmatpush1.msra.mxu0 0.0
      %2451 = vmatprep.subr.mxu0 0.0
      %2452 = vmatpush1.msra.mxu0 0.0
      %2453 = vmatprep.subr.mxu0 0.0
      %2454 = vmatpush1.msra.mxu0 0.0
      %2455 = vmatprep.subr.mxu0 0.0
      %2456 = vmatpush1.msra.mxu0 0.0
      %2457 = vmatprep.subr.mxu0 0.0
      %2458 = vmatpush1.msra.mxu0 0.0
      %2459 = vmatprep.subr.mxu0 0.0
      %2460 = vmatpush1.msra.mxu0 0.0
      %2461 = vmatprep.subr.mxu0 0.0
      %2462 = vmatpush1.msra.mxu0 0.0
      %2463 = vmatprep.subr.mxu0 0.0
      %2464 = vmatpush1.msra.mxu0 0.0
      %2465 = vmatprep.subr.mxu0 0.0
      %2466 = vmatpush1.msra.mxu0 0.0
      %2467 = vmatprep.subr.mxu0 0.0
      %2468 = vmatpush1.msra.mxu0 0.0
      %2469 = vmatprep.subr.mxu0 0.0
      %2470 = vmatpush1.msra.mxu0 0.0
      %2471 = vmatprep.subr.mxu0 0.0
      %2472 = vmatpush1.msra.mxu0 0.0
      %2473 = vmatprep.subr.mxu0 0.0
      %2474 = vmatpush1.msra.mxu0 0.0
      %2475 = vmatprep.subr.mxu0 0.0
      %2476 = vmatpush1.msra.mxu0 0.0
      %2477 = vmatprep.subr.mxu0 0.0
      %2478 = vmatpush1.msra.mxu0 0.0
      %2479 = vmatprep.subr.mxu0 0.0
      %2480 = vmatpush1.msra.mxu0 0.0
      %2481 = vmatprep.subr.mxu0 0.0
      %2482 = vmatpush1.msra.mxu0 0.0
      %2483 = vmatprep.subr.mxu0 0.0
      %2484 = vmatpush1.msra.mxu0 0.0
      %2485 = vmatprep.subr.mxu0 0.0
      %2486 = vmatpush1.msra.mxu0 0.0
      %2487 = vmatprep.subr.mxu0 0.0
      %2488 = vmatpush1.msra.mxu0 0.0
      %2489 = vmatprep.subr.mxu0 0.0
      %2490 = vmatpush1.msra.mxu0 0.0
      %2491 = vmatprep.mubr.f32.mxu0 0.0
      %2492 = vmatmul.mubr.f32.gmra.mrb[0].mxu0 %v2087
      %v2493 = vpop.f32.mrb[0].mxu0
      %v2494 = vadd.f32 0.0, %v2493
      %v2495 = vpop.f32.mrb[0].mxu0
      %v2496 = vadd.f32 0.0, %v2495
      %2497 = vmatprep.mubr.f32.mxu0 0.0
      %2498 = vmatmul.mubr.f32.gmra.mrb[0].mxu0 %v2090
      %v2499 = vpop.f32.mrb[0].mxu0
      %v2500 = vadd.f32 0.0, %v2499
      %v2501 = vpop.f32.mrb[0].mxu0
      %v2502 = vadd.f32 0.0, %v2501
      %2503 = vmatprep.mubr.f32.mxu0 0.0
      %2504 = vmatmul.mubr.f32.gmra.mrb[0].mxu0 %v2093
      %v2505 = vpop.f32.mrb[0].mxu0
      %v2506 = vadd.f32 0.0, %v2505
      %v2507 = vpop.f32.mrb[0].mxu0
      %v2508 = vadd.f32 0.0, %v2507
      %2509 = vdwg.mxu0
      %2510 = vmatprep.subr.mxu0 %v2032
      %2511 = vmatpush1.msra.mxu0 %v2031
      %2512 = vmatprep.subr.mxu0 %v2064
      %2513 = vmatpush1.msra.mxu0 %v2063
      %2514 = vmatprep.subr.mxu0 0.0
      %2515 = vmatpush1.msra.mxu0 0.0
      %2516 = vmatprep.subr.mxu0 0.0
      %2517 = vmatpush1.msra.mxu0 0.0
      %2518 = vmatprep.subr.mxu0 0.0
      %2519 = vmatpush1.msra.mxu0 0.0
      %2520 = vmatprep.subr.mxu0 0.0
      %2521 = vmatpush1.msra.mxu0 0.0
      %2522 = vmatprep.subr.mxu0 0.0
      %2523 = vmatpush1.msra.mxu0 0.0
      %2524 = vmatprep.subr.mxu0 0.0
      %2525 = vmatpush1.msra.mxu0 0.0
      %2526 = vmatprep.subr.mxu0 0.0
      %2527 = vmatpush1.msra.mxu0 0.0
      %2528 = vmatprep.subr.mxu0 0.0
      %2529 = vmatpush1.msra.mxu0 0.0
      %2530 = vmatprep.subr.mxu0 0.0
      %2531 = vmatpush1.msra.mxu0 0.0
      %2532 = vmatprep.subr.mxu0 0.0
      %2533 = vmatpush1.msra.mxu0 0.0
      %2534 = vmatprep.subr.mxu0 0.0
      %2535 = vmatpush1.msra.mxu0 0.0
      %2536 = vmatprep.subr.mxu0 0.0
      %2537 = vmatpush1.msra.mxu0 0.0
      %2538 = vmatprep.subr.mxu0 0.0
      %2539 = vmatpush1.msra.mxu0 0.0
      %2540 = vmatprep.subr.mxu0 0.0
      %2541 = vmatpush1.msra.mxu0 0.0
      %2542 = vmatprep.subr.mxu0 0.0
      %2543 = vmatpush1.msra.mxu0 0.0
      %2544 = vmatprep.subr.mxu0 0.0
      %2545 = vmatpush1.msra.mxu0 0.0
      %2546 = vmatprep.subr.mxu0 0.0
      %2547 = vmatpush1.msra.mxu0 0.0
      %2548 = vmatprep.subr.mxu0 0.0
      %2549 = vmatpush1.msra.mxu0 0.0
      %2550 = vmatprep.subr.mxu0 0.0
      %2551 = vmatpush1.msra.mxu0 0.0
      %2552 = vmatprep.subr.mxu0 0.0
      %2553 = vmatpush1.msra.mxu0 0.0
      %2554 = vmatprep.subr.mxu0 0.0
      %2555 = vmatpush1.msra.mxu0 0.0
      %2556 = vmatprep.subr.mxu0 0.0
      %2557 = vmatpush1.msra.mxu0 0.0
      %2558 = vmatprep.subr.mxu0 0.0
      %2559 = vmatpush1.msra.mxu0 0.0
      %2560 = vmatprep.subr.mxu0 0.0
      %2561 = vmatpush1.msra.mxu0 0.0
      %2562 = vmatprep.subr.mxu0 0.0
      %2563 = vmatpush1.msra.mxu0 0.0
      %2564 = vmatprep.subr.mxu0 0.0
      %2565 = vmatpush1.msra.mxu0 0.0
      %2566 = vmatprep.subr.mxu0 0.0
      %2567 = vmatpush1.msra.mxu0 0.0
      %2568 = vmatprep.subr.mxu0 0.0
      %2569 = vmatpush1.msra.mxu0 0.0
      %2570 = vmatprep.subr.mxu0 0.0
      %2571 = vmatpush1.msra.mxu0 0.0
      %2572 = vmatprep.subr.mxu0 0.0
      %2573 = vmatpush1.msra.mxu0 0.0
      %2574 = vmatprep.mubr.f32.mxu0 0.0
      %2575 = vmatmul.mubr.f32.gmra.mrb[0].mxu0 %v2087
      %v2576 = vpop.f32.mrb[0].mxu0
      %v2577 = vadd.f32 0.0, %v2576
      %v2578 = vpop.f32.mrb[0].mxu0
      %v2579 = vadd.f32 0.0, %v2578
      %2580 = vmatprep.mubr.f32.mxu0 0.0
      %2581 = vmatmul.mubr.f32.gmra.mrb[0].mxu0 %v2090
      %v2582 = vpop.f32.mrb[0].mxu0
      %v2583 = vadd.f32 0.0, %v2582
      %v2584 = vpop.f32.mrb[0].mxu0
      %v2585 = vadd.f32 0.0, %v2584
      %2586 = vmatprep.mubr.f32.mxu0 0.0
      %2587 = vmatmul.mubr.f32.gmra.mrb[0].mxu0 %v2093
      %v2588 = vpop.f32.mrb[0].mxu0
      %v2589 = vadd.f32 0.0, %v2588
      %v2590 = vpop.f32.mrb[0].mxu0
      %v2591 = vadd.f32 0.0, %v2590
      %2592 = vdwg.mxu0
      %2593 = vmatprep.subr.mxu0 %v2034
      %2594 = vmatpush1.msra.mxu0 %v2033
      %2595 = vmatprep.subr.mxu0 %v2066
      %2596 = vmatpush1.msra.mxu0 %v2065
      %2597 = vmatprep.subr.mxu0 0.0
      %2598 = vmatpush1.msra.mxu0 0.0
      %2599 = vmatprep.subr.mxu0 0.0
      %2600 = vmatpush1.msra.mxu0 0.0
      %2601 = vmatprep.subr.mxu0 0.0
      %2602 = vmatpush1.msra.mxu0 0.0
      %2603 = vmatprep.subr.mxu0 0.0
      %2604 = vmatpush1.msra.mxu0 0.0
      %2605 = vmatprep.subr.mxu0 0.0
      %2606 = vmatpush1.msra.mxu0 0.0
      %2607 = vmatprep.subr.mxu0 0.0
      %2608 = vmatpush1.msra.mxu0 0.0
      %2609 = vmatprep.subr.mxu0 0.0
      %2610 = vmatpush1.msra.mxu0 0.0
      %2611 = vmatprep.subr.mxu0 0.0
      %2612 = vmatpush1.msra.mxu0 0.0
      %2613 = vmatprep.subr.mxu0 0.0
      %2614 = vmatpush1.msra.mxu0 0.0
      %2615 = vmatprep.subr.mxu0 0.0
      %2616 = vmatpush1.msra.mxu0 0.0
      %2617 = vmatprep.subr.mxu0 0.0
      %2618 = vmatpush1.msra.mxu0 0.0
      %2619 = vmatprep.subr.mxu0 0.0
      %2620 = vmatpush1.msra.mxu0 0.0
      %2621 = vmatprep.subr.mxu0 0.0
      %2622 = vmatpush1.msra.mxu0 0.0
      %2623 = vmatprep.subr.mxu0 0.0
      %2624 = vmatpush1.msra.mxu0 0.0
      %2625 = vmatprep.subr.mxu0 0.0
      %2626 = vmatpush1.msra.mxu0 0.0
      %2627 = vmatprep.subr.mxu0 0.0
      %2628 = vmatpush1.msra.mxu0 0.0
      %2629 = vmatprep.subr.mxu0 0.0
      %2630 = vmatpush1.msra.mxu0 0.0
      %2631 = vmatprep.subr.mxu0 0.0
      %2632 = vmatpush1.msra.mxu0 0.0
      %2633 = vmatprep.subr.mxu0 0.0
      %2634 = vmatpush1.msra.mxu0 0.0
      %2635 = vmatprep.subr.mxu0 0.0
      %2636 = vmatpush1.msra.mxu0 0.0
      %2637 = vmatprep.subr.mxu0 0.0
      %2638 = vmatpush1.msra.mxu0 0.0
      %2639 = vmatprep.subr.mxu0 0.0
      %2640 = vmatpush1.msra.mxu0 0.0
      %2641 = vmatprep.subr.mxu0 0.0
      %2642 = vmatpush1.msra.mxu0 0.0
      %2643 = vmatprep.subr.mxu0 0.0
      %2644 = vmatpush1.msra.mxu0 0.0
      %2645 = vmatprep.subr.mxu0 0.0
      %2646 = vmatpush1.msra.mxu0 0.0
      %2647 = vmatprep.subr.mxu0 0.0
      %2648 = vmatpush1.msra.mxu0 0.0
      %2649 = vmatprep.subr.mxu0 0.0
      %2650 = vmatpush1.msra.mxu0 0.0
      %2651 = vmatprep.subr.mxu0 0.0
      %2652 = vmatpush1.msra.mxu0 0.0
      %2653 = vmatprep.subr.mxu0 0.0
      %2654 = vmatpush1.msra.mxu0 0.0
      %2655 = vmatprep.subr.mxu0 0.0
      %2656 = vmatpush1.msra.mxu0 0.0
      %2657 = vmatprep.mubr.f32.mxu0 0.0
      %2658 = vmatmul.mubr.f32.gmra.mrb[0].mxu0 %v2087
      %v2659 = vpop.f32.mrb[0].mxu0
      %v2660 = vadd.f32 0.0, %v2659
      %v2661 = vpop.f32.mrb[0].mxu0
      %v2662 = vadd.f32 0.0, %v2661
      %2663 = vmatprep.mubr.f32.mxu0 0.0
      %2664 = vmatmul.mubr.f32.gmra.mrb[0].mxu0 %v2090
      %v2665 = vpop.f32.mrb[0].mxu0
      %v2666 = vadd.f32 0.0, %v2665
      %v2667 = vpop.f32.mrb[0].mxu0
      %v2668 = vadd.f32 0.0, %v2667
      %2669 = vmatprep.mubr.f32.mxu0 0.0
      %2670 = vmatmul.mubr.f32.gmra.mrb[0].mxu0 %v2093
      %v2671 = vpop.f32.mrb[0].mxu0
      %v2672 = vadd.f32 0.0, %v2671
      %v2673 = vpop.f32.mrb[0].mxu0
      %v2674 = vadd.f32 0.0, %v2673
      %2675 = vdwg.mxu0
      %2676 = vmatprep.subr.mxu0 %v2036
      %2677 = vmatpush1.msra.mxu0 %v2035
      %2678 = vmatprep.subr.mxu0 %v2068
      %2679 = vmatpush1.msra.mxu0 %v2067
      %2680 = vmatprep.subr.mxu0 0.0
      %2681 = vmatpush1.msra.mxu0 0.0
      %2682 = vmatprep.subr.mxu0 0.0
      %2683 = vmatpush1.msra.mxu0 0.0
      %2684 = vmatprep.subr.mxu0 0.0
      %2685 = vmatpush1.msra.mxu0 0.0
      %2686 = vmatprep.subr.mxu0 0.0
      %2687 = vmatpush1.msra.mxu0 0.0
      %2688 = vmatprep.subr.mxu0 0.0
      %2689 = vmatpush1.msra.mxu0 0.0
      %2690 = vmatprep.subr.mxu0 0.0
      %2691 = vmatpush1.msra.mxu0 0.0
      %2692 = vmatprep.subr.mxu0 0.0
      %2693 = vmatpush1.msra.mxu0 0.0
      %2694 = vmatprep.subr.mxu0 0.0
      %2695 = vmatpush1.msra.mxu0 0.0
      %2696 = vmatprep.subr.mxu0 0.0
      %2697 = vmatpush1.msra.mxu0 0.0
      %2698 = vmatprep.subr.mxu0 0.0
      %2699 = vmatpush1.msra.mxu0 0.0
      %2700 = vmatprep.subr.mxu0 0.0
      %2701 = vmatpush1.msra.mxu0 0.0
      %2702 = vmatprep.subr.mxu0 0.0
      %2703 = vmatpush1.msra.mxu0 0.0
      %2704 = vmatprep.subr.mxu0 0.0
      %2705 = vmatpush1.msra.mxu0 0.0
      %2706 = vmatprep.subr.mxu0 0.0
      %2707 = vmatpush1.msra.mxu0 0.0
      %2708 = vmatprep.subr.mxu0 0.0
      %2709 = vmatpush1.msra.mxu0 0.0
      %2710 = vmatprep.subr.mxu0 0.0
      %2711 = vmatpush1.msra.mxu0 0.0
      %2712 = vmatprep.subr.mxu0 0.0
      %2713 = vmatpush1.msra.mxu0 0.0
      %2714 = vmatprep.subr.mxu0 0.0
      %2715 = vmatpush1.msra.mxu0 0.0
      %2716 = vmatprep.subr.mxu0 0.0
      %2717 = vmatpush1.msra.mxu0 0.0
      %2718 = vmatprep.subr.mxu0 0.0
      %2719 = vmatpush1.msra.mxu0 0.0
      %2720 = vmatprep.subr.mxu0 0.0
      %2721 = vmatpush1.msra.mxu0 0.0
      %2722 = vmatprep.subr.mxu0 0.0
      %2723 = vmatpush1.msra.mxu0 0.0
      %2724 = vmatprep.subr.mxu0 0.0
      %2725 = vmatpush1.msra.mxu0 0.0
      %2726 = vmatprep.subr.mxu0 0.0
      %2727 = vmatpush1.msra.mxu0 0.0
      %2728 = vmatprep.subr.mxu0 0.0
      %2729 = vmatpush1.msra.mxu0 0.0
      %2730 = vmatprep.subr.mxu0 0.0
      %2731 = vmatpush1.msra.mxu0 0.0
      %2732 = vmatprep.subr.mxu0 0.0
      %2733 = vmatpush1.msra.mxu0 0.0
      %2734 = vmatprep.subr.mxu0 0.0
      %2735 = vmatpush1.msra.mxu0 0.0
      %2736 = vmatprep.subr.mxu0 0.0
      %2737 = vmatpush1.msra.mxu0 0.0
      %2738 = vmatprep.subr.mxu0 0.0
      %2739 = vmatpush1.msra.mxu0 0.0
      %2740 = vmatprep.mubr.f32.mxu0 0.0
      %2741 = vmatmul.mubr.f32.gmra.mrb[0].mxu0 %v2087
      %v2742 = vpop.f32.mrb[0].mxu0
      %v2743 = vadd.f32 0.0, %v2742
      %v2744 = vpop.f32.mrb[0].mxu0
      %v2745 = vadd.f32 0.0, %v2744
      %2746 = vmatprep.mubr.f32.mxu0 0.0
      %2747 = vmatmul.mubr.f32.gmra.mrb[0].mxu0 %v2090
      %v2748 = vpop.f32.mrb[0].mxu0
      %v2749 = vadd.f32 0.0, %v2748
      %v2750 = vpop.f32.mrb[0].mxu0
      %v2751 = vadd.f32 0.0, %v2750
      %2752 = vmatprep.mubr.f32.mxu0 0.0
      %2753 = vmatmul.mubr.f32.gmra.mrb[0].mxu0 %v2093
      %v2754 = vpop.f32.mrb[0].mxu0
      %v2755 = vadd.f32 0.0, %v2754
      %v2756 = vpop.f32.mrb[0].mxu0
      %v2757 = vadd.f32 0.0, %v2756
      %2758 = vdwg.mxu0
      %2759 = vmatprep.subr.mxu0 %v2038
      %2760 = vmatpush1.msra.mxu0 %v2037
      %2761 = vmatprep.subr.mxu0 %v2070
      %2762 = vmatpush1.msra.mxu0 %v2069
      %2763 = vmatprep.subr.mxu0 0.0
      %2764 = vmatpush1.msra.mxu0 0.0
      %2765 = vmatprep.subr.mxu0 0.0
      %2766 = vmatpush1.msra.mxu0 0.0
      %2767 = vmatprep.subr.mxu0 0.0
      %2768 = vmatpush1.msra.mxu0 0.0
      %2769 = vmatprep.subr.mxu0 0.0
      %2770 = vmatpush1.msra.mxu0 0.0
      %2771 = vmatprep.subr.mxu0 0.0
      %2772 = vmatpush1.msra.mxu0 0.0
      %2773 = vmatprep.subr.mxu0 0.0
      %2774 = vmatpush1.msra.mxu0 0.0
      %2775 = vmatprep.subr.mxu0 0.0
      %2776 = vmatpush1.msra.mxu0 0.0
      %2777 = vmatprep.subr.mxu0 0.0
      %2778 = vmatpush1.msra.mxu0 0.0
      %2779 = vmatprep.subr.mxu0 0.0
      %2780 = vmatpush1.msra.mxu0 0.0
      %2781 = vmatprep.subr.mxu0 0.0
      %2782 = vmatpush1.msra.mxu0 0.0
      %2783 = vmatprep.subr.mxu0 0.0
      %2784 = vmatpush1.msra.mxu0 0.0
      %2785 = vmatprep.subr.mxu0 0.0
      %2786 = vmatpush1.msra.mxu0 0.0
      %2787 = vmatprep.subr.mxu0 0.0
      %2788 = vmatpush1.msra.mxu0 0.0
      %2789 = vmatprep.subr.mxu0 0.0
      %2790 = vmatpush1.msra.mxu0 0.0
      %2791 = vmatprep.subr.mxu0 0.0
      %2792 = vmatpush1.msra.mxu0 0.0
      %2793 = vmatprep.subr.mxu0 0.0
      %2794 = vmatpush1.msra.mxu0 0.0
      %2795 = vmatprep.subr.mxu0 0.0
      %2796 = vmatpush1.msra.mxu0 0.0
      %2797 = vmatprep.subr.mxu0 0.0
      %2798 = vmatpush1.msra.mxu0 0.0
      %2799 = vmatprep.subr.mxu0 0.0
      %2800 = vmatpush1.msra.mxu0 0.0
      %2801 = vmatprep.subr.mxu0 0.0
      %2802 = vmatpush1.msra.mxu0 0.0
      %2803 = vmatprep.subr.mxu0 0.0
      %2804 = vmatpush1.msra.mxu0 0.0
      %2805 = vmatprep.subr.mxu0 0.0
      %2806 = vmatpush1.msra.mxu0 0.0
      %2807 = vmatprep.subr.mxu0 0.0
      %2808 = vmatpush1.msra.mxu0 0.0
      %2809 = vmatprep.subr.mxu0 0.0
      %2810 = vmatpush1.msra.mxu0 0.0
      %2811 = vmatprep.subr.mxu0 0.0
      %2812 = vmatpush1.msra.mxu0 0.0
      %2813 = vmatprep.subr.mxu0 0.0
      %2814 = vmatpush1.msra.mxu0 0.0
      %2815 = vmatprep.subr.mxu0 0.0
      %2816 = vmatpush1.msra.mxu0 0.0
      %2817 = vmatprep.subr.mxu0 0.0
      %2818 = vmatpush1.msra.mxu0 0.0
      %2819 = vmatprep.subr.mxu0 0.0
      %2820 = vmatpush1.msra.mxu0 0.0
      %2821 = vmatprep.subr.mxu0 0.0
      %2822 = vmatpush1.msra.mxu0 0.0
      %2823 = vmatprep.mubr.f32.mxu0 0.0
      %2824 = vmatmul.mubr.f32.gmra.mrb[0].mxu0 %v2087
      %v2825 = vpop.f32.mrb[0].mxu0
      %v2826 = vadd.f32 0.0, %v2825
      %v2827 = vpop.f32.mrb[0].mxu0
      %v2828 = vadd.f32 0.0, %v2827
      %2829 = vmatprep.mubr.f32.mxu0 0.0
      %2830 = vmatmul.mubr.f32.gmra.mrb[0].mxu0 %v2090
      %v2831 = vpop.f32.mrb[0].mxu0
      %v2832 = vadd.f32 0.0, %v2831
      %v2833 = vpop.f32.mrb[0].mxu0
      %v2834 = vadd.f32 0.0, %v2833
      %2835 = vmatprep.mubr.f32.mxu0 0.0
      %2836 = vmatmul.mubr.f32.gmra.mrb[0].mxu0 %v2093
      %v2837 = vpop.f32.mrb[0].mxu0
      %v2838 = vadd.f32 0.0, %v2837
      %v2839 = vpop.f32.mrb[0].mxu0
      %v2840 = vadd.f32 0.0, %v2839
      %2841 = vdwg.mxu0
      %2842 = vmatprep.subr.mxu0 %v2040
      %2843 = vmatpush1.msra.mxu0 %v2039
      %2844 = vmatprep.subr.mxu0 %v2072
      %2845 = vmatpush1.msra.mxu0 %v2071
      %2846 = vmatprep.subr.mxu0 0.0
      %2847 = vmatpush1.msra.mxu0 0.0
      %2848 = vmatprep.subr.mxu0 0.0
      %2849 = vmatpush1.msra.mxu0 0.0
      %2850 = vmatprep.subr.mxu0 0.0
      %2851 = vmatpush1.msra.mxu0 0.0
      %2852 = vmatprep.subr.mxu0 0.0
      %2853 = vmatpush1.msra.mxu0 0.0
      %2854 = vmatprep.subr.mxu0 0.0
      %2855 = vmatpush1.msra.mxu0 0.0
      %2856 = vmatprep.subr.mxu0 0.0
      %2857 = vmatpush1.msra.mxu0 0.0
      %2858 = vmatprep.subr.mxu0 0.0
      %2859 = vmatpush1.msra.mxu0 0.0
      %2860 = vmatprep.subr.mxu0 0.0
      %2861 = vmatpush1.msra.mxu0 0.0
      %2862 = vmatprep.subr.mxu0 0.0
      %2863 = vmatpush1.msra.mxu0 0.0
      %2864 = vmatprep.subr.mxu0 0.0
      %2865 = vmatpush1.msra.mxu0 0.0
      %2866 = vmatprep.subr.mxu0 0.0
      %2867 = vmatpush1.msra.mxu0 0.0
      %2868 = vmatprep.subr.mxu0 0.0
      %2869 = vmatpush1.msra.mxu0 0.0
      %2870 = vmatprep.subr.mxu0 0.0
      %2871 = vmatpush1.msra.mxu0 0.0
      %2872 = vmatprep.subr.mxu0 0.0
      %2873 = vmatpush1.msra.mxu0 0.0
      %2874 = vmatprep.subr.mxu0 0.0
      %2875 = vmatpush1.msra.mxu0 0.0
      %2876 = vmatprep.subr.mxu0 0.0
      %2877 = vmatpush1.msra.mxu0 0.0
      %2878 = vmatprep.subr.mxu0 0.0
      %2879 = vmatpush1.msra.mxu0 0.0
      %2880 = vmatprep.subr.mxu0 0.0
      %2881 = vmatpush1.msra.mxu0 0.0
      %2882 = vmatprep.subr.mxu0 0.0
      %2883 = vmatpush1.msra.mxu0 0.0
      %2884 = vmatprep.subr.mxu0 0.0
      %2885 = vmatpush1.msra.mxu0 0.0
      %2886 = vmatprep.subr.mxu0 0.0
      %2887 = vmatpush1.msra.mxu0 0.0
      %2888 = vmatprep.subr.mxu0 0.0
      %2889 = vmatpush1.msra.mxu0 0.0
      %2890 = vmatprep.subr.mxu0 0.0
      %2891 = vmatpush1.msra.mxu0 0.0
      %2892 = vmatprep.subr.mxu0 0.0
      %2893 = vmatpush1.msra.mxu0 0.0
      %2894 = vmatprep.subr.mxu0 0.0
      %2895 = vmatpush1.msra.mxu0 0.0
      %2896 = vmatprep.subr.mxu0 0.0
      %2897 = vmatpush1.msra.mxu0 0.0
      %2898 = vmatprep.subr.mxu0 0.0
      %2899 = vmatpush1.msra.mxu0 0.0
      %2900 = vmatprep.subr.mxu0 0.0
      %2901 = vmatpush1.msra.mxu0 0.0
      %2902 = vmatprep.subr.mxu0 0.0
      %2903 = vmatpush1.msra.mxu0 0.0
      %2904 = vmatprep.subr.mxu0 0.0
      %2905 = vmatpush1.msra.mxu0 0.0
      %2906 = vmatprep.mubr.f32.mxu0 0.0
      %2907 = vmatmul.mubr.f32.gmra.mrb[0].mxu0 %v2087
      %v2908 = vpop.f32.mrb[0].mxu0
      %v2909 = vadd.f32 0.0, %v2908
      %v2910 = vpop.f32.mrb[0].mxu0
      %v2911 = vadd.f32 0.0, %v2910
      %2912 = vmatprep.mubr.f32.mxu0 0.0
      %2913 = vmatmul.mubr.f32.gmra.mrb[0].mxu0 %v2090
      %v2914 = vpop.f32.mrb[0].mxu0
      %v2915 = vadd.f32 0.0, %v2914
      %v2916 = vpop.f32.mrb[0].mxu0
      %v2917 = vadd.f32 0.0, %v2916
      %2918 = vmatprep.mubr.f32.mxu0 0.0
      %2919 = vmatmul.mubr.f32.gmra.mrb[0].mxu0 %v2093
      %v2920 = vpop.f32.mrb[0].mxu0
      %v2921 = vadd.f32 0.0, %v2920
      %v2922 = vpop.f32.mrb[0].mxu0
      %v2923 = vadd.f32 0.0, %v2922
      %2924 = vdwg.mxu0
      %2925 = vmatprep.subr.mxu0 %v2042
      %2926 = vmatpush1.msra.mxu0 %v2041
      %2927 = vmatprep.subr.mxu0 %v2074
      %2928 = vmatpush1.msra.mxu0 %v2073
      %2929 = vmatprep.subr.mxu0 0.0
      %2930 = vmatpush1.msra.mxu0 0.0
      %2931 = vmatprep.subr.mxu0 0.0
      %2932 = vmatpush1.msra.mxu0 0.0
      %2933 = vmatprep.subr.mxu0 0.0
      %2934 = vmatpush1.msra.mxu0 0.0
      %2935 = vmatprep.subr.mxu0 0.0
      %2936 = vmatpush1.msra.mxu0 0.0
      %2937 = vmatprep.subr.mxu0 0.0
      %2938 = vmatpush1.msra.mxu0 0.0
      %2939 = vmatprep.subr.mxu0 0.0
      %2940 = vmatpush1.msra.mxu0 0.0
      %2941 = vmatprep.subr.mxu0 0.0
      %2942 = vmatpush1.msra.mxu0 0.0
      %2943 = vmatprep.subr.mxu0 0.0
      %2944 = vmatpush1.msra.mxu0 0.0
      %2945 = vmatprep.subr.mxu0 0.0
      %2946 = vmatpush1.msra.mxu0 0.0
      %2947 = vmatprep.subr.mxu0 0.0
      %2948 = vmatpush1.msra.mxu0 0.0
      %2949 = vmatprep.subr.mxu0 0.0
      %2950 = vmatpush1.msra.mxu0 0.0
      %2951 = vmatprep.subr.mxu0 0.0
      %2952 = vmatpush1.msra.mxu0 0.0
      %2953 = vmatprep.subr.mxu0 0.0
      %2954 = vmatpush1.msra.mxu0 0.0
      %2955 = vmatprep.subr.mxu0 0.0
      %2956 = vmatpush1.msra.mxu0 0.0
      %2957 = vmatprep.subr.mxu0 0.0
      %2958 = vmatpush1.msra.mxu0 0.0
      %2959 = vmatprep.subr.mxu0 0.0
      %2960 = vmatpush1.msra.mxu0 0.0
      %2961 = vmatprep.subr.mxu0 0.0
      %2962 = vmatpush1.msra.mxu0 0.0
      %2963 = vmatprep.subr.mxu0 0.0
      %2964 = vmatpush1.msra.mxu0 0.0
      %2965 = vmatprep.subr.mxu0 0.0
      %2966 = vmatpush1.msra.mxu0 0.0
      %2967 = vmatprep.subr.mxu0 0.0
      %2968 = vmatpush1.msra.mxu0 0.0
      %2969 = vmatprep.subr.mxu0 0.0
      %2970 = vmatpush1.msra.mxu0 0.0
      %2971 = vmatprep.subr.mxu0 0.0
      %2972 = vmatpush1.msra.mxu0 0.0
      %2973 = vmatprep.subr.mxu0 0.0
      %2974 = vmatpush1.msra.mxu0 0.0
      %2975 = vmatprep.subr.mxu0 0.0
      %2976 = vmatpush1.msra.mxu0 0.0
      %2977 = vmatprep.subr.mxu0 0.0
      %2978 = vmatpush1.msra.mxu0 0.0
      %2979 = vmatprep.subr.mxu0 0.0
      %2980 = vmatpush1.msra.mxu0 0.0
      %2981 = vmatprep.subr.mxu0 0.0
      %2982 = vmatpush1.msra.mxu0 0.0
      %2983 = vmatprep.subr.mxu0 0.0
      %2984 = vmatpush1.msra.mxu0 0.0
      %2985 = vmatprep.subr.mxu0 0.0
      %2986 = vmatpush1.msra.mxu0 0.0
      %2987 = vmatprep.subr.mxu0 0.0
      %2988 = vmatpush1.msra.mxu0 0.0
      %2989 = vmatprep.mubr.f32.mxu0 0.0
      %2990 = vmatmul.mubr.f32.gmra.mrb[0].mxu0 %v2087
      %v2991 = vpop.f32.mrb[0].mxu0
      %v2992 = vadd.f32 0.0, %v2991
      %v2993 = vpop.f32.mrb[0].mxu0
      %v2994 = vadd.f32 0.0, %v2993
      %2995 = vmatprep.mubr.f32.mxu0 0.0
      %2996 = vmatmul.mubr.f32.gmra.mrb[0].mxu0 %v2090
      %v2997 = vpop.f32.mrb[0].mxu0
      %v2998 = vadd.f32 0.0, %v2997
      %v2999 = vpop.f32.mrb[0].mxu0
      %v3000 = vadd.f32 0.0, %v2999
      %3001 = vmatprep.mubr.f32.mxu0 0.0
      %3002 = vmatmul.mubr.f32.gmra.mrb[0].mxu0 %v2093
      %v3003 = vpop.f32.mrb[0].mxu0
      %v3004 = vadd.f32 0.0, %v3003
      %v3005 = vpop.f32.mrb[0].mxu0
      %v3006 = vadd.f32 0.0, %v3005
      %3007 = vdwg.mxu0
      %3008 = vmatprep.subr.mxu0 %v2044
      %3009 = vmatpush1.msra.mxu0 %v2043
      %3010 = vmatprep.subr.mxu0 %v2076
      %3011 = vmatpush1.msra.mxu0 %v2075
      %3012 = vmatprep.subr.mxu0 0.0
      %3013 = vmatpush1.msra.mxu0 0.0
      %3014 = vmatprep.subr.mxu0 0.0
      %3015 = vmatpush1.msra.mxu0 0.0
      %3016 = vmatprep.subr.mxu0 0.0
      %3017 = vmatpush1.msra.mxu0 0.0
      %3018 = vmatprep.subr.mxu0 0.0
      %3019 = vmatpush1.msra.mxu0 0.0
      %3020 = vmatprep.subr.mxu0 0.0
      %3021 = vmatpush1.msra.mxu0 0.0
      %3022 = vmatprep.subr.mxu0 0.0
      %3023 = vmatpush1.msra.mxu0 0.0
      %3024 = vmatprep.subr.mxu0 0.0
      %3025 = vmatpush1.msra.mxu0 0.0
      %3026 = vmatprep.subr.mxu0 0.0
      %3027 = vmatpush1.msra.mxu0 0.0
      %3028 = vmatprep.subr.mxu0 0.0
      %3029 = vmatpush1.msra.mxu0 0.0
      %3030 = vmatprep.subr.mxu0 0.0
      %3031 = vmatpush1.msra.mxu0 0.0
      %3032 = vmatprep.subr.mxu0 0.0
      %3033 = vmatpush1.msra.mxu0 0.0
      %3034 = vmatprep.subr.mxu0 0.0
      %3035 = vmatpush1.msra.mxu0 0.0
      %3036 = vmatprep.subr.mxu0 0.0
      %3037 = vmatpush1.msra.mxu0 0.0
      %3038 = vmatprep.subr.mxu0 0.0
      %3039 = vmatpush1.msra.mxu0 0.0
      %3040 = vmatprep.subr.mxu0 0.0
      %3041 = vmatpush1.msra.mxu0 0.0
      %3042 = vmatprep.subr.mxu0 0.0
      %3043 = vmatpush1.msra.mxu0 0.0
      %3044 = vmatprep.subr.mxu0 0.0
      %3045 = vmatpush1.msra.mxu0 0.0
      %3046 = vmatprep.subr.mxu0 0.0
      %3047 = vmatpush1.msra.mxu0 0.0
      %3048 = vmatprep.subr.mxu0 0.0
      %3049 = vmatpush1.msra.mxu0 0.0
      %3050 = vmatprep.subr.mxu0 0.0
      %3051 = vmatpush1.msra.mxu0 0.0
      %3052 = vmatprep.subr.mxu0 0.0
      %3053 = vmatpush1.msra.mxu0 0.0
      %3054 = vmatprep.subr.mxu0 0.0
      %3055 = vmatpush1.msra.mxu0 0.0
      %3056 = vmatprep.subr.mxu0 0.0
      %3057 = vmatpush1.msra.mxu0 0.0
      %3058 = vmatprep.subr.mxu0 0.0
      %3059 = vmatpush1.msra.mxu0 0.0
      %3060 = vmatprep.subr.mxu0 0.0
      %3061 = vmatpush1.msra.mxu0 0.0
      %3062 = vmatprep.subr.mxu0 0.0
      %3063 = vmatpush1.msra.mxu0 0.0
      %3064 = vmatprep.subr.mxu0 0.0
      %3065 = vmatpush1.msra.mxu0 0.0
      %3066 = vmatprep.subr.mxu0 0.0
      %3067 = vmatpush1.msra.mxu0 0.0
      %3068 = vmatprep.subr.mxu0 0.0
      %3069 = vmatpush1.msra.mxu0 0.0
      %3070 = vmatprep.subr.mxu0 0.0
      %3071 = vmatpush1.msra.mxu0 0.0
      %3072 = vmatprep.mubr.f32.mxu0 0.0
      %3073 = vmatmul.mubr.f32.gmra.mrb[0].mxu0 %v2087
      %v3074 = vpop.f32.mrb[0].mxu0
      %v3075 = vadd.f32 0.0, %v3074
      %v3076 = vpop.f32.mrb[0].mxu0
      %v3077 = vadd.f32 0.0, %v3076
      %3078 = vmatprep.mubr.f32.mxu0 0.0
      %3079 = vmatmul.mubr.f32.gmra.mrb[0].mxu0 %v2090
      %v3080 = vpop.f32.mrb[0].mxu0
      %v3081 = vadd.f32 0.0, %v3080
      %v3082 = vpop.f32.mrb[0].mxu0
      %v3083 = vadd.f32 0.0, %v3082
      %3084 = vmatprep.mubr.f32.mxu0 0.0
      %3085 = vmatmul.mubr.f32.gmra.mrb[0].mxu0 %v2093
      %v3086 = vpop.f32.mrb[0].mxu0
      %v3087 = vadd.f32 0.0, %v3086
      %v3088 = vpop.f32.mrb[0].mxu0
      %v3089 = vadd.f32 0.0, %v3088
      %3090 = vdwg.mxu0
      %3091 = vmatprep.subr.mxu0 %v2046
      %3092 = vmatpush1.msra.mxu0 %v2045
      %3093 = vmatprep.subr.mxu0 %v2078
      %3094 = vmatpush1.msra.mxu0 %v2077
      %3095 = vmatprep.subr.mxu0 0.0
      %3096 = vmatpush1.msra.mxu0 0.0
      %3097 = vmatprep.subr.mxu0 0.0
      %3098 = vmatpush1.msra.mxu0 0.0
      %3099 = vmatprep.subr.mxu0 0.0
      %3100 = vmatpush1.msra.mxu0 0.0
      %3101 = vmatprep.subr.mxu0 0.0
      %3102 = vmatpush1.msra.mxu0 0.0
      %3103 = vmatprep.subr.mxu0 0.0
      %3104 = vmatpush1.msra.mxu0 0.0
      %3105 = vmatprep.subr.mxu0 0.0
      %3106 = vmatpush1.msra.mxu0 0.0
      %3107 = vmatprep.subr.mxu0 0.0
      %3108 = vmatpush1.msra.mxu0 0.0
      %3109 = vmatprep.subr.mxu0 0.0
      %3110 = vmatpush1.msra.mxu0 0.0
      %3111 = vmatprep.subr.mxu0 0.0
      %3112 = vmatpush1.msra.mxu0 0.0
      %3113 = vmatprep.subr.mxu0 0.0
      %3114 = vmatpush1.msra.mxu0 0.0
      %3115 = vmatprep.subr.mxu0 0.0
      %3116 = vmatpush1.msra.mxu0 0.0
      %3117 = vmatprep.subr.mxu0 0.0
      %3118 = vmatpush1.msra.mxu0 0.0
      %3119 = vmatprep.subr.mxu0 0.0
      %3120 = vmatpush1.msra.mxu0 0.0
      %3121 = vmatprep.subr.mxu0 0.0
      %3122 = vmatpush1.msra.mxu0 0.0
      %3123 = vmatprep.subr.mxu0 0.0
      %3124 = vmatpush1.msra.mxu0 0.0
      %3125 = vmatprep.subr.mxu0 0.0
      %3126 = vmatpush1.msra.mxu0 0.0
      %3127 = vmatprep.subr.mxu0 0.0
      %3128 = vmatpush1.msra.mxu0 0.0
      %3129 = vmatprep.subr.mxu0 0.0
      %3130 = vmatpush1.msra.mxu0 0.0
      %3131 = vmatprep.subr.mxu0 0.0
      %3132 = vmatpush1.msra.mxu0 0.0
      %3133 = vmatprep.subr.mxu0 0.0
      %3134 = vmatpush1.msra.mxu0 0.0
      %3135 = vmatprep.subr.mxu0 0.0
      %3136 = vmatpush1.msra.mxu0 0.0
      %3137 = vmatprep.subr.mxu0 0.0
      %3138 = vmatpush1.msra.mxu0 0.0
      %3139 = vmatprep.subr.mxu0 0.0
      %3140 = vmatpush1.msra.mxu0 0.0
      %3141 = vmatprep.subr.mxu0 0.0
      %3142 = vmatpush1.msra.mxu0 0.0
      %3143 = vmatprep.subr.mxu0 0.0
      %3144 = vmatpush1.msra.mxu0 0.0
      %3145 = vmatprep.subr.mxu0 0.0
      %3146 = vmatpush1.msra.mxu0 0.0
      %3147 = vmatprep.subr.mxu0 0.0
      %3148 = vmatpush1.msra.mxu0 0.0
      %3149 = vmatprep.subr.mxu0 0.0
      %3150 = vmatpush1.msra.mxu0 0.0
      %3151 = vmatprep.subr.mxu0 0.0
      %3152 = vmatpush1.msra.mxu0 0.0
      %3153 = vmatprep.subr.mxu0 0.0
      %3154 = vmatpush1.msra.mxu0 0.0
      %3155 = vmatprep.mubr.f32.mxu0 0.0
      %3156 = vmatmul.mubr.f32.gmra.mrb[0].mxu0 %v2087
      %v3157 = vpop.f32.mrb[0].mxu0
      %v3158 = vadd.f32 0.0, %v3157
      %v3159 = vpop.f32.mrb[0].mxu0
      %v3160 = vadd.f32 0.0, %v3159
      %3161 = vmatprep.mubr.f32.mxu0 0.0
      %3162 = vmatmul.mubr.f32.gmra.mrb[0].mxu0 %v2090
      %v3163 = vpop.f32.mrb[0].mxu0
      %v3164 = vadd.f32 0.0, %v3163
      %v3165 = vpop.f32.mrb[0].mxu0
      %v3166 = vadd.f32 0.0, %v3165
      %3167 = vmatprep.mubr.f32.mxu0 0.0
      %3168 = vmatmul.mubr.f32.gmra.mrb[0].mxu0 %v2093
      %v3169 = vpop.f32.mrb[0].mxu0
      %v3170 = vadd.f32 0.0, %v3169
      %v3171 = vpop.f32.mrb[0].mxu0
      %v3172 = vadd.f32 0.0, %v3171
      %3173 = vdwg.mxu0
      %3174 = vmatprep.subr.mxu0 %v2048
      %3175 = vmatpush1.msra.mxu0 %v2047
      %3176 = vmatprep.subr.mxu0 %v2080
      %3177 = vmatpush1.msra.mxu0 %v2079
      %3178 = vmatprep.subr.mxu0 0.0
      %3179 = vmatpush1.msra.mxu0 0.0
      %3180 = vmatprep.subr.mxu0 0.0
      %3181 = vmatpush1.msra.mxu0 0.0
      %3182 = vmatprep.subr.mxu0 0.0
      %3183 = vmatpush1.msra.mxu0 0.0
      %3184 = vmatprep.subr.mxu0 0.0
      %3185 = vmatpush1.msra.mxu0 0.0
      %3186 = vmatprep.subr.mxu0 0.0
      %3187 = vmatpush1.msra.mxu0 0.0
      %3188 = vmatprep.subr.mxu0 0.0
      %3189 = vmatpush1.msra.mxu0 0.0
      %3190 = vmatprep.subr.mxu0 0.0
      %3191 = vmatpush1.msra.mxu0 0.0
      %3192 = vmatprep.subr.mxu0 0.0
      %3193 = vmatpush1.msra.mxu0 0.0
      %3194 = vmatprep.subr.mxu0 0.0
      %3195 = vmatpush1.msra.mxu0 0.0
      %3196 = vmatprep.subr.mxu0 0.0
      %3197 = vmatpush1.msra.mxu0 0.0
      %3198 = vmatprep.subr.mxu0 0.0
      %3199 = vmatpush1.msra.mxu0 0.0
      %3200 = vmatprep.subr.mxu0 0.0
      %3201 = vmatpush1.msra.mxu0 0.0
      %3202 = vmatprep.subr.mxu0 0.0
      %3203 = vmatpush1.msra.mxu0 0.0
      %3204 = vmatprep.subr.mxu0 0.0
      %3205 = vmatpush1.msra.mxu0 0.0
      %3206 = vmatprep.subr.mxu0 0.0
      %3207 = vmatpush1.msra.mxu0 0.0
      %3208 = vmatprep.subr.mxu0 0.0
      %3209 = vmatpush1.msra.mxu0 0.0
      %3210 = vmatprep.subr.mxu0 0.0
      %3211 = vmatpush1.msra.mxu0 0.0
      %3212 = vmatprep.subr.mxu0 0.0
      %3213 = vmatpush1.msra.mxu0 0.0
      %3214 = vmatprep.subr.mxu0 0.0
      %3215 = vmatpush1.msra.mxu0 0.0
      %3216 = vmatprep.subr.mxu0 0.0
      %3217 = vmatpush1.msra.mxu0 0.0
      %3218 = vmatprep.subr.mxu0 0.0
      %3219 = vmatpush1.msra.mxu0 0.0
      %3220 = vmatprep.subr.mxu0 0.0
      %3221 = vmatpush1.msra.mxu0 0.0
      %3222 = vmatprep.subr.mxu0 0.0
      %3223 = vmatpush1.msra.mxu0 0.0
      %3224 = vmatprep.subr.mxu0 0.0
      %3225 = vmatpush1.msra.mxu0 0.0
      %3226 = vmatprep.subr.mxu0 0.0
      %3227 = vmatpush1.msra.mxu0 0.0
      %3228 = vmatprep.subr.mxu0 0.0
      %3229 = vmatpush1.msra.mxu0 0.0
      %3230 = vmatprep.subr.mxu0 0.0
      %3231 = vmatpush1.msra.mxu0 0.0
      %3232 = vmatprep.subr.mxu0 0.0
      %3233 = vmatpush1.msra.mxu0 0.0
      %3234 = vmatprep.subr.mxu0 0.0
      %3235 = vmatpush1.msra.mxu0 0.0
      %3236 = vmatprep.subr.mxu0 0.0
      %3237 = vmatpush1.msra.mxu0 0.0
      %3238 = vmatprep.mubr.f32.mxu0 0.0
      %3239 = vmatmul.mubr.f32.gmra.mrb[0].mxu0 %v2087
      %v3240 = vpop.f32.mrb[0].mxu0
      %v3241 = vadd.f32 0.0, %v3240
      %v3242 = vpop.f32.mrb[0].mxu0
      %v3243 = vadd.f32 0.0, %v3242
      %3244 = vmatprep.mubr.f32.mxu0 0.0
      %3245 = vmatmul.mubr.f32.gmra.mrb[0].mxu0 %v2090
      %v3246 = vpop.f32.mrb[0].mxu0
      %v3247 = vadd.f32 0.0, %v3246
      %v3248 = vpop.f32.mrb[0].mxu0
      %v3249 = vadd.f32 0.0, %v3248
      %3250 = vmatprep.mubr.f32.mxu0 0.0
      %3251 = vmatmul.mubr.f32.gmra.mrb[0].mxu0 %v2093
      %v3252 = vpop.f32.mrb[0].mxu0
      %v3253 = vadd.f32 0.0, %v3252
      %v3254 = vpop.f32.mrb[0].mxu0
      %v3255 = vadd.f32 0.0, %v3254
      %3256 = vdwg.mxu0
      %3257 = vmatprep.subr.mxu0 %v2050
      %3258 = vmatpush1.msra.mxu0 %v2049
      %3259 = vmatprep.subr.mxu0 %v2082
      %3260 = vmatpush1.msra.mxu0 %v2081
      %3261 = vmatprep.subr.mxu0 0.0
      %3262 = vmatpush1.msra.mxu0 0.0
      %3263 = vmatprep.subr.mxu0 0.0
      %3264 = vmatpush1.msra.mxu0 0.0
      %3265 = vmatprep.subr.mxu0 0.0
      %3266 = vmatpush1.msra.mxu0 0.0
      %3267 = vmatprep.subr.mxu0 0.0
      %3268 = vmatpush1.msra.mxu0 0.0
      %3269 = vmatprep.subr.mxu0 0.0
      %3270 = vmatpush1.msra.mxu0 0.0
      %3271 = vmatprep.subr.mxu0 0.0
      %3272 = vmatpush1.msra.mxu0 0.0
      %3273 = vmatprep.subr.mxu0 0.0
      %3274 = vmatpush1.msra.mxu0 0.0
      %3275 = vmatprep.subr.mxu0 0.0
      %3276 = vmatpush1.msra.mxu0 0.0
      %3277 = vmatprep.subr.mxu0 0.0
      %3278 = vmatpush1.msra.mxu0 0.0
      %3279 = vmatprep.subr.mxu0 0.0
      %3280 = vmatpush1.msra.mxu0 0.0
      %3281 = vmatprep.subr.mxu0 0.0
      %3282 = vmatpush1.msra.mxu0 0.0
      %3283 = vmatprep.subr.mxu0 0.0
      %3284 = vmatpush1.msra.mxu0 0.0
      %3285 = vmatprep.subr.mxu0 0.0
      %3286 = vmatpush1.msra.mxu0 0.0
      %3287 = vmatprep.subr.mxu0 0.0
      %3288 = vmatpush1.msra.mxu0 0.0
      %3289 = vmatprep.subr.mxu0 0.0
      %3290 = vmatpush1.msra.mxu0 0.0
      %3291 = vmatprep.subr.mxu0 0.0
      %3292 = vmatpush1.msra.mxu0 0.0
      %3293 = vmatprep.subr.mxu0 0.0
      %3294 = vmatpush1.msra.mxu0 0.0
      %3295 = vmatprep.subr.mxu0 0.0
      %3296 = vmatpush1.msra.mxu0 0.0
      %3297 = vmatprep.subr.mxu0 0.0
      %3298 = vmatpush1.msra.mxu0 0.0
      %3299 = vmatprep.subr.mxu0 0.0
      %3300 = vmatpush1.msra.mxu0 0.0
      %3301 = vmatprep.subr.mxu0 0.0
      %3302 = vmatpush1.msra.mxu0 0.0
      %3303 = vmatprep.subr.mxu0 0.0
      %3304 = vmatpush1.msra.mxu0 0.0
      %3305 = vmatprep.subr.mxu0 0.0
      %3306 = vmatpush1.msra.mxu0 0.0
      %3307 = vmatprep.subr.mxu0 0.0
      %3308 = vmatpush1.msra.mxu0 0.0
      %3309 = vmatprep.subr.mxu0 0.0
      %3310 = vmatpush1.msra.mxu0 0.0
      %3311 = vmatprep.subr.mxu0 0.0
      %3312 = vmatpush1.msra.mxu0 0.0
      %3313 = vmatprep.subr.mxu0 0.0
      %3314 = vmatpush1.msra.mxu0 0.0
      %3315 = vmatprep.subr.mxu0 0.0
      %3316 = vmatpush1.msra.mxu0 0.0
      %3317 = vmatprep.subr.mxu0 0.0
      %3318 = vmatpush1.msra.mxu0 0.0
      %3319 = vmatprep.subr.mxu0 0.0
      %3320 = vmatpush1.msra.mxu0 0.0
      %3321 = vmatprep.mubr.f32.mxu0 0.0
      %3322 = vmatmul.mubr.f32.gmra.mrb[0].mxu0 %v2087
      %v3323 = vpop.f32.mrb[0].mxu0
      %v3324 = vadd.f32 0.0, %v3323
      %v3325 = vpop.f32.mrb[0].mxu0
      %v3326 = vadd.f32 0.0, %v3325
      %3327 = vmatprep.mubr.f32.mxu0 0.0
      %3328 = vmatmul.mubr.f32.gmra.mrb[0].mxu0 %v2090
      %v3329 = vpop.f32.mrb[0].mxu0
      %v3330 = vadd.f32 0.0, %v3329
      %v3331 = vpop.f32.mrb[0].mxu0
      %v3332 = vadd.f32 0.0, %v3331
      %3333 = vmatprep.mubr.f32.mxu0 0.0
      %3334 = vmatmul.mubr.f32.gmra.mrb[0].mxu0 %v2093
      %v3335 = vpop.f32.mrb[0].mxu0
      %v3336 = vadd.f32 0.0, %v3335
      %v3337 = vpop.f32.mrb[0].mxu0
      %v3338 = vadd.f32 0.0, %v3337
      %3339 = vdwg.mxu0
      %3340 = vmatprep.subr.mxu0 %v2052
      %3341 = vmatpush1.msra.mxu0 %v2051
      %3342 = vmatprep.subr.mxu0 %v2084
      %3343 = vmatpush1.msra.mxu0 %v2083
      %3344 = vmatprep.subr.mxu0 0.0
      %3345 = vmatpush1.msra.mxu0 0.0
      %3346 = vmatprep.subr.mxu0 0.0
      %3347 = vmatpush1.msra.mxu0 0.0
      %3348 = vmatprep.subr.mxu0 0.0
      %3349 = vmatpush1.msra.mxu0 0.0
      %3350 = vmatprep.subr.mxu0 0.0
      %3351 = vmatpush1.msra.mxu0 0.0
      %3352 = vmatprep.subr.mxu0 0.0
      %3353 = vmatpush1.msra.mxu0 0.0
      %3354 = vmatprep.subr.mxu0 0.0
      %3355 = vmatpush1.msra.mxu0 0.0
      %3356 = vmatprep.subr.mxu0 0.0
      %3357 = vmatpush1.msra.mxu0 0.0
      %3358 = vmatprep.subr.mxu0 0.0
      %3359 = vmatpush1.msra.mxu0 0.0
      %3360 = vmatprep.subr.mxu0 0.0
      %3361 = vmatpush1.msra.mxu0 0.0
      %3362 = vmatprep.subr.mxu0 0.0
      %3363 = vmatpush1.msra.mxu0 0.0
      %3364 = vmatprep.subr.mxu0 0.0
      %3365 = vmatpush1.msra.mxu0 0.0
      %3366 = vmatprep.subr.mxu0 0.0
      %3367 = vmatpush1.msra.mxu0 0.0
      %3368 = vmatprep.subr.mxu0 0.0
      %3369 = vmatpush1.msra.mxu0 0.0
      %3370 = vmatprep.subr.mxu0 0.0
      %3371 = vmatpush1.msra.mxu0 0.0
      %3372 = vmatprep.subr.mxu0 0.0
      %3373 = vmatpush1.msra.mxu0 0.0
      %3374 = vmatprep.subr.mxu0 0.0
      %3375 = vmatpush1.msra.mxu0 0.0
      %3376 = vmatprep.subr.mxu0 0.0
      %3377 = vmatpush1.msra.mxu0 0.0
      %3378 = vmatprep.subr.mxu0 0.0
      %3379 = vmatpush1.msra.mxu0 0.0
      %3380 = vmatprep.subr.mxu0 0.0
      %3381 = vmatpush1.msra.mxu0 0.0
      %3382 = vmatprep.subr.mxu0 0.0
      %3383 = vmatpush1.msra.mxu0 0.0
      %3384 = vmatprep.subr.mxu0 0.0
      %3385 = vmatpush1.msra.mxu0 0.0
      %3386 = vmatprep.subr.mxu0 0.0
      %3387 = vmatpush1.msra.mxu0 0.0
      %3388 = vmatprep.subr.mxu0 0.0
      %3389 = vmatpush1.msra.mxu0 0.0
      %3390 = vmatprep.subr.mxu0 0.0
      %3391 = vmatpush1.msra.mxu0 0.0
      %3392 = vmatprep.subr.mxu0 0.0
      %3393 = vmatpush1.msra.mxu0 0.0
      %3394 = vmatprep.subr.mxu0 0.0
      %3395 = vmatpush1.msra.mxu0 0.0
      %3396 = vmatprep.subr.mxu0 0.0
      %3397 = vmatpush1.msra.mxu0 0.0
      %3398 = vmatprep.subr.mxu0 0.0
      %3399 = vmatpush1.msra.mxu0 0.0
      %3400 = vmatprep.subr.mxu0 0.0
      %3401 = vmatpush1.msra.mxu0 0.0
      %3402 = vmatprep.subr.mxu0 0.0
      %3403 = vmatpush1.msra.mxu0 0.0
      %3404 = vmatprep.mubr.f32.mxu0 0.0
      %3405 = vmatmul.mubr.f32.gmra.mrb[0].mxu0 %v2087
      %v3406 = vpop.f32.mrb[0].mxu0
      %v3407 = vadd.f32 0.0, %v3406
      %v3408 = vpop.f32.mrb[0].mxu0
      %v3409 = vadd.f32 0.0, %v3408
      %3410 = vmatprep.mubr.f32.mxu0 0.0
      %3411 = vmatmul.mubr.f32.gmra.mrb[0].mxu0 %v2090
      %v3412 = vpop.f32.mrb[0].mxu0
      %v3413 = vadd.f32 0.0, %v3412
      %v3414 = vpop.f32.mrb[0].mxu0
      %v3415 = vadd.f32 0.0, %v3414
      %3416 = vmatprep.mubr.f32.mxu0 0.0
      %3417 = vmatmul.mubr.f32.gmra.mrb[0].mxu0 %v2093
      %v3418 = vpop.f32.mrb[0].mxu0
      %v3419 = vadd.f32 0.0, %v3418
      %v3420 = vpop.f32.mrb[0].mxu0
      %v3421 = vadd.f32 0.0, %v3420
      %3422 = vdwg.mxu0
      %3423 = vst [vmem:[%s332] sm:$0xff] %v2162
      %3424 = vst [vmem:[%s332 + $0x8] sm:$0xff] %v2164
      %3425 = vst [vmem:[%s332 + $0x10] sm:$0xff] %v2245
      %3426 = vst [vmem:[%s332 + $0x18] sm:$0xff] %v2247
      %3427 = vst [vmem:[%s332 + $0x20] sm:$0xff] %v2328
      %3428 = vst [vmem:[%s332 + $0x28] sm:$0xff] %v2330
      %3429 = vst [vmem:[%s332 + $0x30] sm:$0xff] %v2411
      %3430 = vst [vmem:[%s332 + $0x38] sm:$0xff] %v2413
      %3431 = vst [vmem:[%s332 + $0x40] sm:$0xff] %v2494
      %3432 = vst [vmem:[%s332 + $0x48] sm:$0xff] %v2496
      %3433 = vst [vmem:[%s332 + $0x50] sm:$0xff] %v2577
      %3434 = vst [vmem:[%s332 + $0x58] sm:$0xff] %v2579
      %3435 = vst [vmem:[%s332 + $0x60] sm:$0xff] %v2660
      %3436 = vst [vmem:[%s332 + $0x68] sm:$0xff] %v2662
      %3437 = vst [vmem:[%s332 + $0x70] sm:$0xff] %v2743
      %3438 = vst [vmem:[%s332 + $0x78] sm:$0xff] %v2745
      %3439 = vst [vmem:[%s332 + $0x80] sm:$0xff] %v2826
      %3440 = vst [vmem:[%s332 + $0x88] sm:$0xff] %v2828
      %3441 = vst [vmem:[%s332 + $0x90] sm:$0xff] %v2909
      %3442 = vst [vmem:[%s332 + $0x98] sm:$0xff] %v2911
      %3443 = vst [vmem:[%s332 + $0xa0] sm:$0xff] %v2992
      %3444 = vst [vmem:[%s332 + $0xa8] sm:$0xff] %v2994
      %3445 = vst [vmem:[%s332 + $0xb0] sm:$0xff] %v3075
      %3446 = vst [vmem:[%s332 + $0xb8] sm:$0xff] %v3077
      %3447 = vst [vmem:[%s332 + $0xc0] sm:$0xff] %v3158
      %3448 = vst [vmem:[%s332 + $0xc8] sm:$0xff] %v3160
      %3449 = vst [vmem:[%s332 + $0xd0] sm:$0xff] %v3241
      %3450 = vst [vmem:[%s332 + $0xd8] sm:$0xff] %v3243
      %3451 = vst [vmem:[%s332 + $0xe0] sm:$0xff] %v3324
      %3452 = vst [vmem:[%s332 + $0xe8] sm:$0xff] %v3326
      %3453 = vst [vmem:[%s332 + $0xf0] sm:$0xff] %v3407
      %3454 = vst [vmem:[%s332 + $0xf8] sm:$0xff] %v3409
      %3455 = vst [vmem:[%s332 + $0x100] sm:$0xff] %v2168
      %3456 = vst [vmem:[%s332 + $0x108] sm:$0xff] %v2170
      %3457 = vst [vmem:[%s332 + $0x110] sm:$0xff] %v2251
      %3458 = vst [vmem:[%s332 + $0x118] sm:$0xff] %v2253
      %3459 = vst [vmem:[%s332 + $0x120] sm:$0xff] %v2334
      %3460 = vst [vmem:[%s332 + $0x128] sm:$0xff] %v2336
      %3461 = vst [vmem:[%s332 + $0x130] sm:$0xff] %v2417
      %3462 = vst [vmem:[%s332 + $0x138] sm:$0xff] %v2419
      %3463 = vst [vmem:[%s332 + $0x140] sm:$0xff] %v2500
      %3464 = vst [vmem:[%s332 + $0x148] sm:$0xff] %v2502
      %3465 = vst [vmem:[%s332 + $0x150] sm:$0xff] %v2583
      %3466 = vst [vmem:[%s332 + $0x158] sm:$0xff] %v2585
      %3467 = vst [vmem:[%s332 + $0x160] sm:$0xff] %v2666
      %3468 = vst [vmem:[%s332 + $0x168] sm:$0xff] %v2668
      %3469 = vst [vmem:[%s332 + $0x170] sm:$0xff] %v2749
      %3470 = vst [vmem:[%s332 + $0x178] sm:$0xff] %v2751
      %3471 = vst [vmem:[%s332 + $0x180] sm:$0xff] %v2832
      %3472 = vst [vmem:[%s332 + $0x188] sm:$0xff] %v2834
      %3473 = vst [vmem:[%s332 + $0x190] sm:$0xff] %v2915
      %3474 = vst [vmem:[%s332 + $0x198] sm:$0xff] %v2917
      %3475 = vst [vmem:[%s332 + $0x1a0] sm:$0xff] %v2998
      %3476 = vst [vmem:[%s332 + $0x1a8] sm:$0xff] %v3000
      %3477 = vst [vmem:[%s332 + $0x1b0] sm:$0xff] %v3081
      %3478 = vst [vmem:[%s332 + $0x1b8] sm:$0xff] %v3083
      %3479 = vst [vmem:[%s332 + $0x1c0] sm:$0xff] %v3164
      %3480 = vst [vmem:[%s332 + $0x1c8] sm:$0xff] %v3166
      %3481 = vst [vmem:[%s332 + $0x1d0] sm:$0xff] %v3247
      %3482 = vst [vmem:[%s332 + $0x1d8] sm:$0xff] %v3249
      %3483 = vst [vmem:[%s332 + $0x1e0] sm:$0xff] %v3330
      %3484 = vst [vmem:[%s332 + $0x1e8] sm:$0xff] %v3332
      %3485 = vst [vmem:[%s332 + $0x1f0] sm:$0xff] %v3413
      %3486 = vst [vmem:[%s332 + $0x1f8] sm:$0xff] %v3415
      %3487 = vst [vmem:[%s332 + $0x200] sm:$0x1f] %v2174
      %3488 = vst [vmem:[%s332 + $0x208] sm:$0x1f] %v2176
      %3489 = vst [vmem:[%s332 + $0x210] sm:$0x1f] %v2257
      %3490 = vst [vmem:[%s332 + $0x218] sm:$0x1f] %v2259
      %3491 = vst [vmem:[%s332 + $0x220] sm:$0x1f] %v2340
      %3492 = vst [vmem:[%s332 + $0x228] sm:$0x1f] %v2342
      %3493 = vst [vmem:[%s332 + $0x230] sm:$0x1f] %v2423
      %3494 = vst [vmem:[%s332 + $0x238] sm:$0x1f] %v2425
      %3495 = vst [vmem:[%s332 + $0x240] sm:$0x1f] %v2506
      %3496 = vst [vmem:[%s332 + $0x248] sm:$0x1f] %v2508
      %3497 = vst [vmem:[%s332 + $0x250] sm:$0x1f] %v2589
      %3498 = vst [vmem:[%s332 + $0x258] sm:$0x1f] %v2591
      %3499 = vst [vmem:[%s332 + $0x260] sm:$0x1f] %v2672
      %3500 = vst [vmem:[%s332 + $0x268] sm:$0x1f] %v2674
      %3501 = vst [vmem:[%s332 + $0x270] sm:$0x1f] %v2755
      %3502 = vst [vmem:[%s332 + $0x278] sm:$0x1f] %v2757
      %3503 = vst [vmem:[%s332 + $0x280] sm:$0x1f] %v2838
      %3504 = vst [vmem:[%s332 + $0x288] sm:$0x1f] %v2840
      %3505 = vst [vmem:[%s332 + $0x290] sm:$0x1f] %v2921
      %3506 = vst [vmem:[%s332 + $0x298] sm:$0x1f] %v2923
      %3507 = vst [vmem:[%s332 + $0x2a0] sm:$0x1f] %v3004
      %3508 = vst [vmem:[%s332 + $0x2a8] sm:$0x1f] %v3006
      %3509 = vst [vmem:[%s332 + $0x2b0] sm:$0x1f] %v3087
      %3510 = vst [vmem:[%s332 + $0x2b8] sm:$0x1f] %v3089
      %3511 = vst [vmem:[%s332 + $0x2c0] sm:$0x1f] %v3170
      %3512 = vst [vmem:[%s332 + $0x2c8] sm:$0x1f] %v3172
      %3513 = vst [vmem:[%s332 + $0x2d0] sm:$0x1f] %v3253
      %3514 = vst [vmem:[%s332 + $0x2d8] sm:$0x1f] %v3255
      %3515 = vst [vmem:[%s332 + $0x2e0] sm:$0x1f] %v3336
      %3516 = vst [vmem:[%s332 + $0x2e8] sm:$0x1f] %v3338
      %3517 = vst [vmem:[%s332 + $0x2f0] sm:$0x1f] %v3419
      %3518 = vst [vmem:[%s332 + $0x2f8] sm:$0x1f] %v3421
      %p3519 = scmp.lt.s32.totalorder %s20, 1
      %s3520 = scalar_select %p3519, %s20, 1
      %s3521 = smul.addr %s3520, 96
      %s3522 = smul.addr %s3521, 8
      %s3523 = scalar_lea.vmem %s9, %s3522
      // Predicated region
      $region57: #{lightweight_deeplabv3_forward.1} parent=55 // pred_check
        %p3524 = pneg %p232
      $region58: #{lightweight_deeplabv3_forward.1} parent=55 // pred_check_branch
        %3526 = sbr.rel (%p3524) target = $region60
      $region59: #{lightweight_deeplabv3_forward.1} parent=55 // pred_region
        _
      $region60: #{lightweight_deeplabv3_forward.1} parent=55 // pred_fallthru
        _
    $region56: #{lightweight_deeplabv3_forward.1} parent=5 // pred_fallthru
      _
    %p3527 = scmp.le.s32.totalorder 2, %s15
    // Predicated region
    $region61: #{lightweight_deeplabv3_forward.1} parent=5 // pred_check
      %p3528 = pneg %p3527
    $region62: #{lightweight_deeplabv3_forward.1} parent=5 // pred_check_branch
      %3530 = sbr.rel (%p3528) target = $region64
    $region63: #{lightweight_deeplabv3_forward.1} parent=5 // pred_region
      %s3531 = ssub.s32 %s15, 2
      // Predicated region
      $region65: #{lightweight_deeplabv3_forward.1} parent=63 // pred_check
        %p3532 = pneg %p238
      $region66: #{lightweight_deeplabv3_forward.1} parent=63 // pred_check_branch
        %3534 = sbr.rel (%p3532) target = $region68
      $region67: #{lightweight_deeplabv3_forward.1} parent=63 // pred_region
        %p3535 = scmp.lt.s32.totalorder %s21, 1
        %s3536 = scalar_select %p3535, %s21, 1
        %s3537 = smul.addr %s3536, 96
        %s3538 = smul.addr %s3537, 8
        %s3539 = scalar_lea.vmem %s9, %s3538
      $region68: #{lightweight_deeplabv3_forward.1} parent=63 // pred_fallthru
        _
    $region64: #{lightweight_deeplabv3_forward.1} parent=5 // pred_fallthru
      _
  $region6: #{lightweight_deeplabv3_forward.1} parent=0 // loop_footer
    %s19 = sadd.s32 1, %s15
  $region7: #{lightweight_deeplabv3_forward.1} parent=0 // loop_footer_branch
    %14 = sbr.rel target = $region3
  $region8: #{lightweight_deeplabv3_forward.1} parent=0 // loop_exit
    _

</llo_original>
